<compile_context>
chip_gen: v6e
topology: v6e:2x2x1
jax: 0.10.0
libtpu: 0.0.40
codegen_flags: <defaults>
</compile_context>

<pallas_src>
import functools

import jax
import jax.numpy as jnp
from jax import lax
from jax.experimental import pallas as pl
from jax.experimental.pallas import tpu as pltpu

LANE = 128
SUBLANE = 8


# --------------------- fused gather + GRU + head kernel ----------------------
def fused_gru_head_kernel(tok_ref, len_ref, gitab_ref, bhhn_ref, whh_ref,
                          whead_ref, bhead_ref, out_ref, gi_scr,
                          *, seq_len, batch, hidden, vocab, out_dim,
                          apply_softmax):
    """Entire forward pass in a single invocation (all operands VMEM-resident).

    tok_ref   : (S*B, 1) int32  token ids, time-major (row t*B + b)
    len_ref   : (B, 1)   int32  sequence lengths (0 for padded batch rows)
    gitab_ref : (V, 3H)  f32    emb @ W_ih^T + b_ih (+ b_hh folded into r/z gates)
    bhhn_ref  : (1, H)   f32    hidden bias of the n gate
    whh_ref   : (H, 3H)  f32    hidden->gates weights (transposed), gate order (r,z,n)
    whead_ref : (H, 128) f32    folded fc1@fc2 weights, lane-padded
    bhead_ref : (1, 128) f32    folded head bias, lane-padded
    out_ref   : (B, 128) f32    lane-padded logits / probabilities
    gi_scr    : (S*B, 3H) f32   VMEM scratch holding all per-step input-gate slabs
    """
    H = hidden
    B = batch

    # ---- token gather, hoisted out of the serial recurrence -----------------
    # One-hot (S*B, V) @ gi_table (V, 3H): a single vectorized MXU gather (V is
    # small), so the recurrence below only does h @ W_hh + elementwise gates.
    toks = tok_ref[...]                                                # (S*B, 1)
    vocab_iota = lax.broadcasted_iota(jnp.int32, (seq_len * B, vocab), 1)
    onehot = (vocab_iota == toks).astype(jnp.float32)                  # (S*B, V)
    gi_scr[...] = jnp.dot(onehot, gitab_ref[...],
                          preferred_element_type=jnp.float32)          # (S*B, 3H)

    whh = whh_ref[...]
    bhh_n = bhhn_ref[...]
    lens = len_ref[...]                                                # (B, 1)

    def step(t, h):
        gi = gi_scr[pl.ds(t * B, B), :]                                # (B, 3H)
        gh = jnp.dot(h, whh, preferred_element_type=jnp.float32)       # (B, 3H)
        r = jax.nn.sigmoid(gi[:, :H] + gh[:, :H])
        z = jax.nn.sigmoid(gi[:, H:2 * H] + gh[:, H:2 * H])
        n = jnp.tanh(gi[:, 2 * H:] + r * (gh[:, 2 * H:] + bhh_n))
        h_new = (1.0 - z) * n + z * h
        # Freeze the state once t >= length[b]: after the full loop, h equals
        # hiddens[b, length[b]-1], i.e. gather_last_relevant_hidden.
        return jnp.where(t < lens, h_new, h)

    h0 = jnp.zeros((B, H), jnp.float32)
    # S is small -> full unroll keeps LLO scheduling visibility.
    # TODO(synk): switch to partial unroll (4/8) if S grows into the hundreds.
    h_last = lax.fori_loop(0, seq_len, step, h0, unroll=True)

    # Folded fc1@fc2 head (no activation between fc1 and fc2 in the module;
    # dropout is identity in eval). Lane-padded to 128 -> dense final store.
    y = jnp.dot(h_last, whead_ref[...],
                preferred_element_type=jnp.float32) + bhead_ref[...]
    if apply_softmax:
        lane = lax.broadcasted_iota(jnp.int32, y.shape, 1)
        y = jnp.where(lane < out_dim, y, -1e30)        # mask padded lanes
        y = y - jnp.max(y, axis=-1, keepdims=True)
        e = jnp.exp(y)
        # exact reciprocal kept for 1e-4 parity; approx=True is a free EUP win
        # if the tolerance may be loosened.
        y = e * pl.reciprocal(jnp.sum(e, axis=-1, keepdims=True), approx=False)
    out_ref[...] = y.astype(out_ref.dtype)


# ------------------------------ full forward ----------------------------------
def news_model_forward(params, x_in, x_lengths, apply_softmax=False):
    """x_in: (B, S) int32 token ids; x_lengths: (B,) int32 (>= 1 per row)."""
    B, S = x_in.shape
    H = params["w_hh_t"].shape[0]
    D2 = params["w2_t"].shape[1]
    V = params["emb"].shape[0]

    # ---- weight-only XLA preprocessing (independent of x; cacheable) --------
    # fold the input projection into the embedding table:
    #   gi_table[v] = emb[v] @ W_ih^T + b_ih (+ b_hh folded into the r/z gates)
    bias_fold = params["b_ih"] + jnp.concatenate(
        [params["b_hh"][:, :2 * H], jnp.zeros((1, H), jnp.float32)], axis=1)
    gi_table = jnp.dot(params["emb"], params["w_ih_t"],
                       preferred_element_type=jnp.float32) + bias_fold   # (V, 3H)
    b_hh_n = params["b_hh"][:, 2 * H:]                                    # (1, H)

    # fold the activation-free fc1 -> fc2 head into one matmul, lane-pad to 128
    w_head = jnp.dot(params["w1_t"], params["w2_t"],
                     precision=lax.Precision.HIGHEST)                     # (H, D2)
    b_head = jnp.dot(params["b1"], params["w2_t"],
                     precision=lax.Precision.HIGHEST) + params["b2"]      # (1, D2)
    pad = LANE - D2
    w_head = jnp.pad(w_head, ((0, 0), (0, pad)))
    b_head = jnp.pad(b_head, ((0, 0), (0, pad)))

    # ---- per-example preprocessing: pad batch to a full sublane group -------
    Bp = max(SUBLANE, ((B + SUBLANE - 1) // SUBLANE) * SUBLANE)
    tok = jnp.zeros((Bp, S), jnp.int32).at[:B].set(x_in.astype(jnp.int32))
    # padded rows get length 0 -> they stay frozen at h0 inside the kernel
    lens = jnp.zeros((Bp, 1), jnp.int32).at[:B, 0].set(x_lengths.astype(jnp.int32))
    tok_tm = jnp.transpose(tok, (1, 0)).reshape(S * Bp, 1)                # time-major

    kern = functools.partial(fused_gru_head_kernel, seq_len=S, batch=Bp,
                             hidden=H, vocab=V, out_dim=D2,
                             apply_softmax=apply_softmax)
    out_pad = pl.pallas_call(
        kern,
        out_shape=jax.ShapeDtypeStruct((Bp, LANE), jnp.float32),
        # single invocation (no grid): every block is the full array, loaded to
        # VMEM exactly once (no double-buffering of constant weights).
        in_specs=[
            pl.BlockSpec((S * Bp, 1), lambda: (0, 0)),
            pl.BlockSpec((Bp, 1), lambda: (0, 0)),
            pl.BlockSpec((V, 3 * H), lambda: (0, 0)),
            pl.BlockSpec((1, H), lambda: (0, 0)),
            pl.BlockSpec((H, 3 * H), lambda: (0, 0)),
            pl.BlockSpec((H, LANE), lambda: (0, 0)),
            pl.BlockSpec((1, LANE), lambda: (0, 0)),
        ],
        out_specs=pl.BlockSpec((Bp, LANE), lambda: (0, 0)),
        scratch_shapes=[pltpu.VMEM((S * Bp, 3 * H), jnp.float32)],
    )(tok_tm, lens, gi_table, b_hh_n, params["w_hh_t"], w_head, b_head)
    return out_pad[:B, :D2]


# ------------------------------ pure-JAX reference ----------------------------
def reference_forward(params, x_in, x_lengths, apply_softmax=False):
    x_emb = jnp.take(params["emb"], x_in, axis=0)           # (B, S, E)
    H = params["w_hh_t"].shape[0]
    B = x_in.shape[0]

    def step(h_prev, x_t):
        gi = x_t @ params["w_ih_t"] + params["b_ih"]
        gh = h_prev @ params["w_hh_t"] + params["b_hh"]
        i_r, i_z, i_n = gi[:, :H], gi[:, H:2 * H], gi[:, 2 * H:]
        h_r, h_z, h_n = gh[:, :H], gh[:, H:2 * H], gh[:, 2 * H:]
        r = jax.nn.sigmoid(i_r + h_r)
        z = jax.nn.sigmoid(i_z + h_z)
        n = jnp.tanh(i_n + r * h_n)
        h_new = (1.0 - z) * n + z * h_prev
        return h_new, h_new

    h0 = jnp.zeros((B, H), jnp.float32)
    _, hs = lax.scan(step, h0, jnp.transpose(x_emb, (1, 0, 2)))  # (S, B, H)
    last_h = hs[x_lengths - 1, jnp.arange(B)]                    # lengths >= 1 assumed
    z = last_h @ params["w1_t"] + params["b1"]                   # dropout = identity (eval)
    y = z @ params["w2_t"] + params["b2"]
    if apply_softmax:
        y = jax.nn.softmax(y, axis=-1)
    return y


# ---------------------------------- main --------------------------------------
if __name__ == "__main__":
    # sizes taken from the module
    embedding_dim = 100
    rnn_hidden_dim = 256
    hidden_dim = 128
    output_dim = 4
    num_embeddings = 200
    batch_size = 5
    seq_size = 10
    padding_idx = 0

    key = jax.random.PRNGKey(0)
    ks = jax.random.split(key, 12)

    def init(k, shape, scale):
        return jax.random.uniform(k, shape, jnp.float32, -1.0, 1.0) * scale

    s_gru = 1.0 / jnp.sqrt(rnn_hidden_dim)
    emb = init(ks[0], (num_embeddings, embedding_dim), 1.0)
    emb = emb.at[padding_idx].set(0.0)                       # padding_idx row = 0

    params = {
        "emb": emb,
        # GRU weights stored transposed for x @ W^T; gate order (r, z, n)
        "w_ih_t": init(ks[1], (embedding_dim, 3 * rnn_hidden_dim), s_gru),
        "w_hh_t": init(ks[2], (rnn_hidden_dim, 3 * rnn_hidden_dim), s_gru),
        "b_ih": init(ks[3], (1, 3 * rnn_hidden_dim), s_gru),
        "b_hh": init(ks[4], (1, 3 * rnn_hidden_dim), s_gru),
        "w1_t": init(ks[5], (rnn_hidden_dim, hidden_dim), 1.0 / jnp.sqrt(rnn_hidden_dim)),
        "b1": init(ks[6], (1, hidden_dim), 1.0 / jnp.sqrt(rnn_hidden_dim)),
        "w2_t": init(ks[7], (hidden_dim, output_dim), 1.0 / jnp.sqrt(hidden_dim)),
        "b2": init(ks[8], (1, output_dim), 1.0 / jnp.sqrt(hidden_dim)),
    }

    x_in = jax.random.randint(ks[9], (batch_size, seq_size), 1, num_embeddings,
                              dtype=jnp.int32)
    x_lengths = jax.random.randint(ks[10], (batch_size,), 1, seq_size + 1,
                                   dtype=jnp.int32)

    y_pred = news_model_forward(params, x_in, x_lengths, apply_softmax=True)
    y_pred = jax.block_until_ready(y_pred)

    y_ref = reference_forward(params, x_in, x_lengths, apply_softmax=True)
    assert y_pred.shape == (batch_size, output_dim)
    assert jnp.allclose(y_pred, y_ref, atol=1e-4, rtol=1e-4), "mismatch vs reference"

    print("KERNEL_OK")
</pallas_src>

<mosaic_0001>
module attributes {stable_mosaic.version = 11 : i64} {
  func.func @fused_gru_head_kernel(%arg0: memref<80x1xi32, #tpu.memory_space<vmem>>, %arg1: memref<8x1xi32, #tpu.memory_space<vmem>>, %arg2: memref<200x768xf32, #tpu.memory_space<vmem>>, %arg3: memref<1x256xf32, #tpu.memory_space<vmem>>, %arg4: memref<256x768xf32, #tpu.memory_space<vmem>>, %arg5: memref<256x128xf32, #tpu.memory_space<vmem>>, %arg6: memref<1x128xf32, #tpu.memory_space<vmem>>, %arg7: memref<8x128xf32, #tpu.memory_space<vmem>>, %arg8: memref<80x768xf32, #tpu.memory_space<vmem>>) attributes {dimension_semantics = [], scalar_prefetch = 0 : i64, scratch_operands = 1 : i64, tpu.core_type = #tpu.core_type<tc>} {
    %c0 = arith.constant 0 : index
    %c0_0 = arith.constant 0 : index
    %0 = vector.load %arg0[%c0, %c0_0] : memref<80x1xi32, #tpu.memory_space<vmem>>, vector<80x1xi32>
    %1 = tpu.iota {dimensions = array<i32: 1>} : vector<80x200xi32>
    %2 = vector.broadcast %0 : vector<80x1xi32> to vector<80x200xi32>
    %3 = arith.cmpi eq, %1, %2 : vector<80x200xi32>
    %4 = arith.extui %3 : vector<80x200xi1> to vector<80x200xi32>
    %5 = arith.sitofp %4 : vector<80x200xi32> to vector<80x200xf32>
    %c0_1 = arith.constant 0 : index
    %c0_2 = arith.constant 0 : index
    %6 = vector.load %arg2[%c0_1, %c0_2] : memref<200x768xf32, #tpu.memory_space<vmem>>, vector<200x768xf32>
    %cst = arith.constant dense<0.000000e+00> : vector<80x768xf32>
    %7 = tpu.matmul %5, %6, %cst {dimension_numbers = #tpu.dot_dimension_numbers<[1], [0], [0], [1], [0, 0, 1, 1], [], []>} : vector<80x200xf32>, vector<200x768xf32>, vector<80x768xf32> -> vector<80x768xf32>
    %c0_3 = arith.constant 0 : index
    %c0_4 = arith.constant 0 : index
    %8 = vector.load %arg8[%c0_3, %c0_4] : memref<80x768xf32, #tpu.memory_space<vmem>>, vector<80x768xf32>
    tpu.vector_store %arg8[%c0_3, %c0_4], %7 {strides = array<i32>} : memref<80x768xf32, #tpu.memory_space<vmem>>, vector<80x768xf32>,
    %c0_5 = arith.constant 0 : index
    %c0_6 = arith.constant 0 : index
    %9 = vector.load %arg4[%c0_5, %c0_6] : memref<256x768xf32, #tpu.memory_space<vmem>>, vector<256x768xf32>
    %c0_7 = arith.constant 0 : index
    %c0_8 = arith.constant 0 : index
    %10 = vector.load %arg3[%c0_7, %c0_8] : memref<1x256xf32, #tpu.memory_space<vmem>>, vector<1x256xf32>
    %c0_9 = arith.constant 0 : index
    %c0_10 = arith.constant 0 : index
    %11 = vector.load %arg1[%c0_9, %c0_10] : memref<8x1xi32, #tpu.memory_space<vmem>>, vector<8x1xi32>
    %cst_11 = arith.constant 0.000000e+00 : f32
    %12 = vector.broadcast %cst_11 : f32 to vector<8x256xf32>
    %c0_i32 = arith.constant 0 : i32
    %c8_i32 = arith.constant 8 : i32
    %13 = arith.muli %c0_i32, %c8_i32 : i32
    %14 = arith.index_cast %13 : i32 to index
    %c0_12 = arith.constant 0 : index
    %15 = vector.load %arg8[%14, %c0_12] : memref<80x768xf32, #tpu.memory_space<vmem>>, vector<8x768xf32>
    %cst_13 = arith.constant dense<0.000000e+00> : vector<8x768xf32>
    %16 = tpu.matmul %12, %9, %cst_13 {dimension_numbers = #tpu.dot_dimension_numbers<[1], [0], [0], [1], [0, 0, 1, 1], [], []>} : vector<8x256xf32>, vector<256x768xf32>, vector<8x768xf32> -> vector<8x768xf32>
    %17 = vector.extract_strided_slice %15 {offsets = [0, 0], sizes = [8, 256], strides = [1, 1]} : vector<8x768xf32> to vector<8x256xf32>
    %18 = vector.extract_strided_slice %16 {offsets = [0, 0], sizes = [8, 256], strides = [1, 1]} : vector<8x768xf32> to vector<8x256xf32>
    %19 = arith.addf %17, %18 : vector<8x256xf32>
    %20 = arith.negf %19 : vector<8x256xf32>
    %21 = math.exp %20 : vector<8x256xf32>
    %cst_14 = arith.constant 1.000000e+00 : f32
    %22 = vector.broadcast %cst_14 : f32 to vector<8x256xf32>
    %23 = arith.addf %22, %21 : vector<8x256xf32>
    %24 = arith.divf %22, %23 : vector<8x256xf32>
    %25 = vector.extract_strided_slice %15 {offsets = [0, 256], sizes = [8, 256], strides = [1, 1]} : vector<8x768xf32> to vector<8x256xf32>
    %26 = vector.extract_strided_slice %16 {offsets = [0, 256], sizes = [8, 256], strides = [1, 1]} : vector<8x768xf32> to vector<8x256xf32>
    %27 = arith.addf %25, %26 : vector<8x256xf32>
    %28 = arith.negf %27 : vector<8x256xf32>
    %29 = math.exp %28 : vector<8x256xf32>
    %cst_15 = arith.constant 1.000000e+00 : f32
    %30 = vector.broadcast %cst_15 : f32 to vector<8x256xf32>
    %31 = arith.addf %30, %29 : vector<8x256xf32>
    %32 = arith.divf %30, %31 : vector<8x256xf32>
    %33 = vector.extract_strided_slice %15 {offsets = [0, 512], sizes = [8, 256], strides = [1, 1]} : vector<8x768xf32> to vector<8x256xf32>
    %34 = vector.extract_strided_slice %16 {offsets = [0, 512], sizes = [8, 256], strides = [1, 1]} : vector<8x768xf32> to vector<8x256xf32>
    %35 = vector.broadcast %10 : vector<1x256xf32> to vector<8x256xf32>
    %36 = arith.addf %34, %35 : vector<8x256xf32>
    %37 = arith.mulf %24, %36 : vector<8x256xf32>
    %38 = arith.addf %33, %37 : vector<8x256xf32>
    %39 = math.tanh %38 : vector<8x256xf32>
    %cst_16 = arith.constant 1.000000e+00 : f32
    %40 = vector.broadcast %cst_16 : f32 to vector<8x256xf32>
    %41 = arith.subf %40, %32 : vector<8x256xf32>
    %42 = arith.mulf %41, %39 : vector<8x256xf32>
    %43 = arith.mulf %32, %12 : vector<8x256xf32>
    %44 = arith.addf %42, %43 : vector<8x256xf32>
    %45 = vector.broadcast %c0_i32 : i32 to vector<8x1xi32>
    %46 = arith.cmpi slt, %45, %11 : vector<8x1xi32>
    %47 = vector.shape_cast %46 : vector<8x1xi1> to vector<8x1xi1>
    %48 = vector.broadcast %47 : vector<8x1xi1> to vector<8x256xi1>
    %49 = arith.select %48, %44, %12 : vector<8x256xi1>, vector<8x256xf32>
    %c1_i32 = arith.constant 1 : i32
    %c8_i32_17 = arith.constant 8 : i32
    %50 = arith.muli %c1_i32, %c8_i32_17 : i32
    %51 = arith.index_cast %50 : i32 to index
    %c0_18 = arith.constant 0 : index
    %52 = vector.load %arg8[%51, %c0_18] : memref<80x768xf32, #tpu.memory_space<vmem>>, vector<8x768xf32>
    %cst_19 = arith.constant dense<0.000000e+00> : vector<8x768xf32>
    %53 = tpu.matmul %49, %9, %cst_19 {dimension_numbers = #tpu.dot_dimension_numbers<[1], [0], [0], [1], [0, 0, 1, 1], [], []>} : vector<8x256xf32>, vector<256x768xf32>, vector<8x768xf32> -> vector<8x768xf32>
    %54 = vector.extract_strided_slice %52 {offsets = [0, 0], sizes = [8, 256], strides = [1, 1]} : vector<8x768xf32> to vector<8x256xf32>
    %55 = vector.extract_strided_slice %53 {offsets = [0, 0], sizes = [8, 256], strides = [1, 1]} : vector<8x768xf32> to vector<8x256xf32>
    %56 = arith.addf %54, %55 : vector<8x256xf32>
    %57 = arith.negf %56 : vector<8x256xf32>
    %58 = math.exp %57 : vector<8x256xf32>
    %cst_20 = arith.constant 1.000000e+00 : f32
    %59 = vector.broadcast %cst_20 : f32 to vector<8x256xf32>
    %60 = arith.addf %59, %58 : vector<8x256xf32>
    %61 = arith.divf %59, %60 : vector<8x256xf32>
    %62 = vector.extract_strided_slice %52 {offsets = [0, 256], sizes = [8, 256], strides = [1, 1]} : vector<8x768xf32> to vector<8x256xf32>
    %63 = vector.extract_strided_slice %53 {offsets = [0, 256], sizes = [8, 256], strides = [1, 1]} : vector<8x768xf32> to vector<8x256xf32>
    %64 = arith.addf %62, %63 : vector<8x256xf32>
    %65 = arith.negf %64 : vector<8x256xf32>
    %66 = math.exp %65 : vector<8x256xf32>
    %cst_21 = arith.constant 1.000000e+00 : f32
    %67 = vector.broadcast %cst_21 : f32 to vector<8x256xf32>
    %68 = arith.addf %67, %66 : vector<8x256xf32>
    %69 = arith.divf %67, %68 : vector<8x256xf32>
    %70 = vector.extract_strided_slice %52 {offsets = [0, 512], sizes = [8, 256], strides = [1, 1]} : vector<8x768xf32> to vector<8x256xf32>
    %71 = vector.extract_strided_slice %53 {offsets = [0, 512], sizes = [8, 256], strides = [1, 1]} : vector<8x768xf32> to vector<8x256xf32>
    %72 = vector.broadcast %10 : vector<1x256xf32> to vector<8x256xf32>
    %73 = arith.addf %71, %72 : vector<8x256xf32>
    %74 = arith.mulf %61, %73 : vector<8x256xf32>
    %75 = arith.addf %70, %74 : vector<8x256xf32>
    %76 = math.tanh %75 : vector<8x256xf32>
    %cst_22 = arith.constant 1.000000e+00 : f32
    %77 = vector.broadcast %cst_22 : f32 to vector<8x256xf32>
    %78 = arith.subf %77, %69 : vector<8x256xf32>
    %79 = arith.mulf %78, %76 : vector<8x256xf32>
    %80 = arith.mulf %69, %49 : vector<8x256xf32>
    %81 = arith.addf %79, %80 : vector<8x256xf32>
    %82 = vector.broadcast %c1_i32 : i32 to vector<8x1xi32>
    %83 = arith.cmpi slt, %82, %11 : vector<8x1xi32>
    %84 = vector.shape_cast %83 : vector<8x1xi1> to vector<8x1xi1>
    %85 = vector.broadcast %84 : vector<8x1xi1> to vector<8x256xi1>
    %86 = arith.select %85, %81, %49 : vector<8x256xi1>, vector<8x256xf32>
    %c2_i32 = arith.constant 2 : i32
    %c8_i32_23 = arith.constant 8 : i32
    %87 = arith.muli %c2_i32, %c8_i32_23 : i32
    %88 = arith.index_cast %87 : i32 to index
    %c0_24 = arith.constant 0 : index
    %89 = vector.load %arg8[%88, %c0_24] : memref<80x768xf32, #tpu.memory_space<vmem>>, vector<8x768xf32>
    %cst_25 = arith.constant dense<0.000000e+00> : vector<8x768xf32>
    %90 = tpu.matmul %86, %9, %cst_25 {dimension_numbers = #tpu.dot_dimension_numbers<[1], [0], [0], [1], [0, 0, 1, 1], [], []>} : vector<8x256xf32>, vector<256x768xf32>, vector<8x768xf32> -> vector<8x768xf32>
    %91 = vector.extract_strided_slice %89 {offsets = [0, 0], sizes = [8, 256], strides = [1, 1]} : vector<8x768xf32> to vector<8x256xf32>
    %92 = vector.extract_strided_slice %90 {offsets = [0, 0], sizes = [8, 256], strides = [1, 1]} : vector<8x768xf32> to vector<8x256xf32>
    %93 = arith.addf %91, %92 : vector<8x256xf32>
    %94 = arith.negf %93 : vector<8x256xf32>
    %95 = math.exp %94 : vector<8x256xf32>
    %cst_26 = arith.constant 1.000000e+00 : f32
    %96 = vector.broadcast %cst_26 : f32 to vector<8x256xf32>
    %97 = arith.addf %96, %95 : vector<8x256xf32>
    %98 = arith.divf %96, %97 : vector<8x256xf32>
    %99 = vector.extract_strided_slice %89 {offsets = [0, 256], sizes = [8, 256], strides = [1, 1]} : vector<8x768xf32> to vector<8x256xf32>
    %100 = vector.extract_strided_slice %90 {offsets = [0, 256], sizes = [8, 256], strides = [1, 1]} : vector<8x768xf32> to vector<8x256xf32>
    %101 = arith.addf %99, %100 : vector<8x256xf32>
    %102 = arith.negf %101 : vector<8x256xf32>
    %103 = math.exp %102 : vector<8x256xf32>
    %cst_27 = arith.constant 1.000000e+00 : f32
    %104 = vector.broadcast %cst_27 : f32 to vector<8x256xf32>
    %105 = arith.addf %104, %103 : vector<8x256xf32>
    %106 = arith.divf %104, %105 : vector<8x256xf32>
    %107 = vector.extract_strided_slice %89 {offsets = [0, 512], sizes = [8, 256], strides = [1, 1]} : vector<8x768xf32> to vector<8x256xf32>
    %108 = vector.extract_strided_slice %90 {offsets = [0, 512], sizes = [8, 256], strides = [1, 1]} : vector<8x768xf32> to vector<8x256xf32>
    %109 = vector.broadcast %10 : vector<1x256xf32> to vector<8x256xf32>
    %110 = arith.addf %108, %109 : vector<8x256xf32>
    %111 = arith.mulf %98, %110 : vector<8x256xf32>
    %112 = arith.addf %107, %111 : vector<8x256xf32>
    %113 = math.tanh %112 : vector<8x256xf32>
    %cst_28 = arith.constant 1.000000e+00 : f32
    %114 = vector.broadcast %cst_28 : f32 to vector<8x256xf32>
    %115 = arith.subf %114, %106 : vector<8x256xf32>
    %116 = arith.mulf %115, %113 : vector<8x256xf32>
    %117 = arith.mulf %106, %86 : vector<8x256xf32>
    %118 = arith.addf %116, %117 : vector<8x256xf32>
    %119 = vector.broadcast %c2_i32 : i32 to vector<8x1xi32>
    %120 = arith.cmpi slt, %119, %11 : vector<8x1xi32>
    %121 = vector.shape_cast %120 : vector<8x1xi1> to vector<8x1xi1>
    %122 = vector.broadcast %121 : vector<8x1xi1> to vector<8x256xi1>
    %123 = arith.select %122, %118, %86 : vector<8x256xi1>, vector<8x256xf32>
    %c3_i32 = arith.constant 3 : i32
    %c8_i32_29 = arith.constant 8 : i32
    %124 = arith.muli %c3_i32, %c8_i32_29 : i32
    %125 = arith.index_cast %124 : i32 to index
    %c0_30 = arith.constant 0 : index
    %126 = vector.load %arg8[%125, %c0_30] : memref<80x768xf32, #tpu.memory_space<vmem>>, vector<8x768xf32>
    %cst_31 = arith.constant dense<0.000000e+00> : vector<8x768xf32>
    %127 = tpu.matmul %123, %9, %cst_31 {dimension_numbers = #tpu.dot_dimension_numbers<[1], [0], [0], [1], [0, 0, 1, 1], [], []>} : vector<8x256xf32>, vector<256x768xf32>, vector<8x768xf32> -> vector<8x768xf32>
    %128 = vector.extract_strided_slice %126 {offsets = [0, 0], sizes = [8, 256], strides = [1, 1]} : vector<8x768xf32> to vector<8x256xf32>
    %129 = vector.extract_strided_slice %127 {offsets = [0, 0], sizes = [8, 256], strides = [1, 1]} : vector<8x768xf32> to vector<8x256xf32>
    %130 = arith.addf %128, %129 : vector<8x256xf32>
    %131 = arith.negf %130 : vector<8x256xf32>
    %132 = math.exp %131 : vector<8x256xf32>
    %cst_32 = arith.constant 1.000000e+00 : f32
    %133 = vector.broadcast %cst_32 : f32 to vector<8x256xf32>
    %134 = arith.addf %133, %132 : vector<8x256xf32>
    %135 = arith.divf %133, %134 : vector<8x256xf32>
    %136 = vector.extract_strided_slice %126 {offsets = [0, 256], sizes = [8, 256], strides = [1, 1]} : vector<8x768xf32> to vector<8x256xf32>
    %137 = vector.extract_strided_slice %127 {offsets = [0, 256], sizes = [8, 256], strides = [1, 1]} : vector<8x768xf32> to vector<8x256xf32>
    %138 = arith.addf %136, %137 : vector<8x256xf32>
    %139 = arith.negf %138 : vector<8x256xf32>
    %140 = math.exp %139 : vector<8x256xf32>
    %cst_33 = arith.constant 1.000000e+00 : f32
    %141 = vector.broadcast %cst_33 : f32 to vector<8x256xf32>
    %142 = arith.addf %141, %140 : vector<8x256xf32>
    %143 = arith.divf %141, %142 : vector<8x256xf32>
    %144 = vector.extract_strided_slice %126 {offsets = [0, 512], sizes = [8, 256], strides = [1, 1]} : vector<8x768xf32> to vector<8x256xf32>
    %145 = vector.extract_strided_slice %127 {offsets = [0, 512], sizes = [8, 256], strides = [1, 1]} : vector<8x768xf32> to vector<8x256xf32>
    %146 = vector.broadcast %10 : vector<1x256xf32> to vector<8x256xf32>
    %147 = arith.addf %145, %146 : vector<8x256xf32>
    %148 = arith.mulf %135, %147 : vector<8x256xf32>
    %149 = arith.addf %144, %148 : vector<8x256xf32>
    %150 = math.tanh %149 : vector<8x256xf32>
    %cst_34 = arith.constant 1.000000e+00 : f32
    %151 = vector.broadcast %cst_34 : f32 to vector<8x256xf32>
    %152 = arith.subf %151, %143 : vector<8x256xf32>
    %153 = arith.mulf %152, %150 : vector<8x256xf32>
    %154 = arith.mulf %143, %123 : vector<8x256xf32>
    %155 = arith.addf %153, %154 : vector<8x256xf32>
    %156 = vector.broadcast %c3_i32 : i32 to vector<8x1xi32>
    %157 = arith.cmpi slt, %156, %11 : vector<8x1xi32>
    %158 = vector.shape_cast %157 : vector<8x1xi1> to vector<8x1xi1>
    %159 = vector.broadcast %158 : vector<8x1xi1> to vector<8x256xi1>
    %160 = arith.select %159, %155, %123 : vector<8x256xi1>, vector<8x256xf32>
    %c4_i32 = arith.constant 4 : i32
    %c8_i32_35 = arith.constant 8 : i32
    %161 = arith.muli %c4_i32, %c8_i32_35 : i32
    %162 = arith.index_cast %161 : i32 to index
    %c0_36 = arith.constant 0 : index
    %163 = vector.load %arg8[%162, %c0_36] : memref<80x768xf32, #tpu.memory_space<vmem>>, vector<8x768xf32>
    %cst_37 = arith.constant dense<0.000000e+00> : vector<8x768xf32>
    %164 = tpu.matmul %160, %9, %cst_37 {dimension_numbers = #tpu.dot_dimension_numbers<[1], [0], [0], [1], [0, 0, 1, 1], [], []>} : vector<8x256xf32>, vector<256x768xf32>, vector<8x768xf32> -> vector<8x768xf32>
    %165 = vector.extract_strided_slice %163 {offsets = [0, 0], sizes = [8, 256], strides = [1, 1]} : vector<8x768xf32> to vector<8x256xf32>
    %166 = vector.extract_strided_slice %164 {offsets = [0, 0], sizes = [8, 256], strides = [1, 1]} : vector<8x768xf32> to vector<8x256xf32>
    %167 = arith.addf %165, %166 : vector<8x256xf32>
    %168 = arith.negf %167 : vector<8x256xf32>
    %169 = math.exp %168 : vector<8x256xf32>
    %cst_38 = arith.constant 1.000000e+00 : f32
    %170 = vector.broadcast %cst_38 : f32 to vector<8x256xf32>
    %171 = arith.addf %170, %169 : vector<8x256xf32>
    %172 = arith.divf %170, %171 : vector<8x256xf32>
    %173 = vector.extract_strided_slice %163 {offsets = [0, 256], sizes = [8, 256], strides = [1, 1]} : vector<8x768xf32> to vector<8x256xf32>
    %174 = vector.extract_strided_slice %164 {offsets = [0, 256], sizes = [8, 256], strides = [1, 1]} : vector<8x768xf32> to vector<8x256xf32>
    %175 = arith.addf %173, %174 : vector<8x256xf32>
    %176 = arith.negf %175 : vector<8x256xf32>
    %177 = math.exp %176 : vector<8x256xf32>
    %cst_39 = arith.constant 1.000000e+00 : f32
    %178 = vector.broadcast %cst_39 : f32 to vector<8x256xf32>
    %179 = arith.addf %178, %177 : vector<8x256xf32>
    %180 = arith.divf %178, %179 : vector<8x256xf32>
    %181 = vector.extract_strided_slice %163 {offsets = [0, 512], sizes = [8, 256], strides = [1, 1]} : vector<8x768xf32> to vector<8x256xf32>
    %182 = vector.extract_strided_slice %164 {offsets = [0, 512], sizes = [8, 256], strides = [1, 1]} : vector<8x768xf32> to vector<8x256xf32>
    %183 = vector.broadcast %10 : vector<1x256xf32> to vector<8x256xf32>
    %184 = arith.addf %182, %183 : vector<8x256xf32>
    %185 = arith.mulf %172, %184 : vector<8x256xf32>
    %186 = arith.addf %181, %185 : vector<8x256xf32>
    %187 = math.tanh %186 : vector<8x256xf32>
    %cst_40 = arith.constant 1.000000e+00 : f32
    %188 = vector.broadcast %cst_40 : f32 to vector<8x256xf32>
    %189 = arith.subf %188, %180 : vector<8x256xf32>
    %190 = arith.mulf %189, %187 : vector<8x256xf32>
    %191 = arith.mulf %180, %160 : vector<8x256xf32>
    %192 = arith.addf %190, %191 : vector<8x256xf32>
    %193 = vector.broadcast %c4_i32 : i32 to vector<8x1xi32>
    %194 = arith.cmpi slt, %193, %11 : vector<8x1xi32>
    %195 = vector.shape_cast %194 : vector<8x1xi1> to vector<8x1xi1>
    %196 = vector.broadcast %195 : vector<8x1xi1> to vector<8x256xi1>
    %197 = arith.select %196, %192, %160 : vector<8x256xi1>, vector<8x256xf32>
    %c5_i32 = arith.constant 5 : i32
    %c8_i32_41 = arith.constant 8 : i32
    %198 = arith.muli %c5_i32, %c8_i32_41 : i32
    %199 = arith.index_cast %198 : i32 to index
    %c0_42 = arith.constant 0 : index
    %200 = vector.load %arg8[%199, %c0_42] : memref<80x768xf32, #tpu.memory_space<vmem>>, vector<8x768xf32>
    %cst_43 = arith.constant dense<0.000000e+00> : vector<8x768xf32>
    %201 = tpu.matmul %197, %9, %cst_43 {dimension_numbers = #tpu.dot_dimension_numbers<[1], [0], [0], [1], [0, 0, 1, 1], [], []>} : vector<8x256xf32>, vector<256x768xf32>, vector<8x768xf32> -> vector<8x768xf32>
    %202 = vector.extract_strided_slice %200 {offsets = [0, 0], sizes = [8, 256], strides = [1, 1]} : vector<8x768xf32> to vector<8x256xf32>
    %203 = vector.extract_strided_slice %201 {offsets = [0, 0], sizes = [8, 256], strides = [1, 1]} : vector<8x768xf32> to vector<8x256xf32>
    %204 = arith.addf %202, %203 : vector<8x256xf32>
    %205 = arith.negf %204 : vector<8x256xf32>
    %206 = math.exp %205 : vector<8x256xf32>
    %cst_44 = arith.constant 1.000000e+00 : f32
    %207 = vector.broadcast %cst_44 : f32 to vector<8x256xf32>
    %208 = arith.addf %207, %206 : vector<8x256xf32>
    %209 = arith.divf %207, %208 : vector<8x256xf32>
    %210 = vector.extract_strided_slice %200 {offsets = [0, 256], sizes = [8, 256], strides = [1, 1]} : vector<8x768xf32> to vector<8x256xf32>
    %211 = vector.extract_strided_slice %201 {offsets = [0, 256], sizes = [8, 256], strides = [1, 1]} : vector<8x768xf32> to vector<8x256xf32>
    %212 = arith.addf %210, %211 : vector<8x256xf32>
    %213 = arith.negf %212 : vector<8x256xf32>
    %214 = math.exp %213 : vector<8x256xf32>
    %cst_45 = arith.constant 1.000000e+00 : f32
    %215 = vector.broadcast %cst_45 : f32 to vector<8x256xf32>
    %216 = arith.addf %215, %214 : vector<8x256xf32>
    %217 = arith.divf %215, %216 : vector<8x256xf32>
    %218 = vector.extract_strided_slice %200 {offsets = [0, 512], sizes = [8, 256], strides = [1, 1]} : vector<8x768xf32> to vector<8x256xf32>
    %219 = vector.extract_strided_slice %201 {offsets = [0, 512], sizes = [8, 256], strides = [1, 1]} : vector<8x768xf32> to vector<8x256xf32>
    %220 = vector.broadcast %10 : vector<1x256xf32> to vector<8x256xf32>
    %221 = arith.addf %219, %220 : vector<8x256xf32>
    %222 = arith.mulf %209, %221 : vector<8x256xf32>
    %223 = arith.addf %218, %222 : vector<8x256xf32>
    %224 = math.tanh %223 : vector<8x256xf32>
    %cst_46 = arith.constant 1.000000e+00 : f32
    %225 = vector.broadcast %cst_46 : f32 to vector<8x256xf32>
    %226 = arith.subf %225, %217 : vector<8x256xf32>
    %227 = arith.mulf %226, %224 : vector<8x256xf32>
    %228 = arith.mulf %217, %197 : vector<8x256xf32>
    %229 = arith.addf %227, %228 : vector<8x256xf32>
    %230 = vector.broadcast %c5_i32 : i32 to vector<8x1xi32>
    %231 = arith.cmpi slt, %230, %11 : vector<8x1xi32>
    %232 = vector.shape_cast %231 : vector<8x1xi1> to vector<8x1xi1>
    %233 = vector.broadcast %232 : vector<8x1xi1> to vector<8x256xi1>
    %234 = arith.select %233, %229, %197 : vector<8x256xi1>, vector<8x256xf32>
    %c6_i32 = arith.constant 6 : i32
    %c8_i32_47 = arith.constant 8 : i32
    %235 = arith.muli %c6_i32, %c8_i32_47 : i32
    %236 = arith.index_cast %235 : i32 to index
    %c0_48 = arith.constant 0 : index
    %237 = vector.load %arg8[%236, %c0_48] : memref<80x768xf32, #tpu.memory_space<vmem>>, vector<8x768xf32>
    %cst_49 = arith.constant dense<0.000000e+00> : vector<8x768xf32>
    %238 = tpu.matmul %234, %9, %cst_49 {dimension_numbers = #tpu.dot_dimension_numbers<[1], [0], [0], [1], [0, 0, 1, 1], [], []>} : vector<8x256xf32>, vector<256x768xf32>, vector<8x768xf32> -> vector<8x768xf32>
    %239 = vector.extract_strided_slice %237 {offsets = [0, 0], sizes = [8, 256], strides = [1, 1]} : vector<8x768xf32> to vector<8x256xf32>
    %240 = vector.extract_strided_slice %238 {offsets = [0, 0], sizes = [8, 256], strides = [1, 1]} : vector<8x768xf32> to vector<8x256xf32>
    %241 = arith.addf %239, %240 : vector<8x256xf32>
    %242 = arith.negf %241 : vector<8x256xf32>
    %243 = math.exp %242 : vector<8x256xf32>
    %cst_50 = arith.constant 1.000000e+00 : f32
    %244 = vector.broadcast %cst_50 : f32 to vector<8x256xf32>
    %245 = arith.addf %244, %243 : vector<8x256xf32>
    %246 = arith.divf %244, %245 : vector<8x256xf32>
    %247 = vector.extract_strided_slice %237 {offsets = [0, 256], sizes = [8, 256], strides = [1, 1]} : vector<8x768xf32> to vector<8x256xf32>
    %248 = vector.extract_strided_slice %238 {offsets = [0, 256], sizes = [8, 256], strides = [1, 1]} : vector<8x768xf32> to vector<8x256xf32>
    %249 = arith.addf %247, %248 : vector<8x256xf32>
    %250 = arith.negf %249 : vector<8x256xf32>
    %251 = math.exp %250 : vector<8x256xf32>
    %cst_51 = arith.constant 1.000000e+00 : f32
    %252 = vector.broadcast %cst_51 : f32 to vector<8x256xf32>
    %253 = arith.addf %252, %251 : vector<8x256xf32>
    %254 = arith.divf %252, %253 : vector<8x256xf32>
    %255 = vector.extract_strided_slice %237 {offsets = [0, 512], sizes = [8, 256], strides = [1, 1]} : vector<8x768xf32> to vector<8x256xf32>
    %256 = vector.extract_strided_slice %238 {offsets = [0, 512], sizes = [8, 256], strides = [1, 1]} : vector<8x768xf32> to vector<8x256xf32>
    %257 = vector.broadcast %10 : vector<1x256xf32> to vector<8x256xf32>
    %258 = arith.addf %256, %257 : vector<8x256xf32>
    %259 = arith.mulf %246, %258 : vector<8x256xf32>
    %260 = arith.addf %255, %259 : vector<8x256xf32>
    %261 = math.tanh %260 : vector<8x256xf32>
    %cst_52 = arith.constant 1.000000e+00 : f32
    %262 = vector.broadcast %cst_52 : f32 to vector<8x256xf32>
    %263 = arith.subf %262, %254 : vector<8x256xf32>
    %264 = arith.mulf %263, %261 : vector<8x256xf32>
    %265 = arith.mulf %254, %234 : vector<8x256xf32>
    %266 = arith.addf %264, %265 : vector<8x256xf32>
    %267 = vector.broadcast %c6_i32 : i32 to vector<8x1xi32>
    %268 = arith.cmpi slt, %267, %11 : vector<8x1xi32>
    %269 = vector.shape_cast %268 : vector<8x1xi1> to vector<8x1xi1>
    %270 = vector.broadcast %269 : vector<8x1xi1> to vector<8x256xi1>
    %271 = arith.select %270, %266, %234 : vector<8x256xi1>, vector<8x256xf32>
    %c7_i32 = arith.constant 7 : i32
    %c8_i32_53 = arith.constant 8 : i32
    %272 = arith.muli %c7_i32, %c8_i32_53 : i32
    %273 = arith.index_cast %272 : i32 to index
    %c0_54 = arith.constant 0 : index
    %274 = vector.load %arg8[%273, %c0_54] : memref<80x768xf32, #tpu.memory_space<vmem>>, vector<8x768xf32>
    %cst_55 = arith.constant dense<0.000000e+00> : vector<8x768xf32>
    %275 = tpu.matmul %271, %9, %cst_55 {dimension_numbers = #tpu.dot_dimension_numbers<[1], [0], [0], [1], [0, 0, 1, 1], [], []>} : vector<8x256xf32>, vector<256x768xf32>, vector<8x768xf32> -> vector<8x768xf32>
    %276 = vector.extract_strided_slice %274 {offsets = [0, 0], sizes = [8, 256], strides = [1, 1]} : vector<8x768xf32> to vector<8x256xf32>
    %277 = vector.extract_strided_slice %275 {offsets = [0, 0], sizes = [8, 256], strides = [1, 1]} : vector<8x768xf32> to vector<8x256xf32>
    %278 = arith.addf %276, %277 : vector<8x256xf32>
    %279 = arith.negf %278 : vector<8x256xf32>
    %280 = math.exp %279 : vector<8x256xf32>
    %cst_56 = arith.constant 1.000000e+00 : f32
    %281 = vector.broadcast %cst_56 : f32 to vector<8x256xf32>
    %282 = arith.addf %281, %280 : vector<8x256xf32>
    %283 = arith.divf %281, %282 : vector<8x256xf32>
    %284 = vector.extract_strided_slice %274 {offsets = [0, 256], sizes = [8, 256], strides = [1, 1]} : vector<8x768xf32> to vector<8x256xf32>
    %285 = vector.extract_strided_slice %275 {offsets = [0, 256], sizes = [8, 256], strides = [1, 1]} : vector<8x768xf32> to vector<8x256xf32>
    %286 = arith.addf %284, %285 : vector<8x256xf32>
    %287 = arith.negf %286 : vector<8x256xf32>
    %288 = math.exp %287 : vector<8x256xf32>
    %cst_57 = arith.constant 1.000000e+00 : f32
    %289 = vector.broadcast %cst_57 : f32 to vector<8x256xf32>
    %290 = arith.addf %289, %288 : vector<8x256xf32>
    %291 = arith.divf %289, %290 : vector<8x256xf32>
    %292 = vector.extract_strided_slice %274 {offsets = [0, 512], sizes = [8, 256], strides = [1, 1]} : vector<8x768xf32> to vector<8x256xf32>
    %293 = vector.extract_strided_slice %275 {offsets = [0, 512], sizes = [8, 256], strides = [1, 1]} : vector<8x768xf32> to vector<8x256xf32>
    %294 = vector.broadcast %10 : vector<1x256xf32> to vector<8x256xf32>
    %295 = arith.addf %293, %294 : vector<8x256xf32>
    %296 = arith.mulf %283, %295 : vector<8x256xf32>
    %297 = arith.addf %292, %296 : vector<8x256xf32>
    %298 = math.tanh %297 : vector<8x256xf32>
    %cst_58 = arith.constant 1.000000e+00 : f32
    %299 = vector.broadcast %cst_58 : f32 to vector<8x256xf32>
    %300 = arith.subf %299, %291 : vector<8x256xf32>
    %301 = arith.mulf %300, %298 : vector<8x256xf32>
    %302 = arith.mulf %291, %271 : vector<8x256xf32>
    %303 = arith.addf %301, %302 : vector<8x256xf32>
    %304 = vector.broadcast %c7_i32 : i32 to vector<8x1xi32>
    %305 = arith.cmpi slt, %304, %11 : vector<8x1xi32>
    %306 = vector.shape_cast %305 : vector<8x1xi1> to vector<8x1xi1>
    %307 = vector.broadcast %306 : vector<8x1xi1> to vector<8x256xi1>
    %308 = arith.select %307, %303, %271 : vector<8x256xi1>, vector<8x256xf32>
    %c8_i32_59 = arith.constant 8 : i32
    %c8_i32_60 = arith.constant 8 : i32
    %309 = arith.muli %c8_i32_59, %c8_i32_60 : i32
    %310 = arith.index_cast %309 : i32 to index
    %c0_61 = arith.constant 0 : index
    %311 = vector.load %arg8[%310, %c0_61] : memref<80x768xf32, #tpu.memory_space<vmem>>, vector<8x768xf32>
    %cst_62 = arith.constant dense<0.000000e+00> : vector<8x768xf32>
    %312 = tpu.matmul %308, %9, %cst_62 {dimension_numbers = #tpu.dot_dimension_numbers<[1], [0], [0], [1], [0, 0, 1, 1], [], []>} : vector<8x256xf32>, vector<256x768xf32>, vector<8x768xf32> -> vector<8x768xf32>
    %313 = vector.extract_strided_slice %311 {offsets = [0, 0], sizes = [8, 256], strides = [1, 1]} : vector<8x768xf32> to vector<8x256xf32>
    %314 = vector.extract_strided_slice %312 {offsets = [0, 0], sizes = [8, 256], strides = [1, 1]} : vector<8x768xf32> to vector<8x256xf32>
    %315 = arith.addf %313, %314 : vector<8x256xf32>
    %316 = arith.negf %315 : vector<8x256xf32>
    %317 = math.exp %316 : vector<8x256xf32>
    %cst_63 = arith.constant 1.000000e+00 : f32
    %318 = vector.broadcast %cst_63 : f32 to vector<8x256xf32>
    %319 = arith.addf %318, %317 : vector<8x256xf32>
    %320 = arith.divf %318, %319 : vector<8x256xf32>
    %321 = vector.extract_strided_slice %311 {offsets = [0, 256], sizes = [8, 256], strides = [1, 1]} : vector<8x768xf32> to vector<8x256xf32>
    %322 = vector.extract_strided_slice %312 {offsets = [0, 256], sizes = [8, 256], strides = [1, 1]} : vector<8x768xf32> to vector<8x256xf32>
    %323 = arith.addf %321, %322 : vector<8x256xf32>
    %324 = arith.negf %323 : vector<8x256xf32>
    %325 = math.exp %324 : vector<8x256xf32>
    %cst_64 = arith.constant 1.000000e+00 : f32
    %326 = vector.broadcast %cst_64 : f32 to vector<8x256xf32>
    %327 = arith.addf %326, %325 : vector<8x256xf32>
    %328 = arith.divf %326, %327 : vector<8x256xf32>
    %329 = vector.extract_strided_slice %311 {offsets = [0, 512], sizes = [8, 256], strides = [1, 1]} : vector<8x768xf32> to vector<8x256xf32>
    %330 = vector.extract_strided_slice %312 {offsets = [0, 512], sizes = [8, 256], strides = [1, 1]} : vector<8x768xf32> to vector<8x256xf32>
    %331 = vector.broadcast %10 : vector<1x256xf32> to vector<8x256xf32>
    %332 = arith.addf %330, %331 : vector<8x256xf32>
    %333 = arith.mulf %320, %332 : vector<8x256xf32>
    %334 = arith.addf %329, %333 : vector<8x256xf32>
    %335 = math.tanh %334 : vector<8x256xf32>
    %cst_65 = arith.constant 1.000000e+00 : f32
    %336 = vector.broadcast %cst_65 : f32 to vector<8x256xf32>
    %337 = arith.subf %336, %328 : vector<8x256xf32>
    %338 = arith.mulf %337, %335 : vector<8x256xf32>
    %339 = arith.mulf %328, %308 : vector<8x256xf32>
    %340 = arith.addf %338, %339 : vector<8x256xf32>
    %341 = vector.broadcast %c8_i32_59 : i32 to vector<8x1xi32>
    %342 = arith.cmpi slt, %341, %11 : vector<8x1xi32>
    %343 = vector.shape_cast %342 : vector<8x1xi1> to vector<8x1xi1>
    %344 = vector.broadcast %343 : vector<8x1xi1> to vector<8x256xi1>
    %345 = arith.select %344, %340, %308 : vector<8x256xi1>, vector<8x256xf32>
    %c9_i32 = arith.constant 9 : i32
    %c8_i32_66 = arith.constant 8 : i32
    %346 = arith.muli %c9_i32, %c8_i32_66 : i32
    %347 = arith.index_cast %346 : i32 to index
    %c0_67 = arith.constant 0 : index
    %348 = vector.load %arg8[%347, %c0_67] : memref<80x768xf32, #tpu.memory_space<vmem>>, vector<8x768xf32>
    %cst_68 = arith.constant dense<0.000000e+00> : vector<8x768xf32>
    %349 = tpu.matmul %345, %9, %cst_68 {dimension_numbers = #tpu.dot_dimension_numbers<[1], [0], [0], [1], [0, 0, 1, 1], [], []>} : vector<8x256xf32>, vector<256x768xf32>, vector<8x768xf32> -> vector<8x768xf32>
    %350 = vector.extract_strided_slice %348 {offsets = [0, 0], sizes = [8, 256], strides = [1, 1]} : vector<8x768xf32> to vector<8x256xf32>
    %351 = vector.extract_strided_slice %349 {offsets = [0, 0], sizes = [8, 256], strides = [1, 1]} : vector<8x768xf32> to vector<8x256xf32>
    %352 = arith.addf %350, %351 : vector<8x256xf32>
    %353 = arith.negf %352 : vector<8x256xf32>
    %354 = math.exp %353 : vector<8x256xf32>
    %cst_69 = arith.constant 1.000000e+00 : f32
    %355 = vector.broadcast %cst_69 : f32 to vector<8x256xf32>
    %356 = arith.addf %355, %354 : vector<8x256xf32>
    %357 = arith.divf %355, %356 : vector<8x256xf32>
    %358 = vector.extract_strided_slice %348 {offsets = [0, 256], sizes = [8, 256], strides = [1, 1]} : vector<8x768xf32> to vector<8x256xf32>
    %359 = vector.extract_strided_slice %349 {offsets = [0, 256], sizes = [8, 256], strides = [1, 1]} : vector<8x768xf32> to vector<8x256xf32>
    %360 = arith.addf %358, %359 : vector<8x256xf32>
    %361 = arith.negf %360 : vector<8x256xf32>
    %362 = math.exp %361 : vector<8x256xf32>
    %cst_70 = arith.constant 1.000000e+00 : f32
    %363 = vector.broadcast %cst_70 : f32 to vector<8x256xf32>
    %364 = arith.addf %363, %362 : vector<8x256xf32>
    %365 = arith.divf %363, %364 : vector<8x256xf32>
    %366 = vector.extract_strided_slice %348 {offsets = [0, 512], sizes = [8, 256], strides = [1, 1]} : vector<8x768xf32> to vector<8x256xf32>
    %367 = vector.extract_strided_slice %349 {offsets = [0, 512], sizes = [8, 256], strides = [1, 1]} : vector<8x768xf32> to vector<8x256xf32>
    %368 = vector.broadcast %10 : vector<1x256xf32> to vector<8x256xf32>
    %369 = arith.addf %367, %368 : vector<8x256xf32>
    %370 = arith.mulf %357, %369 : vector<8x256xf32>
    %371 = arith.addf %366, %370 : vector<8x256xf32>
    %372 = math.tanh %371 : vector<8x256xf32>
    %cst_71 = arith.constant 1.000000e+00 : f32
    %373 = vector.broadcast %cst_71 : f32 to vector<8x256xf32>
    %374 = arith.subf %373, %365 : vector<8x256xf32>
    %375 = arith.mulf %374, %372 : vector<8x256xf32>
    %376 = arith.mulf %365, %345 : vector<8x256xf32>
    %377 = arith.addf %375, %376 : vector<8x256xf32>
    %378 = vector.broadcast %c9_i32 : i32 to vector<8x1xi32>
    %379 = arith.cmpi slt, %378, %11 : vector<8x1xi32>
    %380 = vector.shape_cast %379 : vector<8x1xi1> to vector<8x1xi1>
    %381 = vector.broadcast %380 : vector<8x1xi1> to vector<8x256xi1>
    %382 = arith.select %381, %377, %345 : vector<8x256xi1>, vector<8x256xf32>
    %c10_i32 = arith.constant 10 : i32
    %c0_72 = arith.constant 0 : index
    %c0_73 = arith.constant 0 : index
    %383 = vector.load %arg5[%c0_72, %c0_73] : memref<256x128xf32, #tpu.memory_space<vmem>>, vector<256x128xf32>
    %cst_74 = arith.constant dense<0.000000e+00> : vector<8x128xf32>
    %384 = tpu.matmul %382, %383, %cst_74 {dimension_numbers = #tpu.dot_dimension_numbers<[1], [0], [0], [1], [0, 0, 1, 1], [], []>} : vector<8x256xf32>, vector<256x128xf32>, vector<8x128xf32> -> vector<8x128xf32>
    %c0_75 = arith.constant 0 : index
    %c0_76 = arith.constant 0 : index
    %385 = vector.load %arg6[%c0_75, %c0_76] : memref<1x128xf32, #tpu.memory_space<vmem>>, vector<1x128xf32>
    %386 = vector.broadcast %385 : vector<1x128xf32> to vector<8x128xf32>
    %387 = arith.addf %384, %386 : vector<8x128xf32>
    %388 = tpu.iota {dimensions = array<i32: 1>} : vector<8x128xi32>
    %c4_i32_77 = arith.constant 4 : i32
    %389 = vector.broadcast %c4_i32_77 : i32 to vector<8x128xi32>
    %390 = arith.cmpi slt, %388, %389 : vector<8x128xi32>
    %cst_78 = arith.constant -1.000000e+30 : f32
    %391 = vector.broadcast %cst_78 : f32 to vector<8x128xf32>
    %392 = arith.select %390, %387, %391 : vector<8x128xi1>, vector<8x128xf32>
    %cst_79 = arith.constant dense<0xFF800000> : vector<8xf32>
    %393 = vector.multi_reduction <maximumf>, %392, %cst_79 [1] : vector<8x128xf32> to vector<8xf32>
    %394 = vector.shape_cast %393 : vector<8xf32> to vector<8x1xf32>
    %395 = vector.broadcast %394 : vector<8x1xf32> to vector<8x128xf32>
    %396 = arith.subf %392, %395 : vector<8x128xf32>
    %397 = math.exp %396 : vector<8x128xf32>
    %cst_80 = arith.constant dense<0.000000e+00> : vector<8xf32>
    %398 = vector.multi_reduction <add>, %397, %cst_80 [1] : vector<8x128xf32> to vector<8xf32>
    %399 = vector.shape_cast %398 : vector<8xf32> to vector<8x1xf32>
    %400 = tpu.reciprocal %399 : vector<8x1xf32> -> vector<8x1xf32>
    %401 = vector.broadcast %400 : vector<8x1xf32> to vector<8x128xf32>
    %402 = arith.mulf %397, %401 : vector<8x128xf32>
    %c0_81 = arith.constant 0 : index
    %c0_82 = arith.constant 0 : index
    %403 = vector.load %arg7[%c0_81, %c0_82] : memref<8x128xf32, #tpu.memory_space<vmem>>, vector<8x128xf32>
    tpu.vector_store %arg7[%c0_81, %c0_82], %402 {strides = array<i32>} : memref<8x128xf32, #tpu.memory_space<vmem>>, vector<8x128xf32>,
    return
  }
}

</mosaic_0001>

<llo_original>
// kernel: tpu_custom_call.1
$region0: #{tpu_custom_call.1}
  #allocation0 [shape = 'u32[]', space=smem, size = 0x4, offset = 0x4, fixed_abs, tag = 'smem constant byte address 0x4 - core index']
  #allocation1 [shape = 'u32[144,128]{1,0:T(1,128)}', space=vmem, size = 0x12000, scoped, tag = 'internal scratch']
  #allocation2 [shape = 'f32[80,768]{1,0:T(8,128)}', space=vmem, size = 0x3c000, scoped, tag = 'scratch operand']
  %s0 = inlined_call_operand.vmem [shape: s32[80,1], index: 0, kind: input, shape index: {}]
  %s1 = inlined_call_operand.vmem [shape: s32[8,1], index: 1, kind: input, shape index: {}]
  %s2 = inlined_call_operand.hbm [shape: f32[200,768], index: 2, kind: input, shape index: {}]
  %s3 = inlined_call_operand.vmem [shape: f32[1,256], index: 3, kind: input, shape index: {}]
  %s4 = inlined_call_operand.hbm [shape: f32[256,768], index: 4, kind: input, shape index: {}]
  %s5 = inlined_call_operand.hbm [shape: f32[256,128], index: 5, kind: input, shape index: {}]
  %s6 = inlined_call_operand.vmem [shape: f32[1,128], index: 6, kind: input, shape index: {}]
  %s7 = inlined_call_operand.hbm [shape: f32[8,128], index: 7, kind: output, shape index: {}]
  %s8 = sld [smem:[#allocation0]]
  $region50: #{tpu_custom_call.1} parent=0
    _
  %s10 = ssub.s32 1, %s8
  %s11 = scalar_select 0, %s10, %s8
  $region1: #{tpu_custom_call.1} parent=0
    #allocation3 [shape = 'u8[614400]{0}', space=vmem, size = 0x96000, scoped, tag = 'input window, operand 2, single buffered']
    #allocation4 [shape = 's32[1]{0}', space=sflag, size = 0x4, scoped, tag = 'scoped memory for tpu_custom_call.1']
    #allocation5 [shape = 's32[1]{0}', space=sflag, size = 0x4, scoped, tag = 'scoped memory for tpu_custom_call.1']
    #allocation6 [shape = 'u8[786432]{0}', space=vmem, size = 0xc0000, scoped, tag = 'input window, operand 4, single buffered']
    #allocation7 [shape = 's32[1]{0}', space=sflag, size = 0x4, scoped, tag = 'scoped memory for tpu_custom_call.1']
    #allocation8 [shape = 'u8[131072]{0}', space=vmem, size = 0x20000, scoped, tag = 'input window, operand 5, single buffered']
    #allocation9 [shape = 'u8[4096]{0}', space=vmem, size = 0x1000, scoped, tag = 'output window, operand 0, single buffered']
    %12 = vsyncpa [#allocation4], 0
    %13 = vsyncpa [#allocation7], 0
    %14 = vsyncpa [#allocation5], 0
    // Predicated region
    $region2: #{tpu_custom_call.1} parent=1 // pred_check
      _
    $region3: #{tpu_custom_call.1} parent=1 // pred_check_branch
      %16 = sbr.rel (0) target = $region5
    $region4: #{tpu_custom_call.1} parent=1 // pred_region
      _
    $region5: #{tpu_custom_call.1} parent=1 // pred_fallthru
      _
    // Predicated region
    $region6: #{tpu_custom_call.1} parent=1 // pred_check
      _
    $region7: #{tpu_custom_call.1} parent=1 // pred_check_branch
      %18 = sbr.rel (0) target = $region9
    $region8: #{tpu_custom_call.1} parent=1 // pred_region
      _
    $region9: #{tpu_custom_call.1} parent=1 // pred_fallthru
      _
    // Predicated region
    $region10: #{tpu_custom_call.1} parent=1 // pred_check
      _
    $region11: #{tpu_custom_call.1} parent=1 // pred_check_branch
      %20 = sbr.rel (0) target = $region13
    $region12: #{tpu_custom_call.1} parent=1 // pred_region
      %s22 = ssub.s32 19200, 19200
      %23 = vsyncadd [#allocation4], %s22
      %s24 = sshll.u32 [#allocation3], 4
      %s25 = int_to_ptr.vmem [resolvable:$true] %s24
      %30 = dma.hbm_to_vmem [thread:$0]  %s2, 19200, %s25, [#allocation4], 768, 768, 48
    $region13: #{tpu_custom_call.1} parent=1 // pred_fallthru
      _
    // Predicated region
    $region14: #{tpu_custom_call.1} parent=1 // pred_check
      _
    $region15: #{tpu_custom_call.1} parent=1 // pred_check_branch
      %32 = sbr.rel (0) target = $region17
    $region16: #{tpu_custom_call.1} parent=1 // pred_region
      _
    $region17: #{tpu_custom_call.1} parent=1 // pred_fallthru
      _
    // Predicated region
    $region18: #{tpu_custom_call.1} parent=1 // pred_check
      _
    $region19: #{tpu_custom_call.1} parent=1 // pred_check_branch
      %34 = sbr.rel (0) target = $region21
    $region20: #{tpu_custom_call.1} parent=1 // pred_region
      %s36 = ssub.s32 24576, 24576
      %37 = vsyncadd [#allocation7], %s36
      %s38 = sshll.u32 [#allocation6], 4
      %s39 = int_to_ptr.vmem [resolvable:$true] %s38
      %44 = dma.hbm_to_vmem [thread:$0]  %s4, 24576, %s39, [#allocation7], 768, 768, 48
    $region21: #{tpu_custom_call.1} parent=1 // pred_fallthru
      _
    // Predicated region
    $region22: #{tpu_custom_call.1} parent=1 // pred_check
      _
    $region23: #{tpu_custom_call.1} parent=1 // pred_check_branch
      %46 = sbr.rel (0) target = $region25
    $region24: #{tpu_custom_call.1} parent=1 // pred_region
      %s48 = ssub.s32 4096, 4096
      %49 = vsyncadd [#allocation7], %s48
      %s50 = sshll.u32 [#allocation8], 4
      %s51 = int_to_ptr.vmem [resolvable:$true] %s50
      %56 = dma.hbm_to_vmem [thread:$0]  %s5, 4096, %s51, [#allocation7], 128, 128, 8
    $region25: #{tpu_custom_call.1} parent=1 // pred_fallthru
      _
    // Predicated region
    $region26: #{tpu_custom_call.1} parent=1 // pred_check
      _
    $region27: #{tpu_custom_call.1} parent=1 // pred_check_branch
      %58 = sbr.rel (0) target = $region29
    $region28: #{tpu_custom_call.1} parent=1 // pred_region
      _
    $region29: #{tpu_custom_call.1} parent=1 // pred_fallthru
      _
    // Predicated region
    $region30: #{tpu_custom_call.1} parent=1 // pred_check
      _
    $region31: #{tpu_custom_call.1} parent=1 // pred_check_branch
      %60 = sbr.rel (0) target = $region33
    $region32: #{tpu_custom_call.1} parent=1 // pred_region
      %61 = dma.done [#allocation4], 19200
    $region33: #{tpu_custom_call.1} parent=1 // pred_fallthru
      _
    // Predicated region
    $region34: #{tpu_custom_call.1} parent=1 // pred_check
      _
    $region35: #{tpu_custom_call.1} parent=1 // pred_check_branch
      %63 = sbr.rel (0) target = $region37
    $region36: #{tpu_custom_call.1} parent=1 // pred_region
      %64 = dma.done [#allocation7], 24576
    $region37: #{tpu_custom_call.1} parent=1 // pred_fallthru
      _
    // Predicated region
    $region38: #{tpu_custom_call.1} parent=1 // pred_check
      _
    $region39: #{tpu_custom_call.1} parent=1 // pred_check_branch
      %66 = sbr.rel (0) target = $region41
    $region40: #{tpu_custom_call.1} parent=1 // pred_region
      %67 = dma.done [#allocation7], 4096
    $region41: #{tpu_custom_call.1} parent=1 // pred_fallthru
      _
    %v68 = vld [vmem:[%s0] sm:$0xff]
    %v69 = vld [vmem:[%s0 + $0x8] sm:$0xff]
    %v70 = vld [vmem:[%s0 + $0x10] sm:$0xff]
    %v71 = vld [vmem:[%s0 + $0x18] sm:$0xff]
    %v72 = vld [vmem:[%s0 + $0x20] sm:$0xff]
    %v73 = vld [vmem:[%s0 + $0x28] sm:$0xff]
    %v74 = vld [vmem:[%s0 + $0x30] sm:$0xff]
    %v75 = vld [vmem:[%s0 + $0x38] sm:$0xff]
    %v76 = vld [vmem:[%s0 + $0x40] sm:$0xff]
    %v77 = vld [vmem:[%s0 + $0x48] sm:$0xff]
    %v78 = vlaneseq
    %v79 = vand.u32 %v78, 127
    %v80 = vadd.s32 %v79, 128
    %81 = vset.pattern.permute.xlu0 0
    %82 = vperm.xlu0 %81, %v68
    %v83 = vpop.permute.xlu0 %82
    %84 = vset.pattern.permute.xlu0 0
    %85 = vperm.xlu0 %84, %v69
    %v86 = vpop.permute.xlu0 %85
    %87 = vset.pattern.permute.xlu0 0
    %88 = vperm.xlu0 %87, %v70
    %v89 = vpop.permute.xlu0 %88
    %90 = vset.pattern.permute.xlu0 0
    %91 = vperm.xlu0 %90, %v71
    %v92 = vpop.permute.xlu0 %91
    %93 = vset.pattern.permute.xlu0 0
    %94 = vperm.xlu0 %93, %v72
    %v95 = vpop.permute.xlu0 %94
    %96 = vset.pattern.permute.xlu0 0
    %97 = vperm.xlu0 %96, %v73
    %v98 = vpop.permute.xlu0 %97
    %99 = vset.pattern.permute.xlu0 0
    %100 = vperm.xlu0 %99, %v74
    %v101 = vpop.permute.xlu0 %100
    %102 = vset.pattern.permute.xlu0 0
    %103 = vperm.xlu0 %102, %v75
    %v104 = vpop.permute.xlu0 %103
    %105 = vset.pattern.permute.xlu0 0
    %106 = vperm.xlu0 %105, %v76
    %v107 = vpop.permute.xlu0 %106
    %108 = vset.pattern.permute.xlu0 0
    %109 = vperm.xlu0 %108, %v77
    %v110 = vpop.permute.xlu0 %109
    %vm111 = vcmp.eq.s32.totalorder %v79, %v83
    %vm112 = vcmp.eq.s32.totalorder %v80, %v83
    %vm113 = vcmp.eq.s32.totalorder %v79, %v86
    %vm114 = vcmp.eq.s32.totalorder %v80, %v86
    %vm115 = vcmp.eq.s32.totalorder %v79, %v89
    %vm116 = vcmp.eq.s32.totalorder %v80, %v89
    %vm117 = vcmp.eq.s32.totalorder %v79, %v92
    %vm118 = vcmp.eq.s32.totalorder %v80, %v92
    %vm119 = vcmp.eq.s32.totalorder %v79, %v95
    %vm120 = vcmp.eq.s32.totalorder %v80, %v95
    %vm121 = vcmp.eq.s32.totalorder %v79, %v98
    %vm122 = vcmp.eq.s32.totalorder %v80, %v98
    %vm123 = vcmp.eq.s32.totalorder %v79, %v101
    %vm124 = vcmp.eq.s32.totalorder %v80, %v101
    %vm125 = vcmp.eq.s32.totalorder %v79, %v104
    %vm126 = vcmp.eq.s32.totalorder %v80, %v104
    %vm127 = vcmp.eq.s32.totalorder %v79, %v107
    %vm128 = vcmp.eq.s32.totalorder %v80, %v107
    %vm129 = vcmp.eq.s32.totalorder %v79, %v110
    %vm130 = vcmp.eq.s32.totalorder %v80, %v110
    %v131 = vsel %vm111, 1, 0
    %v132 = vsel %vm112, 1, 0
    %v133 = vsel %vm113, 1, 0
    %v134 = vsel %vm114, 1, 0
    %v135 = vsel %vm115, 1, 0
    %v136 = vsel %vm116, 1, 0
    %v137 = vsel %vm117, 1, 0
    %v138 = vsel %vm118, 1, 0
    %v139 = vsel %vm119, 1, 0
    %v140 = vsel %vm120, 1, 0
    %v141 = vsel %vm121, 1, 0
    %v142 = vsel %vm122, 1, 0
    %v143 = vsel %vm123, 1, 0
    %v144 = vsel %vm124, 1, 0
    %v145 = vsel %vm125, 1, 0
    %v146 = vsel %vm126, 1, 0
    %v147 = vsel %vm127, 1, 0
    %v148 = vsel %vm128, 1, 0
    %v149 = vsel %vm129, 1, 0
    %v150 = vsel %vm130, 1, 0
    %v151 = vcvt.s32.f32 %v131
    %v152 = vcvt.s32.f32 %v132
    %v153 = vcvt.s32.f32 %v133
    %v154 = vcvt.s32.f32 %v134
    %v155 = vcvt.s32.f32 %v135
    %v156 = vcvt.s32.f32 %v136
    %v157 = vcvt.s32.f32 %v137
    %v158 = vcvt.s32.f32 %v138
    %v159 = vcvt.s32.f32 %v139
    %v160 = vcvt.s32.f32 %v140
    %v161 = vcvt.s32.f32 %v141
    %v162 = vcvt.s32.f32 %v142
    %v163 = vcvt.s32.f32 %v143
    %v164 = vcvt.s32.f32 %v144
    %v165 = vcvt.s32.f32 %v145
    %v166 = vcvt.s32.f32 %v146
    %v167 = vcvt.s32.f32 %v147
    %v168 = vcvt.s32.f32 %v148
    %v169 = vcvt.s32.f32 %v149
    %v170 = vcvt.s32.f32 %v150
    %v171 = vld [vmem:[#allocation3] sm:$0xff]
    %v172 = vld [vmem:[#allocation3 + $0x8] sm:$0xff]
    %v173 = vld [vmem:[#allocation3 + $0x10] sm:$0xff]
    %v174 = vld [vmem:[#allocation3 + $0x18] sm:$0xff]
    %v175 = vld [vmem:[#allocation3 + $0x20] sm:$0xff]
    %v176 = vld [vmem:[#allocation3 + $0x28] sm:$0xff]
    %v177 = vld [vmem:[#allocation3 + $0x30] sm:$0xff]
    %v178 = vld [vmem:[#allocation3 + $0x38] sm:$0xff]
    %v179 = vld [vmem:[#allocation3 + $0x40] sm:$0xff]
    %v180 = vld [vmem:[#allocation3 + $0x48] sm:$0xff]
    %v181 = vld [vmem:[#allocation3 + $0x50] sm:$0xff]
    %v182 = vld [vmem:[#allocation3 + $0x58] sm:$0xff]
    %v183 = vld [vmem:[#allocation3 + $0x60] sm:$0xff]
    %v184 = vld [vmem:[#allocation3 + $0x68] sm:$0xff]
    %v185 = vld [vmem:[#allocation3 + $0x70] sm:$0xff]
    %v186 = vld [vmem:[#allocation3 + $0x78] sm:$0xff]
    %v187 = vld [vmem:[#allocation3 + $0x80] sm:$0xff]
    %v188 = vld [vmem:[#allocation3 + $0x88] sm:$0xff]
    %v189 = vld [vmem:[#allocation3 + $0x90] sm:$0xff]
    %v190 = vld [vmem:[#allocation3 + $0x98] sm:$0xff]
    %v191 = vld [vmem:[#allocation3 + $0xa0] sm:$0xff]
    %v192 = vld [vmem:[#allocation3 + $0xa8] sm:$0xff]
    %v193 = vld [vmem:[#allocation3 + $0xb0] sm:$0xff]
    %v194 = vld [vmem:[#allocation3 + $0xb8] sm:$0xff]
    %v195 = vld [vmem:[#allocation3 + $0xc0] sm:$0xff]
    %v196 = vld [vmem:[#allocation3 + $0xc8] sm:$0xff]
    %v197 = vld [vmem:[#allocation3 + $0xd0] sm:$0xff]
    %v198 = vld [vmem:[#allocation3 + $0xd8] sm:$0xff]
    %v199 = vld [vmem:[#allocation3 + $0xe0] sm:$0xff]
    %v200 = vld [vmem:[#allocation3 + $0xe8] sm:$0xff]
    %v201 = vld [vmem:[#allocation3 + $0xf0] sm:$0xff]
    %v202 = vld [vmem:[#allocation3 + $0xf8] sm:$0xff]
    %v203 = vld [vmem:[#allocation3 + $0x100] sm:$0xff]
    %v204 = vld [vmem:[#allocation3 + $0x108] sm:$0xff]
    %v205 = vld [vmem:[#allocation3 + $0x110] sm:$0xff]
    %v206 = vld [vmem:[#allocation3 + $0x118] sm:$0xff]
    %v207 = vld [vmem:[#allocation3 + $0x120] sm:$0xff]
    %v208 = vld [vmem:[#allocation3 + $0x128] sm:$0xff]
    %v209 = vld [vmem:[#allocation3 + $0x130] sm:$0xff]
    %v210 = vld [vmem:[#allocation3 + $0x138] sm:$0xff]
    %v211 = vld [vmem:[#allocation3 + $0x140] sm:$0xff]
    %v212 = vld [vmem:[#allocation3 + $0x148] sm:$0xff]
    %v213 = vld [vmem:[#allocation3 + $0x150] sm:$0xff]
    %v214 = vld [vmem:[#allocation3 + $0x158] sm:$0xff]
    %v215 = vld [vmem:[#allocation3 + $0x160] sm:$0xff]
    %v216 = vld [vmem:[#allocation3 + $0x168] sm:$0xff]
    %v217 = vld [vmem:[#allocation3 + $0x170] sm:$0xff]
    %v218 = vld [vmem:[#allocation3 + $0x178] sm:$0xff]
    %v219 = vld [vmem:[#allocation3 + $0x180] sm:$0xff]
    %v220 = vld [vmem:[#allocation3 + $0x188] sm:$0xff]
    %v221 = vld [vmem:[#allocation3 + $0x190] sm:$0xff]
    %v222 = vld [vmem:[#allocation3 + $0x198] sm:$0xff]
    %v223 = vld [vmem:[#allocation3 + $0x1a0] sm:$0xff]
    %v224 = vld [vmem:[#allocation3 + $0x1a8] sm:$0xff]
    %v225 = vld [vmem:[#allocation3 + $0x1b0] sm:$0xff]
    %v226 = vld [vmem:[#allocation3 + $0x1b8] sm:$0xff]
    %v227 = vld [vmem:[#allocation3 + $0x1c0] sm:$0xff]
    %v228 = vld [vmem:[#allocation3 + $0x1c8] sm:$0xff]
    %v229 = vld [vmem:[#allocation3 + $0x1d0] sm:$0xff]
    %v230 = vld [vmem:[#allocation3 + $0x1d8] sm:$0xff]
    %v231 = vld [vmem:[#allocation3 + $0x1e0] sm:$0xff]
    %v232 = vld [vmem:[#allocation3 + $0x1e8] sm:$0xff]
    %v233 = vld [vmem:[#allocation3 + $0x1f0] sm:$0xff]
    %v234 = vld [vmem:[#allocation3 + $0x1f8] sm:$0xff]
    %v235 = vld [vmem:[#allocation3 + $0x200] sm:$0xff]
    %v236 = vld [vmem:[#allocation3 + $0x208] sm:$0xff]
    %v237 = vld [vmem:[#allocation3 + $0x210] sm:$0xff]
    %v238 = vld [vmem:[#allocation3 + $0x218] sm:$0xff]
    %v239 = vld [vmem:[#allocation3 + $0x220] sm:$0xff]
    %v240 = vld [vmem:[#allocation3 + $0x228] sm:$0xff]
    %v241 = vld [vmem:[#allocation3 + $0x230] sm:$0xff]
    %v242 = vld [vmem:[#allocation3 + $0x238] sm:$0xff]
    %v243 = vld [vmem:[#allocation3 + $0x240] sm:$0xff]
    %v244 = vld [vmem:[#allocation3 + $0x248] sm:$0xff]
    %v245 = vld [vmem:[#allocation3 + $0x250] sm:$0xff]
    %v246 = vld [vmem:[#allocation3 + $0x258] sm:$0xff]
    %v247 = vld [vmem:[#allocation3 + $0x260] sm:$0xff]
    %v248 = vld [vmem:[#allocation3 + $0x268] sm:$0xff]
    %v249 = vld [vmem:[#allocation3 + $0x270] sm:$0xff]
    %v250 = vld [vmem:[#allocation3 + $0x278] sm:$0xff]
    %v251 = vld [vmem:[#allocation3 + $0x280] sm:$0xff]
    %v252 = vld [vmem:[#allocation3 + $0x288] sm:$0xff]
    %v253 = vld [vmem:[#allocation3 + $0x290] sm:$0xff]
    %v254 = vld [vmem:[#allocation3 + $0x298] sm:$0xff]
    %v255 = vld [vmem:[#allocation3 + $0x2a0] sm:$0xff]
    %v256 = vld [vmem:[#allocation3 + $0x2a8] sm:$0xff]
    %v257 = vld [vmem:[#allocation3 + $0x2b0] sm:$0xff]
    %v258 = vld [vmem:[#allocation3 + $0x2b8] sm:$0xff]
    %v259 = vld [vmem:[#allocation3 + $0x2c0] sm:$0xff]
    %v260 = vld [vmem:[#allocation3 + $0x2c8] sm:$0xff]
    %v261 = vld [vmem:[#allocation3 + $0x2d0] sm:$0xff]
    %v262 = vld [vmem:[#allocation3 + $0x2d8] sm:$0xff]
    %v263 = vld [vmem:[#allocation3 + $0x2e0] sm:$0xff]
    %v264 = vld [vmem:[#allocation3 + $0x2e8] sm:$0xff]
    %v265 = vld [vmem:[#allocation3 + $0x2f0] sm:$0xff]
    %v266 = vld [vmem:[#allocation3 + $0x2f8] sm:$0xff]
    %v267 = vld [vmem:[#allocation3 + $0x300] sm:$0xff]
    %v268 = vld [vmem:[#allocation3 + $0x308] sm:$0xff]
    %v269 = vld [vmem:[#allocation3 + $0x310] sm:$0xff]
    %v270 = vld [vmem:[#allocation3 + $0x318] sm:$0xff]
    %v271 = vld [vmem:[#allocation3 + $0x320] sm:$0xff]
    %v272 = vld [vmem:[#allocation3 + $0x328] sm:$0xff]
    %v273 = vld [vmem:[#allocation3 + $0x330] sm:$0xff]
    %v274 = vld [vmem:[#allocation3 + $0x338] sm:$0xff]
    %v275 = vld [vmem:[#allocation3 + $0x340] sm:$0xff]
    %v276 = vld [vmem:[#allocation3 + $0x348] sm:$0xff]
    %v277 = vld [vmem:[#allocation3 + $0x350] sm:$0xff]
    %v278 = vld [vmem:[#allocation3 + $0x358] sm:$0xff]
    %v279 = vld [vmem:[#allocation3 + $0x360] sm:$0xff]
    %v280 = vld [vmem:[#allocation3 + $0x368] sm:$0xff]
    %v281 = vld [vmem:[#allocation3 + $0x370] sm:$0xff]
    %v282 = vld [vmem:[#allocation3 + $0x378] sm:$0xff]
    %v283 = vld [vmem:[#allocation3 + $0x380] sm:$0xff]
    %v284 = vld [vmem:[#allocation3 + $0x388] sm:$0xff]
    %v285 = vld [vmem:[#allocation3 + $0x390] sm:$0xff]
    %v286 = vld [vmem:[#allocation3 + $0x398] sm:$0xff]
    %v287 = vld [vmem:[#allocation3 + $0x3a0] sm:$0xff]
    %v288 = vld [vmem:[#allocation3 + $0x3a8] sm:$0xff]
    %v289 = vld [vmem:[#allocation3 + $0x3b0] sm:$0xff]
    %v290 = vld [vmem:[#allocation3 + $0x3b8] sm:$0xff]
    %v291 = vld [vmem:[#allocation3 + $0x3c0] sm:$0xff]
    %v292 = vld [vmem:[#allocation3 + $0x3c8] sm:$0xff]
    %v293 = vld [vmem:[#allocation3 + $0x3d0] sm:$0xff]
    %v294 = vld [vmem:[#allocation3 + $0x3d8] sm:$0xff]
    %v295 = vld [vmem:[#allocation3 + $0x3e0] sm:$0xff]
    %v296 = vld [vmem:[#allocation3 + $0x3e8] sm:$0xff]
    %v297 = vld [vmem:[#allocation3 + $0x3f0] sm:$0xff]
    %v298 = vld [vmem:[#allocation3 + $0x3f8] sm:$0xff]
    %v299 = vld [vmem:[#allocation3 + $0x400] sm:$0xff]
    %v300 = vld [vmem:[#allocation3 + $0x408] sm:$0xff]
    %v301 = vld [vmem:[#allocation3 + $0x410] sm:$0xff]
    %v302 = vld [vmem:[#allocation3 + $0x418] sm:$0xff]
    %v303 = vld [vmem:[#allocation3 + $0x420] sm:$0xff]
    %v304 = vld [vmem:[#allocation3 + $0x428] sm:$0xff]
    %v305 = vld [vmem:[#allocation3 + $0x430] sm:$0xff]
    %v306 = vld [vmem:[#allocation3 + $0x438] sm:$0xff]
    %v307 = vld [vmem:[#allocation3 + $0x440] sm:$0xff]
    %v308 = vld [vmem:[#allocation3 + $0x448] sm:$0xff]
    %v309 = vld [vmem:[#allocation3 + $0x450] sm:$0xff]
    %v310 = vld [vmem:[#allocation3 + $0x458] sm:$0xff]
    %v311 = vld [vmem:[#allocation3 + $0x460] sm:$0xff]
    %v312 = vld [vmem:[#allocation3 + $0x468] sm:$0xff]
    %v313 = vld [vmem:[#allocation3 + $0x470] sm:$0xff]
    %v314 = vld [vmem:[#allocation3 + $0x478] sm:$0xff]
    %v315 = vld [vmem:[#allocation3 + $0x480] sm:$0xff]
    %v316 = vld [vmem:[#allocation3 + $0x488] sm:$0xff]
    %v317 = vld [vmem:[#allocation3 + $0x490] sm:$0xff]
    %v318 = vld [vmem:[#allocation3 + $0x498] sm:$0xff]
    %v319 = vld [vmem:[#allocation3 + $0x4a0] sm:$0xff]
    %v320 = vld [vmem:[#allocation3 + $0x4a8] sm:$0xff]
    %vm321 = vcmask 588800
    %v323 = vsel %vm321, %v152, 0
    %v326 = vsel %vm321, %v154, 0
    %v329 = vsel %vm321, %v156, 0
    %v332 = vsel %vm321, %v158, 0
    %v335 = vsel %vm321, %v160, 0
    %v338 = vsel %vm321, %v162, 0
    %v341 = vsel %vm321, %v164, 0
    %v344 = vsel %vm321, %v166, 0
    %v347 = vsel %vm321, %v168, 0
    %v350 = vsel %vm321, %v170, 0
    %352 = vmatprep.subr.mxu0 %v262
    %353 = vmatpush1.msra.mxu0 %v261
    %354 = vmatprep.subr.mxu0 %v256
    %355 = vmatpush1.msra.mxu0 %v255
    %356 = vmatprep.subr.mxu0 %v250
    %357 = vmatpush1.msra.mxu0 %v249
    %358 = vmatprep.subr.mxu0 %v244
    %359 = vmatpush1.msra.mxu0 %v243
    %360 = vmatprep.subr.mxu0 %v238
    %361 = vmatpush1.msra.mxu0 %v237
    %362 = vmatprep.subr.mxu0 %v232
    %363 = vmatpush1.msra.mxu0 %v231
    %364 = vmatprep.subr.mxu0 %v226
    %365 = vmatpush1.msra.mxu0 %v225
    %366 = vmatprep.subr.mxu0 %v220
    %367 = vmatpush1.msra.mxu0 %v219
    %368 = vmatprep.subr.mxu0 %v214
    %369 = vmatpush1.msra.mxu0 %v213
    %370 = vmatprep.subr.mxu0 %v208
    %371 = vmatpush1.msra.mxu0 %v207
    %372 = vmatprep.subr.mxu0 %v202
    %373 = vmatpush1.msra.mxu0 %v201
    %374 = vmatprep.subr.mxu0 %v196
    %375 = vmatpush1.msra.mxu0 %v195
    %376 = vmatprep.subr.mxu0 %v190
    %377 = vmatpush1.msra.mxu0 %v189
    %378 = vmatprep.subr.mxu0 %v184
    %379 = vmatpush1.msra.mxu0 %v183
    %380 = vmatprep.subr.mxu0 %v178
    %381 = vmatpush1.msra.mxu0 %v177
    %382 = vmatprep.subr.mxu0 %v172
    %383 = vmatpush1.msra.mxu0 %v171
    %384 = vmatprep.subr.mxu0 0.0
    %385 = vmatpush2.msra.mxu0 0.0
    %386 = vmatprep.subr.mxu0 0.0
    %387 = vmatpush2.msra.mxu0 0.0
    %388 = vmatprep.subr.mxu0 0.0
    %389 = vmatpush2.msra.mxu0 0.0
    %390 = vmatprep.subr.mxu0 0.0
    %391 = vmatpush2.msra.mxu0 0.0
    %392 = vmatprep.subr.mxu0 0.0
    %393 = vmatpush2.msra.mxu0 0.0
    %394 = vmatprep.subr.mxu0 0.0
    %395 = vmatpush2.msra.mxu0 0.0
    %396 = vmatprep.subr.mxu0 0.0
    %397 = vmatpush2.msra.mxu0 0.0
    %398 = vmatprep.subr.mxu0 %v316
    %399 = vmatpush2.msra.mxu0 %v315
    %400 = vmatprep.subr.mxu0 %v310
    %401 = vmatpush2.msra.mxu0 %v309
    %402 = vmatprep.subr.mxu0 %v304
    %403 = vmatpush2.msra.mxu0 %v303
    %404 = vmatprep.subr.mxu0 %v298
    %405 = vmatpush2.msra.mxu0 %v297
    %406 = vmatprep.subr.mxu0 %v292
    %407 = vmatpush2.msra.mxu0 %v291
    %408 = vmatprep.subr.mxu0 %v286
    %409 = vmatpush2.msra.mxu0 %v285
    %410 = vmatprep.subr.mxu0 %v280
    %411 = vmatpush2.msra.mxu0 %v279
    %412 = vmatprep.subr.mxu0 %v274
    %413 = vmatpush2.msra.mxu0 %v273
    %414 = vmatprep.subr.mxu0 %v268
    %415 = vmatpush2.msra.mxu0 %v267
    %416 = vmatprep.mubr.f32.mxu0 %v323
    %417 = vmatmul.mubr.f32.gmra.mxu0 %v151
    %v418 = vpop.f32.mrf.mxu0
    %v419 = vadd.f32 0.0, %v418
    %v420 = vpop.f32.mrf.mxu0
    %v421 = vadd.f32 0.0, %v420
    %422 = vmatprep.mubr.f32.mxu0 %v326
    %423 = vmatmul.mubr.f32.gmra.mxu0 %v153
    %v424 = vpop.f32.mrf.mxu0
    %v425 = vadd.f32 0.0, %v424
    %v426 = vpop.f32.mrf.mxu0
    %v427 = vadd.f32 0.0, %v426
    %428 = vmatprep.mubr.f32.mxu0 %v329
    %429 = vmatmul.mubr.f32.gmra.mxu0 %v155
    %v430 = vpop.f32.mrf.mxu0
    %v431 = vadd.f32 0.0, %v430
    %v432 = vpop.f32.mrf.mxu0
    %v433 = vadd.f32 0.0, %v432
    %434 = vmatprep.mubr.f32.mxu0 %v332
    %435 = vmatmul.mubr.f32.gmra.mxu0 %v157
    %v436 = vpop.f32.mrf.mxu0
    %v437 = vadd.f32 0.0, %v436
    %v438 = vpop.f32.mrf.mxu0
    %v439 = vadd.f32 0.0, %v438
    %440 = vmatprep.mubr.f32.mxu0 %v335
    %441 = vmatmul.mubr.f32.gmra.mxu0 %v159
    %v442 = vpop.f32.mrf.mxu0
    %v443 = vadd.f32 0.0, %v442
    %v444 = vpop.f32.mrf.mxu0
    %v445 = vadd.f32 0.0, %v444
    %446 = vmatprep.mubr.f32.mxu0 %v338
    %447 = vmatmul.mubr.f32.gmra.mxu0 %v161
    %v448 = vpop.f32.mrf.mxu0
    %v449 = vadd.f32 0.0, %v448
    %v450 = vpop.f32.mrf.mxu0
    %v451 = vadd.f32 0.0, %v450
    %452 = vmatprep.mubr.f32.mxu0 %v341
    %453 = vmatmul.mubr.f32.gmra.mxu0 %v163
    %v454 = vpop.f32.mrf.mxu0
    %v455 = vadd.f32 0.0, %v454
    %v456 = vpop.f32.mrf.mxu0
    %v457 = vadd.f32 0.0, %v456
    %458 = vmatprep.mubr.f32.mxu0 %v344
    %459 = vmatmul.mubr.f32.gmra.mxu0 %v165
    %v460 = vpop.f32.mrf.mxu0
    %v461 = vadd.f32 0.0, %v460
    %v462 = vpop.f32.mrf.mxu0
    %v463 = vadd.f32 0.0, %v462
    %464 = vmatprep.mubr.f32.mxu0 %v347
    %465 = vmatmul.mubr.f32.gmra.mxu0 %v167
    %v466 = vpop.f32.mrf.mxu0
    %v467 = vadd.f32 0.0, %v466
    %v468 = vpop.f32.mrf.mxu0
    %v469 = vadd.f32 0.0, %v468
    %470 = vmatprep.mubr.f32.mxu0 %v350
    %471 = vmatmul.mubr.f32.gmra.mxu0 %v169
    %v472 = vpop.f32.mrf.mxu0
    %v473 = vadd.f32 0.0, %v472
    %v474 = vpop.f32.mrf.mxu0
    %v475 = vadd.f32 0.0, %v474
    %476 = vdwg.mxu0
    %477 = vmatprep.subr.mxu0 %v264
    %478 = vmatpush1.msra.mxu0 %v263
    %479 = vmatprep.subr.mxu0 %v258
    %480 = vmatpush1.msra.mxu0 %v257
    %481 = vmatprep.subr.mxu0 %v252
    %482 = vmatpush1.msra.mxu0 %v251
    %483 = vmatprep.subr.mxu0 %v246
    %484 = vmatpush1.msra.mxu0 %v245
    %485 = vmatprep.subr.mxu0 %v240
    %486 = vmatpush1.msra.mxu0 %v239
    %487 = vmatprep.subr.mxu0 %v234
    %488 = vmatpush1.msra.mxu0 %v233
    %489 = vmatprep.subr.mxu0 %v228
    %490 = vmatpush1.msra.mxu0 %v227
    %491 = vmatprep.subr.mxu0 %v222
    %492 = vmatpush1.msra.mxu0 %v221
    %493 = vmatprep.subr.mxu0 %v216
    %494 = vmatpush1.msra.mxu0 %v215
    %495 = vmatprep.subr.mxu0 %v210
    %496 = vmatpush1.msra.mxu0 %v209
    %497 = vmatprep.subr.mxu0 %v204
    %498 = vmatpush1.msra.mxu0 %v203
    %499 = vmatprep.subr.mxu0 %v198
    %500 = vmatpush1.msra.mxu0 %v197
    %501 = vmatprep.subr.mxu0 %v192
    %502 = vmatpush1.msra.mxu0 %v191
    %503 = vmatprep.subr.mxu0 %v186
    %504 = vmatpush1.msra.mxu0 %v185
    %505 = vmatprep.subr.mxu0 %v180
    %506 = vmatpush1.msra.mxu0 %v179
    %507 = vmatprep.subr.mxu0 %v174
    %508 = vmatpush1.msra.mxu0 %v173
    %509 = vmatprep.subr.mxu0 0.0
    %510 = vmatpush2.msra.mxu0 0.0
    %511 = vmatprep.subr.mxu0 0.0
    %512 = vmatpush2.msra.mxu0 0.0
    %513 = vmatprep.subr.mxu0 0.0
    %514 = vmatpush2.msra.mxu0 0.0
    %515 = vmatprep.subr.mxu0 0.0
    %516 = vmatpush2.msra.mxu0 0.0
    %517 = vmatprep.subr.mxu0 0.0
    %518 = vmatpush2.msra.mxu0 0.0
    %519 = vmatprep.subr.mxu0 0.0
    %520 = vmatpush2.msra.mxu0 0.0
    %521 = vmatprep.subr.mxu0 0.0
    %522 = vmatpush2.msra.mxu0 0.0
    %523 = vmatprep.subr.mxu0 %v318
    %524 = vmatpush2.msra.mxu0 %v317
    %525 = vmatprep.subr.mxu0 %v312
    %526 = vmatpush2.msra.mxu0 %v311
    %527 = vmatprep.subr.mxu0 %v306
    %528 = vmatpush2.msra.mxu0 %v305
    %529 = vmatprep.subr.mxu0 %v300
    %530 = vmatpush2.msra.mxu0 %v299
    %531 = vmatprep.subr.mxu0 %v294
    %532 = vmatpush2.msra.mxu0 %v293
    %533 = vmatprep.subr.mxu0 %v288
    %534 = vmatpush2.msra.mxu0 %v287
    %535 = vmatprep.subr.mxu0 %v282
    %536 = vmatpush2.msra.mxu0 %v281
    %537 = vmatprep.subr.mxu0 %v276
    %538 = vmatpush2.msra.mxu0 %v275
    %539 = vmatprep.subr.mxu0 %v270
    %540 = vmatpush2.msra.mxu0 %v269
    %541 = vmatprep.mubr.f32.mxu0 %v323
    %542 = vmatmul.mubr.f32.gmra.mxu0 %v151
    %v543 = vpop.f32.mrf.mxu0
    %v544 = vadd.f32 0.0, %v543
    %v545 = vpop.f32.mrf.mxu0
    %v546 = vadd.f32 0.0, %v545
    %547 = vmatprep.mubr.f32.mxu0 %v326
    %548 = vmatmul.mubr.f32.gmra.mxu0 %v153
    %v549 = vpop.f32.mrf.mxu0
    %v550 = vadd.f32 0.0, %v549
    %v551 = vpop.f32.mrf.mxu0
    %v552 = vadd.f32 0.0, %v551
    %553 = vmatprep.mubr.f32.mxu0 %v329
    %554 = vmatmul.mubr.f32.gmra.mxu0 %v155
    %v555 = vpop.f32.mrf.mxu0
    %v556 = vadd.f32 0.0, %v555
    %v557 = vpop.f32.mrf.mxu0
    %v558 = vadd.f32 0.0, %v557
    %559 = vmatprep.mubr.f32.mxu0 %v332
    %560 = vmatmul.mubr.f32.gmra.mxu0 %v157
    %v561 = vpop.f32.mrf.mxu0
    %v562 = vadd.f32 0.0, %v561
    %v563 = vpop.f32.mrf.mxu0
    %v564 = vadd.f32 0.0, %v563
    %565 = vmatprep.mubr.f32.mxu0 %v335
    %566 = vmatmul.mubr.f32.gmra.mxu0 %v159
    %v567 = vpop.f32.mrf.mxu0
    %v568 = vadd.f32 0.0, %v567
    %v569 = vpop.f32.mrf.mxu0
    %v570 = vadd.f32 0.0, %v569
    %571 = vmatprep.mubr.f32.mxu0 %v338
    %572 = vmatmul.mubr.f32.gmra.mxu0 %v161
    %v573 = vpop.f32.mrf.mxu0
    %v574 = vadd.f32 0.0, %v573
    %v575 = vpop.f32.mrf.mxu0
    %v576 = vadd.f32 0.0, %v575
    %577 = vmatprep.mubr.f32.mxu0 %v341
    %578 = vmatmul.mubr.f32.gmra.mxu0 %v163
    %v579 = vpop.f32.mrf.mxu0
    %v580 = vadd.f32 0.0, %v579
    %v581 = vpop.f32.mrf.mxu0
    %v582 = vadd.f32 0.0, %v581
    %583 = vmatprep.mubr.f32.mxu0 %v344
    %584 = vmatmul.mubr.f32.gmra.mxu0 %v165
    %v585 = vpop.f32.mrf.mxu0
    %v586 = vadd.f32 0.0, %v585
    %v587 = vpop.f32.mrf.mxu0
    %v588 = vadd.f32 0.0, %v587
    %589 = vmatprep.mubr.f32.mxu0 %v347
    %590 = vmatmul.mubr.f32.gmra.mxu0 %v167
    %v591 = vpop.f32.mrf.mxu0
    %v592 = vadd.f32 0.0, %v591
    %v593 = vpop.f32.mrf.mxu0
    %v594 = vadd.f32 0.0, %v593
    %595 = vmatprep.mubr.f32.mxu0 %v350
    %596 = vmatmul.mubr.f32.gmra.mxu0 %v169
    %v597 = vpop.f32.mrf.mxu0
    %v598 = vadd.f32 0.0, %v597
    %v599 = vpop.f32.mrf.mxu0
    %v600 = vadd.f32 0.0, %v599
    %601 = vdwg.mxu0
    %602 = vmatprep.subr.mxu0 %v266
    %603 = vmatpush1.msra.mxu0 %v265
    %604 = vmatprep.subr.mxu0 %v260
    %605 = vmatpush1.msra.mxu0 %v259
    %606 = vmatprep.subr.mxu0 %v254
    %607 = vmatpush1.msra.mxu0 %v253
    %608 = vmatprep.subr.mxu0 %v248
    %609 = vmatpush1.msra.mxu0 %v247
    %610 = vmatprep.subr.mxu0 %v242
    %611 = vmatpush1.msra.mxu0 %v241
    %612 = vmatprep.subr.mxu0 %v236
    %613 = vmatpush1.msra.mxu0 %v235
    %614 = vmatprep.subr.mxu0 %v230
    %615 = vmatpush1.msra.mxu0 %v229
    %616 = vmatprep.subr.mxu0 %v224
    %617 = vmatpush1.msra.mxu0 %v223
    %618 = vmatprep.subr.mxu0 %v218
    %619 = vmatpush1.msra.mxu0 %v217
    %620 = vmatprep.subr.mxu0 %v212
    %621 = vmatpush1.msra.mxu0 %v211
    %622 = vmatprep.subr.mxu0 %v206
    %623 = vmatpush1.msra.mxu0 %v205
    %624 = vmatprep.subr.mxu0 %v200
    %625 = vmatpush1.msra.mxu0 %v199
    %626 = vmatprep.subr.mxu0 %v194
    %627 = vmatpush1.msra.mxu0 %v193
    %628 = vmatprep.subr.mxu0 %v188
    %629 = vmatpush1.msra.mxu0 %v187
    %630 = vmatprep.subr.mxu0 %v182
    %631 = vmatpush1.msra.mxu0 %v181
    %632 = vmatprep.subr.mxu0 %v176
    %633 = vmatpush1.msra.mxu0 %v175
    %634 = vmatprep.subr.mxu0 0.0
    %635 = vmatpush2.msra.mxu0 0.0
    %636 = vmatprep.subr.mxu0 0.0
    %637 = vmatpush2.msra.mxu0 0.0
    %638 = vmatprep.subr.mxu0 0.0
    %639 = vmatpush2.msra.mxu0 0.0
    %640 = vmatprep.subr.mxu0 0.0
    %641 = vmatpush2.msra.mxu0 0.0
    %642 = vmatprep.subr.mxu0 0.0
    %643 = vmatpush2.msra.mxu0 0.0
    %644 = vmatprep.subr.mxu0 0.0
    %645 = vmatpush2.msra.mxu0 0.0
    %646 = vmatprep.subr.mxu0 0.0
    %647 = vmatpush2.msra.mxu0 0.0
    %648 = vmatprep.subr.mxu0 %v320
    %649 = vmatpush2.msra.mxu0 %v319
    %650 = vmatprep.subr.mxu0 %v314
    %651 = vmatpush2.msra.mxu0 %v313
    %652 = vmatprep.subr.mxu0 %v308
    %653 = vmatpush2.msra.mxu0 %v307
    %654 = vmatprep.subr.mxu0 %v302
    %655 = vmatpush2.msra.mxu0 %v301
    %656 = vmatprep.subr.mxu0 %v296
    %657 = vmatpush2.msra.mxu0 %v295
    %658 = vmatprep.subr.mxu0 %v290
    %659 = vmatpush2.msra.mxu0 %v289
    %660 = vmatprep.subr.mxu0 %v284
    %661 = vmatpush2.msra.mxu0 %v283
    %662 = vmatprep.subr.mxu0 %v278
    %663 = vmatpush2.msra.mxu0 %v277
    %664 = vmatprep.subr.mxu0 %v272
    %665 = vmatpush2.msra.mxu0 %v271
    %666 = vmatprep.mubr.f32.mxu0 %v323
    %667 = vmatmul.mubr.f32.gmra.mxu0 %v151
    %v668 = vpop.f32.mrf.mxu0
    %v669 = vadd.f32 0.0, %v668
    %v670 = vpop.f32.mrf.mxu0
    %v671 = vadd.f32 0.0, %v670
    %672 = vmatprep.mubr.f32.mxu0 %v326
    %673 = vmatmul.mubr.f32.gmra.mxu0 %v153
    %v674 = vpop.f32.mrf.mxu0
    %v675 = vadd.f32 0.0, %v674
    %v676 = vpop.f32.mrf.mxu0
    %v677 = vadd.f32 0.0, %v676
    %678 = vmatprep.mubr.f32.mxu0 %v329
    %679 = vmatmul.mubr.f32.gmra.mxu0 %v155
    %v680 = vpop.f32.mrf.mxu0
    %v681 = vadd.f32 0.0, %v680
    %v682 = vpop.f32.mrf.mxu0
    %v683 = vadd.f32 0.0, %v682
    %684 = vmatprep.mubr.f32.mxu0 %v332
    %685 = vmatmul.mubr.f32.gmra.mxu0 %v157
    %v686 = vpop.f32.mrf.mxu0
    %v687 = vadd.f32 0.0, %v686
    %v688 = vpop.f32.mrf.mxu0
    %v689 = vadd.f32 0.0, %v688
    %690 = vmatprep.mubr.f32.mxu0 %v335
    %691 = vmatmul.mubr.f32.gmra.mxu0 %v159
    %v692 = vpop.f32.mrf.mxu0
    %v693 = vadd.f32 0.0, %v692
    %v694 = vpop.f32.mrf.mxu0
    %v695 = vadd.f32 0.0, %v694
    %696 = vmatprep.mubr.f32.mxu0 %v338
    %697 = vmatmul.mubr.f32.gmra.mxu0 %v161
    %v698 = vpop.f32.mrf.mxu0
    %v699 = vadd.f32 0.0, %v698
    %v700 = vpop.f32.mrf.mxu0
    %v701 = vadd.f32 0.0, %v700
    %702 = vmatprep.mubr.f32.mxu0 %v341
    %703 = vmatmul.mubr.f32.gmra.mxu0 %v163
    %v704 = vpop.f32.mrf.mxu0
    %v705 = vadd.f32 0.0, %v704
    %v706 = vpop.f32.mrf.mxu0
    %v707 = vadd.f32 0.0, %v706
    %708 = vmatprep.mubr.f32.mxu0 %v344
    %709 = vmatmul.mubr.f32.gmra.mxu0 %v165
    %v710 = vpop.f32.mrf.mxu0
    %v711 = vadd.f32 0.0, %v710
    %v712 = vpop.f32.mrf.mxu0
    %v713 = vadd.f32 0.0, %v712
    %714 = vmatprep.mubr.f32.mxu0 %v347
    %715 = vmatmul.mubr.f32.gmra.mxu0 %v167
    %v716 = vpop.f32.mrf.mxu0
    %v717 = vadd.f32 0.0, %v716
    %v718 = vpop.f32.mrf.mxu0
    %v719 = vadd.f32 0.0, %v718
    %720 = vmatprep.mubr.f32.mxu0 %v350
    %721 = vmatmul.mubr.f32.gmra.mxu0 %v169
    %v722 = vpop.f32.mrf.mxu0
    %v723 = vadd.f32 0.0, %v722
    %v724 = vpop.f32.mrf.mxu0
    %v725 = vadd.f32 0.0, %v724
    %726 = vdwg.mxu0
    %727 = vst [vmem:[#allocation2] sm:$0xff] %v419
    %728 = vst [vmem:[#allocation2 + $0x8] sm:$0xff] %v421
    %729 = vst [vmem:[#allocation2 + $0x10] sm:$0xff] %v544
    %730 = vst [vmem:[#allocation2 + $0x18] sm:$0xff] %v546
    %731 = vst [vmem:[#allocation2 + $0x20] sm:$0xff] %v669
    %732 = vst [vmem:[#allocation2 + $0x28] sm:$0xff] %v671
    %733 = vst [vmem:[#allocation2 + $0x30] sm:$0xff] %v425
    %734 = vst [vmem:[#allocation2 + $0x38] sm:$0xff] %v427
    %735 = vst [vmem:[#allocation2 + $0x40] sm:$0xff] %v550
    %736 = vst [vmem:[#allocation2 + $0x48] sm:$0xff] %v552
    %737 = vst [vmem:[#allocation2 + $0x50] sm:$0xff] %v675
    %738 = vst [vmem:[#allocation2 + $0x58] sm:$0xff] %v677
    %739 = vst [vmem:[#allocation2 + $0x60] sm:$0xff] %v431
    %740 = vst [vmem:[#allocation2 + $0x68] sm:$0xff] %v433
    %741 = vst [vmem:[#allocation2 + $0x70] sm:$0xff] %v556
    %742 = vst [vmem:[#allocation2 + $0x78] sm:$0xff] %v558
    %743 = vst [vmem:[#allocation2 + $0x80] sm:$0xff] %v681
    %744 = vst [vmem:[#allocation2 + $0x88] sm:$0xff] %v683
    %745 = vst [vmem:[#allocation2 + $0x90] sm:$0xff] %v437
    %746 = vst [vmem:[#allocation2 + $0x98] sm:$0xff] %v439
    %747 = vst [vmem:[#allocation2 + $0xa0] sm:$0xff] %v562
    %748 = vst [vmem:[#allocation2 + $0xa8] sm:$0xff] %v564
    %749 = vst [vmem:[#allocation2 + $0xb0] sm:$0xff] %v687
    %750 = vst [vmem:[#allocation2 + $0xb8] sm:$0xff] %v689
    %751 = vst [vmem:[#allocation2 + $0xc0] sm:$0xff] %v443
    %752 = vst [vmem:[#allocation2 + $0xc8] sm:$0xff] %v445
    %753 = vst [vmem:[#allocation2 + $0xd0] sm:$0xff] %v568
    %754 = vst [vmem:[#allocation2 + $0xd8] sm:$0xff] %v570
    %755 = vst [vmem:[#allocation2 + $0xe0] sm:$0xff] %v693
    %756 = vst [vmem:[#allocation2 + $0xe8] sm:$0xff] %v695
    %757 = vst [vmem:[#allocation2 + $0xf0] sm:$0xff] %v449
    %758 = vst [vmem:[#allocation2 + $0xf8] sm:$0xff] %v451
    %759 = vst [vmem:[#allocation2 + $0x100] sm:$0xff] %v574
    %760 = vst [vmem:[#allocation2 + $0x108] sm:$0xff] %v576
    %761 = vst [vmem:[#allocation2 + $0x110] sm:$0xff] %v699
    %762 = vst [vmem:[#allocation2 + $0x118] sm:$0xff] %v701
    %763 = vst [vmem:[#allocation2 + $0x120] sm:$0xff] %v455
    %764 = vst [vmem:[#allocation2 + $0x128] sm:$0xff] %v457
    %765 = vst [vmem:[#allocation2 + $0x130] sm:$0xff] %v580
    %766 = vst [vmem:[#allocation2 + $0x138] sm:$0xff] %v582
    %767 = vst [vmem:[#allocation2 + $0x140] sm:$0xff] %v705
    %768 = vst [vmem:[#allocation2 + $0x148] sm:$0xff] %v707
    %769 = vst [vmem:[#allocation2 + $0x150] sm:$0xff] %v461
    %770 = vst [vmem:[#allocation2 + $0x158] sm:$0xff] %v463
    %771 = vst [vmem:[#allocation2 + $0x160] sm:$0xff] %v586
    %772 = vst [vmem:[#allocation2 + $0x168] sm:$0xff] %v588
    %773 = vst [vmem:[#allocation2 + $0x170] sm:$0xff] %v711
    %774 = vst [vmem:[#allocation2 + $0x178] sm:$0xff] %v713
    %775 = vst [vmem:[#allocation2 + $0x180] sm:$0xff] %v467
    %776 = vst [vmem:[#allocation2 + $0x188] sm:$0xff] %v469
    %777 = vst [vmem:[#allocation2 + $0x190] sm:$0xff] %v592
    %778 = vst [vmem:[#allocation2 + $0x198] sm:$0xff] %v594
    %779 = vst [vmem:[#allocation2 + $0x1a0] sm:$0xff] %v717
    %780 = vst [vmem:[#allocation2 + $0x1a8] sm:$0xff] %v719
    %781 = vst [vmem:[#allocation2 + $0x1b0] sm:$0xff] %v473
    %782 = vst [vmem:[#allocation2 + $0x1b8] sm:$0xff] %v475
    %783 = vst [vmem:[#allocation2 + $0x1c0] sm:$0xff] %v598
    %784 = vst [vmem:[#allocation2 + $0x1c8] sm:$0xff] %v600
    %785 = vst [vmem:[#allocation2 + $0x1d0] sm:$0xff] %v723
    %786 = vst [vmem:[#allocation2 + $0x1d8] sm:$0xff] %v725
    %v787 = vld [vmem:[#allocation6] sm:$0xff]
    %v788 = vld [vmem:[#allocation6 + $0x8] sm:$0xff]
    %v789 = vld [vmem:[#allocation6 + $0x10] sm:$0xff]
    %v790 = vld [vmem:[#allocation6 + $0x18] sm:$0xff]
    %v791 = vld [vmem:[#allocation6 + $0x20] sm:$0xff]
    %v792 = vld [vmem:[#allocation6 + $0x28] sm:$0xff]
    %v793 = vld [vmem:[#allocation6 + $0x30] sm:$0xff]
    %v794 = vld [vmem:[#allocation6 + $0x38] sm:$0xff]
    %v795 = vld [vmem:[#allocation6 + $0x40] sm:$0xff]
    %v796 = vld [vmem:[#allocation6 + $0x48] sm:$0xff]
    %v797 = vld [vmem:[#allocation6 + $0x50] sm:$0xff]
    %v798 = vld [vmem:[#allocation6 + $0x58] sm:$0xff]
    %v799 = vld [vmem:[#allocation6 + $0x60] sm:$0xff]
    %v800 = vld [vmem:[#allocation6 + $0x68] sm:$0xff]
    %v801 = vld [vmem:[#allocation6 + $0x70] sm:$0xff]
    %v802 = vld [vmem:[#allocation6 + $0x78] sm:$0xff]
    %v803 = vld [vmem:[#allocation6 + $0x80] sm:$0xff]
    %v804 = vld [vmem:[#allocation6 + $0x88] sm:$0xff]
    %v805 = vld [vmem:[#allocation6 + $0x90] sm:$0xff]
    %v806 = vld [vmem:[#allocation6 + $0x98] sm:$0xff]
    %v807 = vld [vmem:[#allocation6 + $0xa0] sm:$0xff]
    %v808 = vld [vmem:[#allocation6 + $0xa8] sm:$0xff]
    %v809 = vld [vmem:[#allocation6 + $0xb0] sm:$0xff]
    %v810 = vld [vmem:[#allocation6 + $0xb8] sm:$0xff]
    %v811 = vld [vmem:[#allocation6 + $0xc0] sm:$0xff]
    %v812 = vld [vmem:[#allocation6 + $0xc8] sm:$0xff]
    %v813 = vld [vmem:[#allocation6 + $0xd0] sm:$0xff]
    %v814 = vld [vmem:[#allocation6 + $0xd8] sm:$0xff]
    %v815 = vld [vmem:[#allocation6 + $0xe0] sm:$0xff]
    %v816 = vld [vmem:[#allocation6 + $0xe8] sm:$0xff]
    %v817 = vld [vmem:[#allocation6 + $0xf0] sm:$0xff]
    %v818 = vld [vmem:[#allocation6 + $0xf8] sm:$0xff]
    %v819 = vld [vmem:[#allocation6 + $0x100] sm:$0xff]
    %v820 = vld [vmem:[#allocation6 + $0x108] sm:$0xff]
    %v821 = vld [vmem:[#allocation6 + $0x110] sm:$0xff]
    %v822 = vld [vmem:[#allocation6 + $0x118] sm:$0xff]
    %v823 = vld [vmem:[#allocation6 + $0x120] sm:$0xff]
    %v824 = vld [vmem:[#allocation6 + $0x128] sm:$0xff]
    %v825 = vld [vmem:[#allocation6 + $0x130] sm:$0xff]
    %v826 = vld [vmem:[#allocation6 + $0x138] sm:$0xff]
    %v827 = vld [vmem:[#allocation6 + $0x140] sm:$0xff]
    %v828 = vld [vmem:[#allocation6 + $0x148] sm:$0xff]
    %v829 = vld [vmem:[#allocation6 + $0x150] sm:$0xff]
    %v830 = vld [vmem:[#allocation6 + $0x158] sm:$0xff]
    %v831 = vld [vmem:[#allocation6 + $0x160] sm:$0xff]
    %v832 = vld [vmem:[#allocation6 + $0x168] sm:$0xff]
    %v833 = vld [vmem:[#allocation6 + $0x170] sm:$0xff]
    %v834 = vld [vmem:[#allocation6 + $0x178] sm:$0xff]
    %v835 = vld [vmem:[#allocation6 + $0x180] sm:$0xff]
    %v836 = vld [vmem:[#allocation6 + $0x188] sm:$0xff]
    %v837 = vld [vmem:[#allocation6 + $0x190] sm:$0xff]
    %v838 = vld [vmem:[#allocation6 + $0x198] sm:$0xff]
    %v839 = vld [vmem:[#allocation6 + $0x1a0] sm:$0xff]
    %v840 = vld [vmem:[#allocation6 + $0x1a8] sm:$0xff]
    %v841 = vld [vmem:[#allocation6 + $0x1b0] sm:$0xff]
    %v842 = vld [vmem:[#allocation6 + $0x1b8] sm:$0xff]
    %v843 = vld [vmem:[#allocation6 + $0x1c0] sm:$0xff]
    %v844 = vld [vmem:[#allocation6 + $0x1c8] sm:$0xff]
    %v845 = vld [vmem:[#allocation6 + $0x1d0] sm:$0xff]
    %v846 = vld [vmem:[#allocation6 + $0x1d8] sm:$0xff]
    %v847 = vld [vmem:[#allocation6 + $0x1e0] sm:$0xff]
    %v848 = vld [vmem:[#allocation6 + $0x1e8] sm:$0xff]
    %v849 = vld [vmem:[#allocation6 + $0x1f0] sm:$0xff]
    %v850 = vld [vmem:[#allocation6 + $0x1f8] sm:$0xff]
    %v851 = vld [vmem:[#allocation6 + $0x200] sm:$0xff]
    %v852 = vld [vmem:[#allocation6 + $0x208] sm:$0xff]
    %v853 = vld [vmem:[#allocation6 + $0x210] sm:$0xff]
    %v854 = vld [vmem:[#allocation6 + $0x218] sm:$0xff]
    %v855 = vld [vmem:[#allocation6 + $0x220] sm:$0xff]
    %v856 = vld [vmem:[#allocation6 + $0x228] sm:$0xff]
    %v857 = vld [vmem:[#allocation6 + $0x230] sm:$0xff]
    %v858 = vld [vmem:[#allocation6 + $0x238] sm:$0xff]
    %v859 = vld [vmem:[#allocation6 + $0x240] sm:$0xff]
    %v860 = vld [vmem:[#allocation6 + $0x248] sm:$0xff]
    %v861 = vld [vmem:[#allocation6 + $0x250] sm:$0xff]
    %v862 = vld [vmem:[#allocation6 + $0x258] sm:$0xff]
    %v863 = vld [vmem:[#allocation6 + $0x260] sm:$0xff]
    %v864 = vld [vmem:[#allocation6 + $0x268] sm:$0xff]
    %v865 = vld [vmem:[#allocation6 + $0x270] sm:$0xff]
    %v866 = vld [vmem:[#allocation6 + $0x278] sm:$0xff]
    %v867 = vld [vmem:[#allocation6 + $0x280] sm:$0xff]
    %v868 = vld [vmem:[#allocation6 + $0x288] sm:$0xff]
    %v869 = vld [vmem:[#allocation6 + $0x290] sm:$0xff]
    %v870 = vld [vmem:[#allocation6 + $0x298] sm:$0xff]
    %v871 = vld [vmem:[#allocation6 + $0x2a0] sm:$0xff]
    %v872 = vld [vmem:[#allocation6 + $0x2a8] sm:$0xff]
    %v873 = vld [vmem:[#allocation6 + $0x2b0] sm:$0xff]
    %v874 = vld [vmem:[#allocation6 + $0x2b8] sm:$0xff]
    %v875 = vld [vmem:[#allocation6 + $0x2c0] sm:$0xff]
    %v876 = vld [vmem:[#allocation6 + $0x2c8] sm:$0xff]
    %v877 = vld [vmem:[#allocation6 + $0x2d0] sm:$0xff]
    %v878 = vld [vmem:[#allocation6 + $0x2d8] sm:$0xff]
    %v879 = vld [vmem:[#allocation6 + $0x2e0] sm:$0xff]
    %v880 = vld [vmem:[#allocation6 + $0x2e8] sm:$0xff]
    %v881 = vld [vmem:[#allocation6 + $0x2f0] sm:$0xff]
    %v882 = vld [vmem:[#allocation6 + $0x2f8] sm:$0xff]
    %v883 = vld [vmem:[#allocation6 + $0x300] sm:$0xff]
    %v884 = vld [vmem:[#allocation6 + $0x308] sm:$0xff]
    %v885 = vld [vmem:[#allocation6 + $0x310] sm:$0xff]
    %v886 = vld [vmem:[#allocation6 + $0x318] sm:$0xff]
    %v887 = vld [vmem:[#allocation6 + $0x320] sm:$0xff]
    %v888 = vld [vmem:[#allocation6 + $0x328] sm:$0xff]
    %v889 = vld [vmem:[#allocation6 + $0x330] sm:$0xff]
    %v890 = vld [vmem:[#allocation6 + $0x338] sm:$0xff]
    %v891 = vld [vmem:[#allocation6 + $0x340] sm:$0xff]
    %v892 = vld [vmem:[#allocation6 + $0x348] sm:$0xff]
    %v893 = vld [vmem:[#allocation6 + $0x350] sm:$0xff]
    %v894 = vld [vmem:[#allocation6 + $0x358] sm:$0xff]
    %v895 = vld [vmem:[#allocation6 + $0x360] sm:$0xff]
    %v896 = vld [vmem:[#allocation6 + $0x368] sm:$0xff]
    %v897 = vld [vmem:[#allocation6 + $0x370] sm:$0xff]
    %v898 = vld [vmem:[#allocation6 + $0x378] sm:$0xff]
    %v899 = vld [vmem:[#allocation6 + $0x380] sm:$0xff]
    %v900 = vld [vmem:[#allocation6 + $0x388] sm:$0xff]
    %v901 = vld [vmem:[#allocation6 + $0x390] sm:$0xff]
    %v902 = vld [vmem:[#allocation6 + $0x398] sm:$0xff]
    %v903 = vld [vmem:[#allocation6 + $0x3a0] sm:$0xff]
    %v904 = vld [vmem:[#allocation6 + $0x3a8] sm:$0xff]
    %v905 = vld [vmem:[#allocation6 + $0x3b0] sm:$0xff]
    %v906 = vld [vmem:[#allocation6 + $0x3b8] sm:$0xff]
    %v907 = vld [vmem:[#allocation6 + $0x3c0] sm:$0xff]
    %v908 = vld [vmem:[#allocation6 + $0x3c8] sm:$0xff]
    %v909 = vld [vmem:[#allocation6 + $0x3d0] sm:$0xff]
    %v910 = vld [vmem:[#allocation6 + $0x3d8] sm:$0xff]
    %v911 = vld [vmem:[#allocation6 + $0x3e0] sm:$0xff]
    %v912 = vld [vmem:[#allocation6 + $0x3e8] sm:$0xff]
    %v913 = vld [vmem:[#allocation6 + $0x3f0] sm:$0xff]
    %v914 = vld [vmem:[#allocation6 + $0x3f8] sm:$0xff]
    %v915 = vld [vmem:[#allocation6 + $0x400] sm:$0xff]
    %v916 = vld [vmem:[#allocation6 + $0x408] sm:$0xff]
    %v917 = vld [vmem:[#allocation6 + $0x410] sm:$0xff]
    %v918 = vld [vmem:[#allocation6 + $0x418] sm:$0xff]
    %v919 = vld [vmem:[#allocation6 + $0x420] sm:$0xff]
    %v920 = vld [vmem:[#allocation6 + $0x428] sm:$0xff]
    %v921 = vld [vmem:[#allocation6 + $0x430] sm:$0xff]
    %v922 = vld [vmem:[#allocation6 + $0x438] sm:$0xff]
    %v923 = vld [vmem:[#allocation6 + $0x440] sm:$0xff]
    %v924 = vld [vmem:[#allocation6 + $0x448] sm:$0xff]
    %v925 = vld [vmem:[#allocation6 + $0x450] sm:$0xff]
    %v926 = vld [vmem:[#allocation6 + $0x458] sm:$0xff]
    %v927 = vld [vmem:[#allocation6 + $0x460] sm:$0xff]
    %v928 = vld [vmem:[#allocation6 + $0x468] sm:$0xff]
    %v929 = vld [vmem:[#allocation6 + $0x470] sm:$0xff]
    %v930 = vld [vmem:[#allocation6 + $0x478] sm:$0xff]
    %v931 = vld [vmem:[#allocation6 + $0x480] sm:$0xff]
    %v932 = vld [vmem:[#allocation6 + $0x488] sm:$0xff]
    %v933 = vld [vmem:[#allocation6 + $0x490] sm:$0xff]
    %v934 = vld [vmem:[#allocation6 + $0x498] sm:$0xff]
    %v935 = vld [vmem:[#allocation6 + $0x4a0] sm:$0xff]
    %v936 = vld [vmem:[#allocation6 + $0x4a8] sm:$0xff]
    %v937 = vld [vmem:[#allocation6 + $0x4b0] sm:$0xff]
    %v938 = vld [vmem:[#allocation6 + $0x4b8] sm:$0xff]
    %v939 = vld [vmem:[#allocation6 + $0x4c0] sm:$0xff]
    %v940 = vld [vmem:[#allocation6 + $0x4c8] sm:$0xff]
    %v941 = vld [vmem:[#allocation6 + $0x4d0] sm:$0xff]
    %v942 = vld [vmem:[#allocation6 + $0x4d8] sm:$0xff]
    %v943 = vld [vmem:[#allocation6 + $0x4e0] sm:$0xff]
    %v944 = vld [vmem:[#allocation6 + $0x4e8] sm:$0xff]
    %v945 = vld [vmem:[#allocation6 + $0x4f0] sm:$0xff]
    %v946 = vld [vmem:[#allocation6 + $0x4f8] sm:$0xff]
    %v947 = vld [vmem:[#allocation6 + $0x500] sm:$0xff]
    %v948 = vld [vmem:[#allocation6 + $0x508] sm:$0xff]
    %v949 = vld [vmem:[#allocation6 + $0x510] sm:$0xff]
    %v950 = vld [vmem:[#allocation6 + $0x518] sm:$0xff]
    %v951 = vld [vmem:[#allocation6 + $0x520] sm:$0xff]
    %v952 = vld [vmem:[#allocation6 + $0x528] sm:$0xff]
    %v953 = vld [vmem:[#allocation6 + $0x530] sm:$0xff]
    %v954 = vld [vmem:[#allocation6 + $0x538] sm:$0xff]
    %v955 = vld [vmem:[#allocation6 + $0x540] sm:$0xff]
    %v956 = vld [vmem:[#allocation6 + $0x548] sm:$0xff]
    %v957 = vld [vmem:[#allocation6 + $0x550] sm:$0xff]
    %v958 = vld [vmem:[#allocation6 + $0x558] sm:$0xff]
    %v959 = vld [vmem:[#allocation6 + $0x560] sm:$0xff]
    %v960 = vld [vmem:[#allocation6 + $0x568] sm:$0xff]
    %v961 = vld [vmem:[#allocation6 + $0x570] sm:$0xff]
    %v962 = vld [vmem:[#allocation6 + $0x578] sm:$0xff]
    %v963 = vld [vmem:[#allocation6 + $0x580] sm:$0xff]
    %v964 = vld [vmem:[#allocation6 + $0x588] sm:$0xff]
    %v965 = vld [vmem:[#allocation6 + $0x590] sm:$0xff]
    %v966 = vld [vmem:[#allocation6 + $0x598] sm:$0xff]
    %v967 = vld [vmem:[#allocation6 + $0x5a0] sm:$0xff]
    %v968 = vld [vmem:[#allocation6 + $0x5a8] sm:$0xff]
    %v969 = vld [vmem:[#allocation6 + $0x5b0] sm:$0xff]
    %v970 = vld [vmem:[#allocation6 + $0x5b8] sm:$0xff]
    %v971 = vld [vmem:[#allocation6 + $0x5c0] sm:$0xff]
    %v972 = vld [vmem:[#allocation6 + $0x5c8] sm:$0xff]
    %v973 = vld [vmem:[#allocation6 + $0x5d0] sm:$0xff]
    %v974 = vld [vmem:[#allocation6 + $0x5d8] sm:$0xff]
    %v975 = vld [vmem:[#allocation6 + $0x5e0] sm:$0xff]
    %v976 = vld [vmem:[#allocation6 + $0x5e8] sm:$0xff]
    %v977 = vld [vmem:[#allocation6 + $0x5f0] sm:$0xff]
    %v978 = vld [vmem:[#allocation6 + $0x5f8] sm:$0xff]
    %v979 = vld [vmem:[%s3] sm:$0x3]
    %v980 = vld [vmem:[%s1] sm:$0xff]
    %v981 = vld [vmem:[#allocation2] sm:$0xff]
    %v982 = vld [vmem:[#allocation2 + $0x8] sm:$0xff]
    %v983 = vld [vmem:[#allocation2 + $0x10] sm:$0xff]
    %v984 = vld [vmem:[#allocation2 + $0x18] sm:$0xff]
    %v985 = vld [vmem:[#allocation2 + $0x20] sm:$0xff]
    %v986 = vld [vmem:[#allocation2 + $0x28] sm:$0xff]
    %987 = vmatprep.subr.mxu0 %v878
    %988 = vmatpush1.msra.mxu0 %v877
    %989 = vmatprep.subr.mxu0 %v872
    %990 = vmatpush1.msra.mxu0 %v871
    %991 = vmatprep.subr.mxu0 %v866
    %992 = vmatpush1.msra.mxu0 %v865
    %993 = vmatprep.subr.mxu0 %v860
    %994 = vmatpush1.msra.mxu0 %v859
    %995 = vmatprep.subr.mxu0 %v854
    %996 = vmatpush1.msra.mxu0 %v853
    %997 = vmatprep.subr.mxu0 %v848
    %998 = vmatpush1.msra.mxu0 %v847
    %999 = vmatprep.subr.mxu0 %v842
    %1000 = vmatpush1.msra.mxu0 %v841
    %1001 = vmatprep.subr.mxu0 %v836
    %1002 = vmatpush1.msra.mxu0 %v835
    %1003 = vmatprep.subr.mxu0 %v830
    %1004 = vmatpush1.msra.mxu0 %v829
    %1005 = vmatprep.subr.mxu0 %v824
    %1006 = vmatpush1.msra.mxu0 %v823
    %1007 = vmatprep.subr.mxu0 %v818
    %1008 = vmatpush1.msra.mxu0 %v817
    %1009 = vmatprep.subr.mxu0 %v812
    %1010 = vmatpush1.msra.mxu0 %v811
    %1011 = vmatprep.subr.mxu0 %v806
    %1012 = vmatpush1.msra.mxu0 %v805
    %1013 = vmatprep.subr.mxu0 %v800
    %1014 = vmatpush1.msra.mxu0 %v799
    %1015 = vmatprep.subr.mxu0 %v794
    %1016 = vmatpush1.msra.mxu0 %v793
    %1017 = vmatprep.subr.mxu0 %v788
    %1018 = vmatpush1.msra.mxu0 %v787
    %1019 = vmatprep.subr.mxu0 %v974
    %1020 = vmatpush2.msra.mxu0 %v973
    %1021 = vmatprep.subr.mxu0 %v968
    %1022 = vmatpush2.msra.mxu0 %v967
    %1023 = vmatprep.subr.mxu0 %v962
    %1024 = vmatpush2.msra.mxu0 %v961
    %1025 = vmatprep.subr.mxu0 %v956
    %1026 = vmatpush2.msra.mxu0 %v955
    %1027 = vmatprep.subr.mxu0 %v950
    %1028 = vmatpush2.msra.mxu0 %v949
    %1029 = vmatprep.subr.mxu0 %v944
    %1030 = vmatpush2.msra.mxu0 %v943
    %1031 = vmatprep.subr.mxu0 %v938
    %1032 = vmatpush2.msra.mxu0 %v937
    %1033 = vmatprep.subr.mxu0 %v932
    %1034 = vmatpush2.msra.mxu0 %v931
    %1035 = vmatprep.subr.mxu0 %v926
    %1036 = vmatpush2.msra.mxu0 %v925
    %1037 = vmatprep.subr.mxu0 %v920
    %1038 = vmatpush2.msra.mxu0 %v919
    %1039 = vmatprep.subr.mxu0 %v914
    %1040 = vmatpush2.msra.mxu0 %v913
    %1041 = vmatprep.subr.mxu0 %v908
    %1042 = vmatpush2.msra.mxu0 %v907
    %1043 = vmatprep.subr.mxu0 %v902
    %1044 = vmatpush2.msra.mxu0 %v901
    %1045 = vmatprep.subr.mxu0 %v896
    %1046 = vmatpush2.msra.mxu0 %v895
    %1047 = vmatprep.subr.mxu0 %v890
    %1048 = vmatpush2.msra.mxu0 %v889
    %1049 = vmatprep.subr.mxu0 %v884
    %1050 = vmatpush2.msra.mxu0 %v883
    %1051 = vmatprep.mubr.f32.mxu0 0.0
    %1052 = vmatmul.mubr.f32.gmra.mxu0 0.0
    %v1053 = vpop.f32.mrf.mxu0
    %v1054 = vadd.f32 0.0, %v1053
    %v1055 = vpop.f32.mrf.mxu0
    %v1056 = vadd.f32 0.0, %v1055
    %1057 = vdwg.mxu0
    %1058 = vmatprep.subr.mxu0 %v880
    %1059 = vmatpush1.msra.mxu0 %v879
    %1060 = vmatprep.subr.mxu0 %v874
    %1061 = vmatpush1.msra.mxu0 %v873
    %1062 = vmatprep.subr.mxu0 %v868
    %1063 = vmatpush1.msra.mxu0 %v867
    %1064 = vmatprep.subr.mxu0 %v862
    %1065 = vmatpush1.msra.mxu0 %v861
    %1066 = vmatprep.subr.mxu0 %v856
    %1067 = vmatpush1.msra.mxu0 %v855
    %1068 = vmatprep.subr.mxu0 %v850
    %1069 = vmatpush1.msra.mxu0 %v849
    %1070 = vmatprep.subr.mxu0 %v844
    %1071 = vmatpush1.msra.mxu0 %v843
    %1072 = vmatprep.subr.mxu0 %v838
    %1073 = vmatpush1.msra.mxu0 %v837
    %1074 = vmatprep.subr.mxu0 %v832
    %1075 = vmatpush1.msra.mxu0 %v831
    %1076 = vmatprep.subr.mxu0 %v826
    %1077 = vmatpush1.msra.mxu0 %v825
    %1078 = vmatprep.subr.mxu0 %v820
    %1079 = vmatpush1.msra.mxu0 %v819
    %1080 = vmatprep.subr.mxu0 %v814
    %1081 = vmatpush1.msra.mxu0 %v813
    %1082 = vmatprep.subr.mxu0 %v808
    %1083 = vmatpush1.msra.mxu0 %v807
    %1084 = vmatprep.subr.mxu0 %v802
    %1085 = vmatpush1.msra.mxu0 %v801
    %1086 = vmatprep.subr.mxu0 %v796
    %1087 = vmatpush1.msra.mxu0 %v795
    %1088 = vmatprep.subr.mxu0 %v790
    %1089 = vmatpush1.msra.mxu0 %v789
    %1090 = vmatprep.subr.mxu0 %v976
    %1091 = vmatpush2.msra.mxu0 %v975
    %1092 = vmatprep.subr.mxu0 %v970
    %1093 = vmatpush2.msra.mxu0 %v969
    %1094 = vmatprep.subr.mxu0 %v964
    %1095 = vmatpush2.msra.mxu0 %v963
    %1096 = vmatprep.subr.mxu0 %v958
    %1097 = vmatpush2.msra.mxu0 %v957
    %1098 = vmatprep.subr.mxu0 %v952
    %1099 = vmatpush2.msra.mxu0 %v951
    %1100 = vmatprep.subr.mxu0 %v946
    %1101 = vmatpush2.msra.mxu0 %v945
    %1102 = vmatprep.subr.mxu0 %v940
    %1103 = vmatpush2.msra.mxu0 %v939
    %1104 = vmatprep.subr.mxu0 %v934
    %1105 = vmatpush2.msra.mxu0 %v933
    %1106 = vmatprep.subr.mxu0 %v928
    %1107 = vmatpush2.msra.mxu0 %v927
    %1108 = vmatprep.subr.mxu0 %v922
    %1109 = vmatpush2.msra.mxu0 %v921
    %1110 = vmatprep.subr.mxu0 %v916
    %1111 = vmatpush2.msra.mxu0 %v915
    %1112 = vmatprep.subr.mxu0 %v910
    %1113 = vmatpush2.msra.mxu0 %v909
    %1114 = vmatprep.subr.mxu0 %v904
    %1115 = vmatpush2.msra.mxu0 %v903
    %1116 = vmatprep.subr.mxu0 %v898
    %1117 = vmatpush2.msra.mxu0 %v897
    %1118 = vmatprep.subr.mxu0 %v892
    %1119 = vmatpush2.msra.mxu0 %v891
    %1120 = vmatprep.subr.mxu0 %v886
    %1121 = vmatpush2.msra.mxu0 %v885
    %1122 = vmatprep.mubr.f32.mxu0 0.0
    %1123 = vmatmul.mubr.f32.gmra.mxu0 0.0
    %v1124 = vpop.f32.mrf.mxu0
    %v1125 = vadd.f32 0.0, %v1124
    %v1126 = vpop.f32.mrf.mxu0
    %v1127 = vadd.f32 0.0, %v1126
    %1128 = vdwg.mxu0
    %1129 = vmatprep.subr.mxu0 %v882
    %1130 = vmatpush1.msra.mxu0 %v881
    %1131 = vmatprep.subr.mxu0 %v876
    %1132 = vmatpush1.msra.mxu0 %v875
    %1133 = vmatprep.subr.mxu0 %v870
    %1134 = vmatpush1.msra.mxu0 %v869
    %1135 = vmatprep.subr.mxu0 %v864
    %1136 = vmatpush1.msra.mxu0 %v863
    %1137 = vmatprep.subr.mxu0 %v858
    %1138 = vmatpush1.msra.mxu0 %v857
    %1139 = vmatprep.subr.mxu0 %v852
    %1140 = vmatpush1.msra.mxu0 %v851
    %1141 = vmatprep.subr.mxu0 %v846
    %1142 = vmatpush1.msra.mxu0 %v845
    %1143 = vmatprep.subr.mxu0 %v840
    %1144 = vmatpush1.msra.mxu0 %v839
    %1145 = vmatprep.subr.mxu0 %v834
    %1146 = vmatpush1.msra.mxu0 %v833
    %1147 = vmatprep.subr.mxu0 %v828
    %1148 = vmatpush1.msra.mxu0 %v827
    %1149 = vmatprep.subr.mxu0 %v822
    %1150 = vmatpush1.msra.mxu0 %v821
    %1151 = vmatprep.subr.mxu0 %v816
    %1152 = vmatpush1.msra.mxu0 %v815
    %1153 = vmatprep.subr.mxu0 %v810
    %1154 = vmatpush1.msra.mxu0 %v809
    %1155 = vmatprep.subr.mxu0 %v804
    %1156 = vmatpush1.msra.mxu0 %v803
    %1157 = vmatprep.subr.mxu0 %v798
    %1158 = vmatpush1.msra.mxu0 %v797
    %1159 = vmatprep.subr.mxu0 %v792
    %1160 = vmatpush1.msra.mxu0 %v791
    %1161 = vmatprep.subr.mxu0 %v978
    %1162 = vmatpush2.msra.mxu0 %v977
    %1163 = vmatprep.subr.mxu0 %v972
    %1164 = vmatpush2.msra.mxu0 %v971
    %1165 = vmatprep.subr.mxu0 %v966
    %1166 = vmatpush2.msra.mxu0 %v965
    %1167 = vmatprep.subr.mxu0 %v960
    %1168 = vmatpush2.msra.mxu0 %v959
    %1169 = vmatprep.subr.mxu0 %v954
    %1170 = vmatpush2.msra.mxu0 %v953
    %1171 = vmatprep.subr.mxu0 %v948
    %1172 = vmatpush2.msra.mxu0 %v947
    %1173 = vmatprep.subr.mxu0 %v942
    %1174 = vmatpush2.msra.mxu0 %v941
    %1175 = vmatprep.subr.mxu0 %v936
    %1176 = vmatpush2.msra.mxu0 %v935
    %1177 = vmatprep.subr.mxu0 %v930
    %1178 = vmatpush2.msra.mxu0 %v929
    %1179 = vmatprep.subr.mxu0 %v924
    %1180 = vmatpush2.msra.mxu0 %v923
    %1181 = vmatprep.subr.mxu0 %v918
    %1182 = vmatpush2.msra.mxu0 %v917
    %1183 = vmatprep.subr.mxu0 %v912
    %1184 = vmatpush2.msra.mxu0 %v911
    %1185 = vmatprep.subr.mxu0 %v906
    %1186 = vmatpush2.msra.mxu0 %v905
    %1187 = vmatprep.subr.mxu0 %v900
    %1188 = vmatpush2.msra.mxu0 %v899
    %1189 = vmatprep.subr.mxu0 %v894
    %1190 = vmatpush2.msra.mxu0 %v893
    %1191 = vmatprep.subr.mxu0 %v888
    %1192 = vmatpush2.msra.mxu0 %v887
    %1193 = vmatprep.mubr.f32.mxu0 0.0
    %1194 = vmatmul.mubr.f32.gmra.mxu0 0.0
    %v1195 = vpop.f32.mrf.mxu0
    %v1196 = vadd.f32 0.0, %v1195
    %v1197 = vpop.f32.mrf.mxu0
    %v1198 = vadd.f32 0.0, %v1197
    %1199 = vdwg.mxu0
    %v1200 = vadd.f32 %v981, %v1054
    %v1201 = vadd.f32 %v982, %v1056
    %v1202 = vxor.u32 %v1200, 2147483648
    %v1203 = vxor.u32 %v1201, 2147483648
    %v1204 = vmul.f32 %v1202, 1.442695
    %v1205 = vpow.pop %v1204
    %v1206 = vmul.f32 %v1203, 1.442695
    %v1207 = vpow.pop %v1206
    %v1208 = vadd.f32 %v1205, 1.0
    %v1209 = vadd.f32 %v1207, 1.0
    %v1210 = vrcp.pop %v1208
    %v1211 = vmul.f32 1.0, %v1210
    %v1212 = vrcp.pop %v1209
    %v1213 = vmul.f32 1.0, %v1212
    %v1214 = vadd.f32 %v983, %v1125
    %v1215 = vadd.f32 %v984, %v1127
    %v1216 = vxor.u32 %v1214, 2147483648
    %v1217 = vxor.u32 %v1215, 2147483648
    %v1218 = vmul.f32 %v1216, 1.442695
    %v1219 = vpow.pop %v1218
    %v1220 = vmul.f32 %v1217, 1.442695
    %v1221 = vpow.pop %v1220
    %v1222 = vadd.f32 %v1219, 1.0
    %v1223 = vadd.f32 %v1221, 1.0
    %v1224 = vrcp.pop %v1222
    %v1225 = vmul.f32 1.0, %v1224
    %v1226 = vrcp.pop %v1223
    %v1227 = vmul.f32 1.0, %v1226
    %v1229 = vlaneseq
    %v1230 = vshrl.u32 %v1229, 7
    %v1231 = vsub.s32 0, %v1230
    %v1232 = vrot.slane %v979, %v1231
    %v1233 = vlaneseq
    %v1234 = vshrl.u32 %v1233, 7
    %v1235 = vsub.s32 1, %v1234
    %v1236 = vrot.slane %v979, %v1235
    %v1239 = vadd.f32 %v1196, %v1232
    %v1240 = vadd.f32 %v1198, %v1236
    %v1241 = vmul.f32 %v1211, %v1239
    %v1242 = vmul.f32 %v1213, %v1240
    %v1243 = vadd.f32 %v985, %v1241
    %v1244 = vadd.f32 %v986, %v1242
    %v1245 = vtanh.pop %v1243
    %v1246 = vtanh.pop %v1244
    %v1247 = vsub.f32 1.0, %v1225
    %v1248 = vsub.f32 1.0, %v1227
    %v1249 = vmul.f32 %v1247, %v1245
    %v1250 = vmul.f32 %v1248, %v1246
    %v1251 = vmul.f32 %v1225, 0.0
    %v1252 = vmul.f32 %v1227, 0.0
    %v1253 = vadd.f32 %v1249, %v1251
    %v1254 = vadd.f32 %v1250, %v1252
    %vm1255 = vcmp.gt.s32.totalorder %v980, 0
    %v1256 = vsel %vm1255, 1, 0
    %1257 = vset.pattern.permute.xlu0 0
    %1258 = vperm.xlu0 %1257, %v1256
    %v1259 = vpop.permute.xlu0 %1258
    %vm1260 = vcmp.eq.s32.totalorder %v1259, 1
    %v1261 = vsel %vm1260, %v1253, 0.0
    %v1262 = vsel %vm1260, %v1254, 0.0
    %v1263 = vld [vmem:[#allocation2 + $0x30] sm:$0xff]
    %v1264 = vld [vmem:[#allocation2 + $0x38] sm:$0xff]
    %v1265 = vld [vmem:[#allocation2 + $0x40] sm:$0xff]
    %v1266 = vld [vmem:[#allocation2 + $0x48] sm:$0xff]
    %v1267 = vld [vmem:[#allocation2 + $0x50] sm:$0xff]
    %v1268 = vld [vmem:[#allocation2 + $0x58] sm:$0xff]
    %1269 = vmatprep.subr.mxu0 %v878
    %1270 = vmatpush1.msra.mxu0 %v877
    %1271 = vmatprep.subr.mxu0 %v872
    %1272 = vmatpush1.msra.mxu0 %v871
    %1273 = vmatprep.subr.mxu0 %v866
    %1274 = vmatpush1.msra.mxu0 %v865
    %1275 = vmatprep.subr.mxu0 %v860
    %1276 = vmatpush1.msra.mxu0 %v859
    %1277 = vmatprep.subr.mxu0 %v854
    %1278 = vmatpush1.msra.mxu0 %v853
    %1279 = vmatprep.subr.mxu0 %v848
    %1280 = vmatpush1.msra.mxu0 %v847
    %1281 = vmatprep.subr.mxu0 %v842
    %1282 = vmatpush1.msra.mxu0 %v841
    %1283 = vmatprep.subr.mxu0 %v836
    %1284 = vmatpush1.msra.mxu0 %v835
    %1285 = vmatprep.subr.mxu0 %v830
    %1286 = vmatpush1.msra.mxu0 %v829
    %1287 = vmatprep.subr.mxu0 %v824
    %1288 = vmatpush1.msra.mxu0 %v823
    %1289 = vmatprep.subr.mxu0 %v818
    %1290 = vmatpush1.msra.mxu0 %v817
    %1291 = vmatprep.subr.mxu0 %v812
    %1292 = vmatpush1.msra.mxu0 %v811
    %1293 = vmatprep.subr.mxu0 %v806
    %1294 = vmatpush1.msra.mxu0 %v805
    %1295 = vmatprep.subr.mxu0 %v800
    %1296 = vmatpush1.msra.mxu0 %v799
    %1297 = vmatprep.subr.mxu0 %v794
    %1298 = vmatpush1.msra.mxu0 %v793
    %1299 = vmatprep.subr.mxu0 %v788
    %1300 = vmatpush1.msra.mxu0 %v787
    %1301 = vmatprep.subr.mxu0 %v974
    %1302 = vmatpush2.msra.mxu0 %v973
    %1303 = vmatprep.subr.mxu0 %v968
    %1304 = vmatpush2.msra.mxu0 %v967
    %1305 = vmatprep.subr.mxu0 %v962
    %1306 = vmatpush2.msra.mxu0 %v961
    %1307 = vmatprep.subr.mxu0 %v956
    %1308 = vmatpush2.msra.mxu0 %v955
    %1309 = vmatprep.subr.mxu0 %v950
    %1310 = vmatpush2.msra.mxu0 %v949
    %1311 = vmatprep.subr.mxu0 %v944
    %1312 = vmatpush2.msra.mxu0 %v943
    %1313 = vmatprep.subr.mxu0 %v938
    %1314 = vmatpush2.msra.mxu0 %v937
    %1315 = vmatprep.subr.mxu0 %v932
    %1316 = vmatpush2.msra.mxu0 %v931
    %1317 = vmatprep.subr.mxu0 %v926
    %1318 = vmatpush2.msra.mxu0 %v925
    %1319 = vmatprep.subr.mxu0 %v920
    %1320 = vmatpush2.msra.mxu0 %v919
    %1321 = vmatprep.subr.mxu0 %v914
    %1322 = vmatpush2.msra.mxu0 %v913
    %1323 = vmatprep.subr.mxu0 %v908
    %1324 = vmatpush2.msra.mxu0 %v907
    %1325 = vmatprep.subr.mxu0 %v902
    %1326 = vmatpush2.msra.mxu0 %v901
    %1327 = vmatprep.subr.mxu0 %v896
    %1328 = vmatpush2.msra.mxu0 %v895
    %1329 = vmatprep.subr.mxu0 %v890
    %1330 = vmatpush2.msra.mxu0 %v889
    %1331 = vmatprep.subr.mxu0 %v884
    %1332 = vmatpush2.msra.mxu0 %v883
    %1333 = vmatprep.mubr.f32.mxu0 %v1262
    %1334 = vmatmul.mubr.f32.gmra.mxu0 %v1261
    %v1335 = vpop.f32.mrf.mxu0
    %v1336 = vadd.f32 0.0, %v1335
    %v1337 = vpop.f32.mrf.mxu0
    %v1338 = vadd.f32 0.0, %v1337
    %1339 = vdwg.mxu0
    %1340 = vmatprep.subr.mxu0 %v880
    %1341 = vmatpush1.msra.mxu0 %v879
    %1342 = vmatprep.subr.mxu0 %v874
    %1343 = vmatpush1.msra.mxu0 %v873
    %1344 = vmatprep.subr.mxu0 %v868
    %1345 = vmatpush1.msra.mxu0 %v867
    %1346 = vmatprep.subr.mxu0 %v862
    %1347 = vmatpush1.msra.mxu0 %v861
    %1348 = vmatprep.subr.mxu0 %v856
    %1349 = vmatpush1.msra.mxu0 %v855
    %1350 = vmatprep.subr.mxu0 %v850
    %1351 = vmatpush1.msra.mxu0 %v849
    %1352 = vmatprep.subr.mxu0 %v844
    %1353 = vmatpush1.msra.mxu0 %v843
    %1354 = vmatprep.subr.mxu0 %v838
    %1355 = vmatpush1.msra.mxu0 %v837
    %1356 = vmatprep.subr.mxu0 %v832
    %1357 = vmatpush1.msra.mxu0 %v831
    %1358 = vmatprep.subr.mxu0 %v826
    %1359 = vmatpush1.msra.mxu0 %v825
    %1360 = vmatprep.subr.mxu0 %v820
    %1361 = vmatpush1.msra.mxu0 %v819
    %1362 = vmatprep.subr.mxu0 %v814
    %1363 = vmatpush1.msra.mxu0 %v813
    %1364 = vmatprep.subr.mxu0 %v808
    %1365 = vmatpush1.msra.mxu0 %v807
    %1366 = vmatprep.subr.mxu0 %v802
    %1367 = vmatpush1.msra.mxu0 %v801
    %1368 = vmatprep.subr.mxu0 %v796
    %1369 = vmatpush1.msra.mxu0 %v795
    %1370 = vmatprep.subr.mxu0 %v790
    %1371 = vmatpush1.msra.mxu0 %v789
    %1372 = vmatprep.subr.mxu0 %v976
    %1373 = vmatpush2.msra.mxu0 %v975
    %1374 = vmatprep.subr.mxu0 %v970
    %1375 = vmatpush2.msra.mxu0 %v969
    %1376 = vmatprep.subr.mxu0 %v964
    %1377 = vmatpush2.msra.mxu0 %v963
    %1378 = vmatprep.subr.mxu0 %v958
    %1379 = vmatpush2.msra.mxu0 %v957
    %1380 = vmatprep.subr.mxu0 %v952
    %1381 = vmatpush2.msra.mxu0 %v951
    %1382 = vmatprep.subr.mxu0 %v946
    %1383 = vmatpush2.msra.mxu0 %v945
    %1384 = vmatprep.subr.mxu0 %v940
    %1385 = vmatpush2.msra.mxu0 %v939
    %1386 = vmatprep.subr.mxu0 %v934
    %1387 = vmatpush2.msra.mxu0 %v933
    %1388 = vmatprep.subr.mxu0 %v928
    %1389 = vmatpush2.msra.mxu0 %v927
    %1390 = vmatprep.subr.mxu0 %v922
    %1391 = vmatpush2.msra.mxu0 %v921
    %1392 = vmatprep.subr.mxu0 %v916
    %1393 = vmatpush2.msra.mxu0 %v915
    %1394 = vmatprep.subr.mxu0 %v910
    %1395 = vmatpush2.msra.mxu0 %v909
    %1396 = vmatprep.subr.mxu0 %v904
    %1397 = vmatpush2.msra.mxu0 %v903
    %1398 = vmatprep.subr.mxu0 %v898
    %1399 = vmatpush2.msra.mxu0 %v897
    %1400 = vmatprep.subr.mxu0 %v892
    %1401 = vmatpush2.msra.mxu0 %v891
    %1402 = vmatprep.subr.mxu0 %v886
    %1403 = vmatpush2.msra.mxu0 %v885
    %1404 = vmatprep.mubr.f32.mxu0 %v1262
    %1405 = vmatmul.mubr.f32.gmra.mxu0 %v1261
    %v1406 = vpop.f32.mrf.mxu0
    %v1407 = vadd.f32 0.0, %v1406
    %v1408 = vpop.f32.mrf.mxu0
    %v1409 = vadd.f32 0.0, %v1408
    %1410 = vdwg.mxu0
    %1411 = vmatprep.subr.mxu0 %v882
    %1412 = vmatpush1.msra.mxu0 %v881
    %1413 = vmatprep.subr.mxu0 %v876
    %1414 = vmatpush1.msra.mxu0 %v875
    %1415 = vmatprep.subr.mxu0 %v870
    %1416 = vmatpush1.msra.mxu0 %v869
    %1417 = vmatprep.subr.mxu0 %v864
    %1418 = vmatpush1.msra.mxu0 %v863
    %1419 = vmatprep.subr.mxu0 %v858
    %1420 = vmatpush1.msra.mxu0 %v857
    %1421 = vmatprep.subr.mxu0 %v852
    %1422 = vmatpush1.msra.mxu0 %v851
    %1423 = vmatprep.subr.mxu0 %v846
    %1424 = vmatpush1.msra.mxu0 %v845
    %1425 = vmatprep.subr.mxu0 %v840
    %1426 = vmatpush1.msra.mxu0 %v839
    %1427 = vmatprep.subr.mxu0 %v834
    %1428 = vmatpush1.msra.mxu0 %v833
    %1429 = vmatprep.subr.mxu0 %v828
    %1430 = vmatpush1.msra.mxu0 %v827
    %1431 = vmatprep.subr.mxu0 %v822
    %1432 = vmatpush1.msra.mxu0 %v821
    %1433 = vmatprep.subr.mxu0 %v816
    %1434 = vmatpush1.msra.mxu0 %v815
    %1435 = vmatprep.subr.mxu0 %v810
    %1436 = vmatpush1.msra.mxu0 %v809
    %1437 = vmatprep.subr.mxu0 %v804
    %1438 = vmatpush1.msra.mxu0 %v803
    %1439 = vmatprep.subr.mxu0 %v798
    %1440 = vmatpush1.msra.mxu0 %v797
    %1441 = vmatprep.subr.mxu0 %v792
    %1442 = vmatpush1.msra.mxu0 %v791
    %1443 = vmatprep.subr.mxu0 %v978
    %1444 = vmatpush2.msra.mxu0 %v977
    %1445 = vmatprep.subr.mxu0 %v972
    %1446 = vmatpush2.msra.mxu0 %v971
    %1447 = vmatprep.subr.mxu0 %v966
    %1448 = vmatpush2.msra.mxu0 %v965
    %1449 = vmatprep.subr.mxu0 %v960
    %1450 = vmatpush2.msra.mxu0 %v959
    %1451 = vmatprep.subr.mxu0 %v954
    %1452 = vmatpush2.msra.mxu0 %v953
    %1453 = vmatprep.subr.mxu0 %v948
    %1454 = vmatpush2.msra.mxu0 %v947
    %1455 = vmatprep.subr.mxu0 %v942
    %1456 = vmatpush2.msra.mxu0 %v941
    %1457 = vmatprep.subr.mxu0 %v936
    %1458 = vmatpush2.msra.mxu0 %v935
    %1459 = vmatprep.subr.mxu0 %v930
    %1460 = vmatpush2.msra.mxu0 %v929
    %1461 = vmatprep.subr.mxu0 %v924
    %1462 = vmatpush2.msra.mxu0 %v923
    %1463 = vmatprep.subr.mxu0 %v918
    %1464 = vmatpush2.msra.mxu0 %v917
    %1465 = vmatprep.subr.mxu0 %v912
    %1466 = vmatpush2.msra.mxu0 %v911
    %1467 = vmatprep.subr.mxu0 %v906
    %1468 = vmatpush2.msra.mxu0 %v905
    %1469 = vmatprep.subr.mxu0 %v900
    %1470 = vmatpush2.msra.mxu0 %v899
    %1471 = vmatprep.subr.mxu0 %v894
    %1472 = vmatpush2.msra.mxu0 %v893
    %1473 = vmatprep.subr.mxu0 %v888
    %1474 = vmatpush2.msra.mxu0 %v887
    %1475 = vmatprep.mubr.f32.mxu0 %v1262
    %1476 = vmatmul.mubr.f32.gmra.mxu0 %v1261
    %v1477 = vpop.f32.mrf.mxu0
    %v1478 = vadd.f32 0.0, %v1477
    %v1479 = vpop.f32.mrf.mxu0
    %v1480 = vadd.f32 0.0, %v1479
    %1481 = vdwg.mxu0
    %v1482 = vadd.f32 %v1263, %v1336
    %v1483 = vadd.f32 %v1264, %v1338
    %v1484 = vxor.u32 %v1482, 2147483648
    %v1485 = vxor.u32 %v1483, 2147483648
    %v1486 = vmul.f32 %v1484, 1.442695
    %v1487 = vpow.pop %v1486
    %v1488 = vmul.f32 %v1485, 1.442695
    %v1489 = vpow.pop %v1488
    %v1490 = vadd.f32 %v1487, 1.0
    %v1491 = vadd.f32 %v1489, 1.0
    %v1492 = vrcp.pop %v1490
    %v1493 = vmul.f32 1.0, %v1492
    %v1494 = vrcp.pop %v1491
    %v1495 = vmul.f32 1.0, %v1494
    %v1496 = vadd.f32 %v1265, %v1407
    %v1497 = vadd.f32 %v1266, %v1409
    %v1498 = vxor.u32 %v1496, 2147483648
    %v1499 = vxor.u32 %v1497, 2147483648
    %v1500 = vmul.f32 %v1498, 1.442695
    %v1501 = vpow.pop %v1500
    %v1502 = vmul.f32 %v1499, 1.442695
    %v1503 = vpow.pop %v1502
    %v1504 = vadd.f32 %v1501, 1.0
    %v1505 = vadd.f32 %v1503, 1.0
    %v1506 = vrcp.pop %v1504
    %v1507 = vmul.f32 1.0, %v1506
    %v1508 = vrcp.pop %v1505
    %v1509 = vmul.f32 1.0, %v1508
    %v1510 = vadd.f32 %v1478, %v1232
    %v1511 = vadd.f32 %v1480, %v1236
    %v1512 = vmul.f32 %v1493, %v1510
    %v1513 = vmul.f32 %v1495, %v1511
    %v1514 = vadd.f32 %v1267, %v1512
    %v1515 = vadd.f32 %v1268, %v1513
    %v1516 = vtanh.pop %v1514
    %v1517 = vtanh.pop %v1515
    %v1518 = vsub.f32 1.0, %v1507
    %v1519 = vsub.f32 1.0, %v1509
    %v1520 = vmul.f32 %v1518, %v1516
    %v1521 = vmul.f32 %v1519, %v1517
    %v1522 = vmul.f32 %v1507, %v1261
    %v1523 = vmul.f32 %v1509, %v1262
    %v1524 = vadd.f32 %v1520, %v1522
    %v1525 = vadd.f32 %v1521, %v1523
    %vm1526 = vcmp.gt.s32.totalorder %v980, 1
    %v1527 = vsel %vm1526, 1, 0
    %1528 = vset.pattern.permute.xlu0 0
    %1529 = vperm.xlu0 %1528, %v1527
    %v1530 = vpop.permute.xlu0 %1529
    %vm1531 = vcmp.eq.s32.totalorder %v1530, 1
    %v1532 = vsel %vm1531, %v1524, %v1261
    %v1533 = vsel %vm1531, %v1525, %v1262
    %v1534 = vld [vmem:[#allocation2 + $0x60] sm:$0xff]
    %v1535 = vld [vmem:[#allocation2 + $0x68] sm:$0xff]
    %v1536 = vld [vmem:[#allocation2 + $0x70] sm:$0xff]
    %v1537 = vld [vmem:[#allocation2 + $0x78] sm:$0xff]
    %v1538 = vld [vmem:[#allocation2 + $0x80] sm:$0xff]
    %v1539 = vld [vmem:[#allocation2 + $0x88] sm:$0xff]
    %1540 = vmatprep.subr.mxu0 %v878
    %1541 = vmatpush1.msra.mxu0 %v877
    %1542 = vmatprep.subr.mxu0 %v872
    %1543 = vmatpush1.msra.mxu0 %v871
    %1544 = vmatprep.subr.mxu0 %v866
    %1545 = vmatpush1.msra.mxu0 %v865
    %1546 = vmatprep.subr.mxu0 %v860
    %1547 = vmatpush1.msra.mxu0 %v859
    %1548 = vmatprep.subr.mxu0 %v854
    %1549 = vmatpush1.msra.mxu0 %v853
    %1550 = vmatprep.subr.mxu0 %v848
    %1551 = vmatpush1.msra.mxu0 %v847
    %1552 = vmatprep.subr.mxu0 %v842
    %1553 = vmatpush1.msra.mxu0 %v841
    %1554 = vmatprep.subr.mxu0 %v836
    %1555 = vmatpush1.msra.mxu0 %v835
    %1556 = vmatprep.subr.mxu0 %v830
    %1557 = vmatpush1.msra.mxu0 %v829
    %1558 = vmatprep.subr.mxu0 %v824
    %1559 = vmatpush1.msra.mxu0 %v823
    %1560 = vmatprep.subr.mxu0 %v818
    %1561 = vmatpush1.msra.mxu0 %v817
    %1562 = vmatprep.subr.mxu0 %v812
    %1563 = vmatpush1.msra.mxu0 %v811
    %1564 = vmatprep.subr.mxu0 %v806
    %1565 = vmatpush1.msra.mxu0 %v805
    %1566 = vmatprep.subr.mxu0 %v800
    %1567 = vmatpush1.msra.mxu0 %v799
    %1568 = vmatprep.subr.mxu0 %v794
    %1569 = vmatpush1.msra.mxu0 %v793
    %1570 = vmatprep.subr.mxu0 %v788
    %1571 = vmatpush1.msra.mxu0 %v787
    %1572 = vmatprep.subr.mxu0 %v974
    %1573 = vmatpush2.msra.mxu0 %v973
    %1574 = vmatprep.subr.mxu0 %v968
    %1575 = vmatpush2.msra.mxu0 %v967
    %1576 = vmatprep.subr.mxu0 %v962
    %1577 = vmatpush2.msra.mxu0 %v961
    %1578 = vmatprep.subr.mxu0 %v956
    %1579 = vmatpush2.msra.mxu0 %v955
    %1580 = vmatprep.subr.mxu0 %v950
    %1581 = vmatpush2.msra.mxu0 %v949
    %1582 = vmatprep.subr.mxu0 %v944
    %1583 = vmatpush2.msra.mxu0 %v943
    %1584 = vmatprep.subr.mxu0 %v938
    %1585 = vmatpush2.msra.mxu0 %v937
    %1586 = vmatprep.subr.mxu0 %v932
    %1587 = vmatpush2.msra.mxu0 %v931
    %1588 = vmatprep.subr.mxu0 %v926
    %1589 = vmatpush2.msra.mxu0 %v925
    %1590 = vmatprep.subr.mxu0 %v920
    %1591 = vmatpush2.msra.mxu0 %v919
    %1592 = vmatprep.subr.mxu0 %v914
    %1593 = vmatpush2.msra.mxu0 %v913
    %1594 = vmatprep.subr.mxu0 %v908
    %1595 = vmatpush2.msra.mxu0 %v907
    %1596 = vmatprep.subr.mxu0 %v902
    %1597 = vmatpush2.msra.mxu0 %v901
    %1598 = vmatprep.subr.mxu0 %v896
    %1599 = vmatpush2.msra.mxu0 %v895
    %1600 = vmatprep.subr.mxu0 %v890
    %1601 = vmatpush2.msra.mxu0 %v889
    %1602 = vmatprep.subr.mxu0 %v884
    %1603 = vmatpush2.msra.mxu0 %v883
    %1604 = vmatprep.mubr.f32.mxu0 %v1533
    %1605 = vmatmul.mubr.f32.gmra.mxu0 %v1532
    %v1606 = vpop.f32.mrf.mxu0
    %v1607 = vadd.f32 0.0, %v1606
    %v1608 = vpop.f32.mrf.mxu0
    %v1609 = vadd.f32 0.0, %v1608
    %1610 = vdwg.mxu0
    %1611 = vmatprep.subr.mxu0 %v880
    %1612 = vmatpush1.msra.mxu0 %v879
    %1613 = vmatprep.subr.mxu0 %v874
    %1614 = vmatpush1.msra.mxu0 %v873
    %1615 = vmatprep.subr.mxu0 %v868
    %1616 = vmatpush1.msra.mxu0 %v867
    %1617 = vmatprep.subr.mxu0 %v862
    %1618 = vmatpush1.msra.mxu0 %v861
    %1619 = vmatprep.subr.mxu0 %v856
    %1620 = vmatpush1.msra.mxu0 %v855
    %1621 = vmatprep.subr.mxu0 %v850
    %1622 = vmatpush1.msra.mxu0 %v849
    %1623 = vmatprep.subr.mxu0 %v844
    %1624 = vmatpush1.msra.mxu0 %v843
    %1625 = vmatprep.subr.mxu0 %v838
    %1626 = vmatpush1.msra.mxu0 %v837
    %1627 = vmatprep.subr.mxu0 %v832
    %1628 = vmatpush1.msra.mxu0 %v831
    %1629 = vmatprep.subr.mxu0 %v826
    %1630 = vmatpush1.msra.mxu0 %v825
    %1631 = vmatprep.subr.mxu0 %v820
    %1632 = vmatpush1.msra.mxu0 %v819
    %1633 = vmatprep.subr.mxu0 %v814
    %1634 = vmatpush1.msra.mxu0 %v813
    %1635 = vmatprep.subr.mxu0 %v808
    %1636 = vmatpush1.msra.mxu0 %v807
    %1637 = vmatprep.subr.mxu0 %v802
    %1638 = vmatpush1.msra.mxu0 %v801
    %1639 = vmatprep.subr.mxu0 %v796
    %1640 = vmatpush1.msra.mxu0 %v795
    %1641 = vmatprep.subr.mxu0 %v790
    %1642 = vmatpush1.msra.mxu0 %v789
    %1643 = vmatprep.subr.mxu0 %v976
    %1644 = vmatpush2.msra.mxu0 %v975
    %1645 = vmatprep.subr.mxu0 %v970
    %1646 = vmatpush2.msra.mxu0 %v969
    %1647 = vmatprep.subr.mxu0 %v964
    %1648 = vmatpush2.msra.mxu0 %v963
    %1649 = vmatprep.subr.mxu0 %v958
    %1650 = vmatpush2.msra.mxu0 %v957
    %1651 = vmatprep.subr.mxu0 %v952
    %1652 = vmatpush2.msra.mxu0 %v951
    %1653 = vmatprep.subr.mxu0 %v946
    %1654 = vmatpush2.msra.mxu0 %v945
    %1655 = vmatprep.subr.mxu0 %v940
    %1656 = vmatpush2.msra.mxu0 %v939
    %1657 = vmatprep.subr.mxu0 %v934
    %1658 = vmatpush2.msra.mxu0 %v933
    %1659 = vmatprep.subr.mxu0 %v928
    %1660 = vmatpush2.msra.mxu0 %v927
    %1661 = vmatprep.subr.mxu0 %v922
    %1662 = vmatpush2.msra.mxu0 %v921
    %1663 = vmatprep.subr.mxu0 %v916
    %1664 = vmatpush2.msra.mxu0 %v915
    %1665 = vmatprep.subr.mxu0 %v910
    %1666 = vmatpush2.msra.mxu0 %v909
    %1667 = vmatprep.subr.mxu0 %v904
    %1668 = vmatpush2.msra.mxu0 %v903
    %1669 = vmatprep.subr.mxu0 %v898
    %1670 = vmatpush2.msra.mxu0 %v897
    %1671 = vmatprep.subr.mxu0 %v892
    %1672 = vmatpush2.msra.mxu0 %v891
    %1673 = vmatprep.subr.mxu0 %v886
    %1674 = vmatpush2.msra.mxu0 %v885
    %1675 = vmatprep.mubr.f32.mxu0 %v1533
    %1676 = vmatmul.mubr.f32.gmra.mxu0 %v1532
    %v1677 = vpop.f32.mrf.mxu0
    %v1678 = vadd.f32 0.0, %v1677
    %v1679 = vpop.f32.mrf.mxu0
    %v1680 = vadd.f32 0.0, %v1679
    %1681 = vdwg.mxu0
    %1682 = vmatprep.subr.mxu0 %v882
    %1683 = vmatpush1.msra.mxu0 %v881
    %1684 = vmatprep.subr.mxu0 %v876
    %1685 = vmatpush1.msra.mxu0 %v875
    %1686 = vmatprep.subr.mxu0 %v870
    %1687 = vmatpush1.msra.mxu0 %v869
    %1688 = vmatprep.subr.mxu0 %v864
    %1689 = vmatpush1.msra.mxu0 %v863
    %1690 = vmatprep.subr.mxu0 %v858
    %1691 = vmatpush1.msra.mxu0 %v857
    %1692 = vmatprep.subr.mxu0 %v852
    %1693 = vmatpush1.msra.mxu0 %v851
    %1694 = vmatprep.subr.mxu0 %v846
    %1695 = vmatpush1.msra.mxu0 %v845
    %1696 = vmatprep.subr.mxu0 %v840
    %1697 = vmatpush1.msra.mxu0 %v839
    %1698 = vmatprep.subr.mxu0 %v834
    %1699 = vmatpush1.msra.mxu0 %v833
    %1700 = vmatprep.subr.mxu0 %v828
    %1701 = vmatpush1.msra.mxu0 %v827
    %1702 = vmatprep.subr.mxu0 %v822
    %1703 = vmatpush1.msra.mxu0 %v821
    %1704 = vmatprep.subr.mxu0 %v816
    %1705 = vmatpush1.msra.mxu0 %v815
    %1706 = vmatprep.subr.mxu0 %v810
    %1707 = vmatpush1.msra.mxu0 %v809
    %1708 = vmatprep.subr.mxu0 %v804
    %1709 = vmatpush1.msra.mxu0 %v803
    %1710 = vmatprep.subr.mxu0 %v798
    %1711 = vmatpush1.msra.mxu0 %v797
    %1712 = vmatprep.subr.mxu0 %v792
    %1713 = vmatpush1.msra.mxu0 %v791
    %1714 = vmatprep.subr.mxu0 %v978
    %1715 = vmatpush2.msra.mxu0 %v977
    %1716 = vmatprep.subr.mxu0 %v972
    %1717 = vmatpush2.msra.mxu0 %v971
    %1718 = vmatprep.subr.mxu0 %v966
    %1719 = vmatpush2.msra.mxu0 %v965
    %1720 = vmatprep.subr.mxu0 %v960
    %1721 = vmatpush2.msra.mxu0 %v959
    %1722 = vmatprep.subr.mxu0 %v954
    %1723 = vmatpush2.msra.mxu0 %v953
    %1724 = vmatprep.subr.mxu0 %v948
    %1725 = vmatpush2.msra.mxu0 %v947
    %1726 = vmatprep.subr.mxu0 %v942
    %1727 = vmatpush2.msra.mxu0 %v941
    %1728 = vmatprep.subr.mxu0 %v936
    %1729 = vmatpush2.msra.mxu0 %v935
    %1730 = vmatprep.subr.mxu0 %v930
    %1731 = vmatpush2.msra.mxu0 %v929
    %1732 = vmatprep.subr.mxu0 %v924
    %1733 = vmatpush2.msra.mxu0 %v923
    %1734 = vmatprep.subr.mxu0 %v918
    %1735 = vmatpush2.msra.mxu0 %v917
    %1736 = vmatprep.subr.mxu0 %v912
    %1737 = vmatpush2.msra.mxu0 %v911
    %1738 = vmatprep.subr.mxu0 %v906
    %1739 = vmatpush2.msra.mxu0 %v905
    %1740 = vmatprep.subr.mxu0 %v900
    %1741 = vmatpush2.msra.mxu0 %v899
    %1742 = vmatprep.subr.mxu0 %v894
    %1743 = vmatpush2.msra.mxu0 %v893
    %1744 = vmatprep.subr.mxu0 %v888
    %1745 = vmatpush2.msra.mxu0 %v887
    %1746 = vmatprep.mubr.f32.mxu0 %v1533
    %1747 = vmatmul.mubr.f32.gmra.mxu0 %v1532
    %v1748 = vpop.f32.mrf.mxu0
    %v1749 = vadd.f32 0.0, %v1748
    %v1750 = vpop.f32.mrf.mxu0
    %v1751 = vadd.f32 0.0, %v1750
    %1752 = vdwg.mxu0
    %v1753 = vadd.f32 %v1534, %v1607
    %v1754 = vadd.f32 %v1535, %v1609
    %v1755 = vxor.u32 %v1753, 2147483648
    %v1756 = vxor.u32 %v1754, 2147483648
    %v1757 = vmul.f32 %v1755, 1.442695
    %v1758 = vpow.pop %v1757
    %v1759 = vmul.f32 %v1756, 1.442695
    %v1760 = vpow.pop %v1759
    %v1761 = vadd.f32 %v1758, 1.0
    %v1762 = vadd.f32 %v1760, 1.0
    %v1763 = vrcp.pop %v1761
    %v1764 = vmul.f32 1.0, %v1763
    %v1765 = vrcp.pop %v1762
    %v1766 = vmul.f32 1.0, %v1765
    %v1767 = vadd.f32 %v1536, %v1678
    %v1768 = vadd.f32 %v1537, %v1680
    %v1769 = vxor.u32 %v1767, 2147483648
    %v1770 = vxor.u32 %v1768, 2147483648
    %v1771 = vmul.f32 %v1769, 1.442695
    %v1772 = vpow.pop %v1771
    %v1773 = vmul.f32 %v1770, 1.442695
    %v1774 = vpow.pop %v1773
    %v1775 = vadd.f32 %v1772, 1.0
    %v1776 = vadd.f32 %v1774, 1.0
    %v1777 = vrcp.pop %v1775
    %v1778 = vmul.f32 1.0, %v1777
    %v1779 = vrcp.pop %v1776
    %v1780 = vmul.f32 1.0, %v1779
    %v1781 = vadd.f32 %v1749, %v1232
    %v1782 = vadd.f32 %v1751, %v1236
    %v1783 = vmul.f32 %v1764, %v1781
    %v1784 = vmul.f32 %v1766, %v1782
    %v1785 = vadd.f32 %v1538, %v1783
    %v1786 = vadd.f32 %v1539, %v1784
    %v1787 = vtanh.pop %v1785
    %v1788 = vtanh.pop %v1786
    %v1789 = vsub.f32 1.0, %v1778
    %v1790 = vsub.f32 1.0, %v1780
    %v1791 = vmul.f32 %v1789, %v1787
    %v1792 = vmul.f32 %v1790, %v1788
    %v1793 = vmul.f32 %v1778, %v1532
    %v1794 = vmul.f32 %v1780, %v1533
    %v1795 = vadd.f32 %v1791, %v1793
    %v1796 = vadd.f32 %v1792, %v1794
    %vm1797 = vcmp.gt.s32.totalorder %v980, 2
    %v1798 = vsel %vm1797, 1, 0
    %1799 = vset.pattern.permute.xlu0 0
    %1800 = vperm.xlu0 %1799, %v1798
    %v1801 = vpop.permute.xlu0 %1800
    %vm1802 = vcmp.eq.s32.totalorder %v1801, 1
    %v1803 = vsel %vm1802, %v1795, %v1532
    %v1804 = vsel %vm1802, %v1796, %v1533
    %v1805 = vld [vmem:[#allocation2 + $0x90] sm:$0xff]
    %v1806 = vld [vmem:[#allocation2 + $0x98] sm:$0xff]
    %v1807 = vld [vmem:[#allocation2 + $0xa0] sm:$0xff]
    %v1808 = vld [vmem:[#allocation2 + $0xa8] sm:$0xff]
    %v1809 = vld [vmem:[#allocation2 + $0xb0] sm:$0xff]
    %v1810 = vld [vmem:[#allocation2 + $0xb8] sm:$0xff]
    %1811 = vmatprep.subr.mxu0 %v878
    %1812 = vmatpush1.msra.mxu0 %v877
    %1813 = vmatprep.subr.mxu0 %v872
    %1814 = vmatpush1.msra.mxu0 %v871
    %1815 = vmatprep.subr.mxu0 %v866
    %1816 = vmatpush1.msra.mxu0 %v865
    %1817 = vmatprep.subr.mxu0 %v860
    %1818 = vmatpush1.msra.mxu0 %v859
    %1819 = vmatprep.subr.mxu0 %v854
    %1820 = vmatpush1.msra.mxu0 %v853
    %1821 = vmatprep.subr.mxu0 %v848
    %1822 = vmatpush1.msra.mxu0 %v847
    %1823 = vmatprep.subr.mxu0 %v842
    %1824 = vmatpush1.msra.mxu0 %v841
    %1825 = vmatprep.subr.mxu0 %v836
    %1826 = vmatpush1.msra.mxu0 %v835
    %1827 = vmatprep.subr.mxu0 %v830
    %1828 = vmatpush1.msra.mxu0 %v829
    %1829 = vmatprep.subr.mxu0 %v824
    %1830 = vmatpush1.msra.mxu0 %v823
    %1831 = vmatprep.subr.mxu0 %v818
    %1832 = vmatpush1.msra.mxu0 %v817
    %1833 = vmatprep.subr.mxu0 %v812
    %1834 = vmatpush1.msra.mxu0 %v811
    %1835 = vmatprep.subr.mxu0 %v806
    %1836 = vmatpush1.msra.mxu0 %v805
    %1837 = vmatprep.subr.mxu0 %v800
    %1838 = vmatpush1.msra.mxu0 %v799
    %1839 = vmatprep.subr.mxu0 %v794
    %1840 = vmatpush1.msra.mxu0 %v793
    %1841 = vmatprep.subr.mxu0 %v788
    %1842 = vmatpush1.msra.mxu0 %v787
    %1843 = vmatprep.subr.mxu0 %v974
    %1844 = vmatpush2.msra.mxu0 %v973
    %1845 = vmatprep.subr.mxu0 %v968
    %1846 = vmatpush2.msra.mxu0 %v967
    %1847 = vmatprep.subr.mxu0 %v962
    %1848 = vmatpush2.msra.mxu0 %v961
    %1849 = vmatprep.subr.mxu0 %v956
    %1850 = vmatpush2.msra.mxu0 %v955
    %1851 = vmatprep.subr.mxu0 %v950
    %1852 = vmatpush2.msra.mxu0 %v949
    %1853 = vmatprep.subr.mxu0 %v944
    %1854 = vmatpush2.msra.mxu0 %v943
    %1855 = vmatprep.subr.mxu0 %v938
    %1856 = vmatpush2.msra.mxu0 %v937
    %1857 = vmatprep.subr.mxu0 %v932
    %1858 = vmatpush2.msra.mxu0 %v931
    %1859 = vmatprep.subr.mxu0 %v926
    %1860 = vmatpush2.msra.mxu0 %v925
    %1861 = vmatprep.subr.mxu0 %v920
    %1862 = vmatpush2.msra.mxu0 %v919
    %1863 = vmatprep.subr.mxu0 %v914
    %1864 = vmatpush2.msra.mxu0 %v913
    %1865 = vmatprep.subr.mxu0 %v908
    %1866 = vmatpush2.msra.mxu0 %v907
    %1867 = vmatprep.subr.mxu0 %v902
    %1868 = vmatpush2.msra.mxu0 %v901
    %1869 = vmatprep.subr.mxu0 %v896
    %1870 = vmatpush2.msra.mxu0 %v895
    %1871 = vmatprep.subr.mxu0 %v890
    %1872 = vmatpush2.msra.mxu0 %v889
    %1873 = vmatprep.subr.mxu0 %v884
    %1874 = vmatpush2.msra.mxu0 %v883
    %1875 = vmatprep.mubr.f32.mxu0 %v1804
    %1876 = vmatmul.mubr.f32.gmra.mxu0 %v1803
    %v1877 = vpop.f32.mrf.mxu0
    %v1878 = vadd.f32 0.0, %v1877
    %v1879 = vpop.f32.mrf.mxu0
    %v1880 = vadd.f32 0.0, %v1879
    %1881 = vdwg.mxu0
    %1882 = vmatprep.subr.mxu0 %v880
    %1883 = vmatpush1.msra.mxu0 %v879
    %1884 = vmatprep.subr.mxu0 %v874
    %1885 = vmatpush1.msra.mxu0 %v873
    %1886 = vmatprep.subr.mxu0 %v868
    %1887 = vmatpush1.msra.mxu0 %v867
    %1888 = vmatprep.subr.mxu0 %v862
    %1889 = vmatpush1.msra.mxu0 %v861
    %1890 = vmatprep.subr.mxu0 %v856
    %1891 = vmatpush1.msra.mxu0 %v855
    %1892 = vmatprep.subr.mxu0 %v850
    %1893 = vmatpush1.msra.mxu0 %v849
    %1894 = vmatprep.subr.mxu0 %v844
    %1895 = vmatpush1.msra.mxu0 %v843
    %1896 = vmatprep.subr.mxu0 %v838
    %1897 = vmatpush1.msra.mxu0 %v837
    %1898 = vmatprep.subr.mxu0 %v832
    %1899 = vmatpush1.msra.mxu0 %v831
    %1900 = vmatprep.subr.mxu0 %v826
    %1901 = vmatpush1.msra.mxu0 %v825
    %1902 = vmatprep.subr.mxu0 %v820
    %1903 = vmatpush1.msra.mxu0 %v819
    %1904 = vmatprep.subr.mxu0 %v814
    %1905 = vmatpush1.msra.mxu0 %v813
    %1906 = vmatprep.subr.mxu0 %v808
    %1907 = vmatpush1.msra.mxu0 %v807
    %1908 = vmatprep.subr.mxu0 %v802
    %1909 = vmatpush1.msra.mxu0 %v801
    %1910 = vmatprep.subr.mxu0 %v796
    %1911 = vmatpush1.msra.mxu0 %v795
    %1912 = vmatprep.subr.mxu0 %v790
    %1913 = vmatpush1.msra.mxu0 %v789
    %1914 = vmatprep.subr.mxu0 %v976
    %1915 = vmatpush2.msra.mxu0 %v975
    %1916 = vmatprep.subr.mxu0 %v970
    %1917 = vmatpush2.msra.mxu0 %v969
    %1918 = vmatprep.subr.mxu0 %v964
    %1919 = vmatpush2.msra.mxu0 %v963
    %1920 = vmatprep.subr.mxu0 %v958
    %1921 = vmatpush2.msra.mxu0 %v957
    %1922 = vmatprep.subr.mxu0 %v952
    %1923 = vmatpush2.msra.mxu0 %v951
    %1924 = vmatprep.subr.mxu0 %v946
    %1925 = vmatpush2.msra.mxu0 %v945
    %1926 = vmatprep.subr.mxu0 %v940
    %1927 = vmatpush2.msra.mxu0 %v939
    %1928 = vmatprep.subr.mxu0 %v934
    %1929 = vmatpush2.msra.mxu0 %v933
    %1930 = vmatprep.subr.mxu0 %v928
    %1931 = vmatpush2.msra.mxu0 %v927
    %1932 = vmatprep.subr.mxu0 %v922
    %1933 = vmatpush2.msra.mxu0 %v921
    %1934 = vmatprep.subr.mxu0 %v916
    %1935 = vmatpush2.msra.mxu0 %v915
    %1936 = vmatprep.subr.mxu0 %v910
    %1937 = vmatpush2.msra.mxu0 %v909
    %1938 = vmatprep.subr.mxu0 %v904
    %1939 = vmatpush2.msra.mxu0 %v903
    %1940 = vmatprep.subr.mxu0 %v898
    %1941 = vmatpush2.msra.mxu0 %v897
    %1942 = vmatprep.subr.mxu0 %v892
    %1943 = vmatpush2.msra.mxu0 %v891
    %1944 = vmatprep.subr.mxu0 %v886
    %1945 = vmatpush2.msra.mxu0 %v885
    %1946 = vmatprep.mubr.f32.mxu0 %v1804
    %1947 = vmatmul.mubr.f32.gmra.mxu0 %v1803
    %v1948 = vpop.f32.mrf.mxu0
    %v1949 = vadd.f32 0.0, %v1948
    %v1950 = vpop.f32.mrf.mxu0
    %v1951 = vadd.f32 0.0, %v1950
    %1952 = vdwg.mxu0
    %1953 = vmatprep.subr.mxu0 %v882
    %1954 = vmatpush1.msra.mxu0 %v881
    %1955 = vmatprep.subr.mxu0 %v876
    %1956 = vmatpush1.msra.mxu0 %v875
    %1957 = vmatprep.subr.mxu0 %v870
    %1958 = vmatpush1.msra.mxu0 %v869
    %1959 = vmatprep.subr.mxu0 %v864
    %1960 = vmatpush1.msra.mxu0 %v863
    %1961 = vmatprep.subr.mxu0 %v858
    %1962 = vmatpush1.msra.mxu0 %v857
    %1963 = vmatprep.subr.mxu0 %v852
    %1964 = vmatpush1.msra.mxu0 %v851
    %1965 = vmatprep.subr.mxu0 %v846
    %1966 = vmatpush1.msra.mxu0 %v845
    %1967 = vmatprep.subr.mxu0 %v840
    %1968 = vmatpush1.msra.mxu0 %v839
    %1969 = vmatprep.subr.mxu0 %v834
    %1970 = vmatpush1.msra.mxu0 %v833
    %1971 = vmatprep.subr.mxu0 %v828
    %1972 = vmatpush1.msra.mxu0 %v827
    %1973 = vmatprep.subr.mxu0 %v822
    %1974 = vmatpush1.msra.mxu0 %v821
    %1975 = vmatprep.subr.mxu0 %v816
    %1976 = vmatpush1.msra.mxu0 %v815
    %1977 = vmatprep.subr.mxu0 %v810
    %1978 = vmatpush1.msra.mxu0 %v809
    %1979 = vmatprep.subr.mxu0 %v804
    %1980 = vmatpush1.msra.mxu0 %v803
    %1981 = vmatprep.subr.mxu0 %v798
    %1982 = vmatpush1.msra.mxu0 %v797
    %1983 = vmatprep.subr.mxu0 %v792
    %1984 = vmatpush1.msra.mxu0 %v791
    %1985 = vmatprep.subr.mxu0 %v978
    %1986 = vmatpush2.msra.mxu0 %v977
    %1987 = vmatprep.subr.mxu0 %v972
    %1988 = vmatpush2.msra.mxu0 %v971
    %1989 = vmatprep.subr.mxu0 %v966
    %1990 = vmatpush2.msra.mxu0 %v965
    %1991 = vmatprep.subr.mxu0 %v960
    %1992 = vmatpush2.msra.mxu0 %v959
    %1993 = vmatprep.subr.mxu0 %v954
    %1994 = vmatpush2.msra.mxu0 %v953
    %1995 = vmatprep.subr.mxu0 %v948
    %1996 = vmatpush2.msra.mxu0 %v947
    %1997 = vmatprep.subr.mxu0 %v942
    %1998 = vmatpush2.msra.mxu0 %v941
    %1999 = vmatprep.subr.mxu0 %v936
    %2000 = vmatpush2.msra.mxu0 %v935
    %2001 = vmatprep.subr.mxu0 %v930
    %2002 = vmatpush2.msra.mxu0 %v929
    %2003 = vmatprep.subr.mxu0 %v924
    %2004 = vmatpush2.msra.mxu0 %v923
    %2005 = vmatprep.subr.mxu0 %v918
    %2006 = vmatpush2.msra.mxu0 %v917
    %2007 = vmatprep.subr.mxu0 %v912
    %2008 = vmatpush2.msra.mxu0 %v911
    %2009 = vmatprep.subr.mxu0 %v906
    %2010 = vmatpush2.msra.mxu0 %v905
    %2011 = vmatprep.subr.mxu0 %v900
    %2012 = vmatpush2.msra.mxu0 %v899
    %2013 = vmatprep.subr.mxu0 %v894
    %2014 = vmatpush2.msra.mxu0 %v893
    %2015 = vmatprep.subr.mxu0 %v888
    %2016 = vmatpush2.msra.mxu0 %v887
    %2017 = vmatprep.mubr.f32.mxu0 %v1804
    %2018 = vmatmul.mubr.f32.gmra.mxu0 %v1803
    %v2019 = vpop.f32.mrf.mxu0
    %v2020 = vadd.f32 0.0, %v2019
    %v2021 = vpop.f32.mrf.mxu0
    %v2022 = vadd.f32 0.0, %v2021
    %2023 = vdwg.mxu0
    %v2024 = vadd.f32 %v1805, %v1878
    %v2025 = vadd.f32 %v1806, %v1880
    %v2026 = vxor.u32 %v2024, 2147483648
    %v2027 = vxor.u32 %v2025, 2147483648
    %v2028 = vmul.f32 %v2026, 1.442695
    %v2029 = vpow.pop %v2028
    %v2030 = vmul.f32 %v2027, 1.442695
    %v2031 = vpow.pop %v2030
    %v2032 = vadd.f32 %v2029, 1.0
    %v2033 = vadd.f32 %v2031, 1.0
    %v2034 = vrcp.pop %v2032
    %v2035 = vmul.f32 1.0, %v2034
    %v2036 = vrcp.pop %v2033
    %v2037 = vmul.f32 1.0, %v2036
    %v2038 = vadd.f32 %v1807, %v1949
    %v2039 = vadd.f32 %v1808, %v1951
    %v2040 = vxor.u32 %v2038, 2147483648
    %v2041 = vxor.u32 %v2039, 2147483648
    %v2042 = vmul.f32 %v2040, 1.442695
    %v2043 = vpow.pop %v2042
    %v2044 = vmul.f32 %v2041, 1.442695
    %v2045 = vpow.pop %v2044
    %v2046 = vadd.f32 %v2043, 1.0
    %v2047 = vadd.f32 %v2045, 1.0
    %v2048 = vrcp.pop %v2046
    %v2049 = vmul.f32 1.0, %v2048
    %v2050 = vrcp.pop %v2047
    %v2051 = vmul.f32 1.0, %v2050
    %v2052 = vadd.f32 %v2020, %v1232
    %v2053 = vadd.f32 %v2022, %v1236
    %v2054 = vmul.f32 %v2035, %v2052
    %v2055 = vmul.f32 %v2037, %v2053
    %v2056 = vadd.f32 %v1809, %v2054
    %v2057 = vadd.f32 %v1810, %v2055
    %v2058 = vtanh.pop %v2056
    %v2059 = vtanh.pop %v2057
    %v2060 = vsub.f32 1.0, %v2049
    %v2061 = vsub.f32 1.0, %v2051
    %v2062 = vmul.f32 %v2060, %v2058
    %v2063 = vmul.f32 %v2061, %v2059
    %v2064 = vmul.f32 %v2049, %v1803
    %v2065 = vmul.f32 %v2051, %v1804
    %v2066 = vadd.f32 %v2062, %v2064
    %v2067 = vadd.f32 %v2063, %v2065
    %vm2068 = vcmp.gt.s32.totalorder %v980, 3
    %v2069 = vsel %vm2068, 1, 0
    %2070 = vset.pattern.permute.xlu0 0
    %2071 = vperm.xlu0 %2070, %v2069
    %v2072 = vpop.permute.xlu0 %2071
    %vm2073 = vcmp.eq.s32.totalorder %v2072, 1
    %v2074 = vsel %vm2073, %v2066, %v1803
    %v2075 = vsel %vm2073, %v2067, %v1804
    %v2076 = vld [vmem:[#allocation2 + $0xc0] sm:$0xff]
    %v2077 = vld [vmem:[#allocation2 + $0xc8] sm:$0xff]
    %v2078 = vld [vmem:[#allocation2 + $0xd0] sm:$0xff]
    %v2079 = vld [vmem:[#allocation2 + $0xd8] sm:$0xff]
    %v2080 = vld [vmem:[#allocation2 + $0xe0] sm:$0xff]
    %v2081 = vld [vmem:[#allocation2 + $0xe8] sm:$0xff]
    %2082 = vmatprep.subr.mxu0 %v878
    %2083 = vmatpush1.msra.mxu0 %v877
    %2084 = vmatprep.subr.mxu0 %v872
    %2085 = vmatpush1.msra.mxu0 %v871
    %2086 = vmatprep.subr.mxu0 %v866
    %2087 = vmatpush1.msra.mxu0 %v865
    %2088 = vmatprep.subr.mxu0 %v860
    %2089 = vmatpush1.msra.mxu0 %v859
    %2090 = vmatprep.subr.mxu0 %v854
    %2091 = vmatpush1.msra.mxu0 %v853
    %2092 = vmatprep.subr.mxu0 %v848
    %2093 = vmatpush1.msra.mxu0 %v847
    %2094 = vmatprep.subr.mxu0 %v842
    %2095 = vmatpush1.msra.mxu0 %v841
    %2096 = vmatprep.subr.mxu0 %v836
    %2097 = vmatpush1.msra.mxu0 %v835
    %2098 = vmatprep.subr.mxu0 %v830
    %2099 = vmatpush1.msra.mxu0 %v829
    %2100 = vmatprep.subr.mxu0 %v824
    %2101 = vmatpush1.msra.mxu0 %v823
    %2102 = vmatprep.subr.mxu0 %v818
    %2103 = vmatpush1.msra.mxu0 %v817
    %2104 = vmatprep.subr.mxu0 %v812
    %2105 = vmatpush1.msra.mxu0 %v811
    %2106 = vmatprep.subr.mxu0 %v806
    %2107 = vmatpush1.msra.mxu0 %v805
    %2108 = vmatprep.subr.mxu0 %v800
    %2109 = vmatpush1.msra.mxu0 %v799
    %2110 = vmatprep.subr.mxu0 %v794
    %2111 = vmatpush1.msra.mxu0 %v793
    %2112 = vmatprep.subr.mxu0 %v788
    %2113 = vmatpush1.msra.mxu0 %v787
    %2114 = vmatprep.subr.mxu0 %v974
    %2115 = vmatpush2.msra.mxu0 %v973
    %2116 = vmatprep.subr.mxu0 %v968
    %2117 = vmatpush2.msra.mxu0 %v967
    %2118 = vmatprep.subr.mxu0 %v962
    %2119 = vmatpush2.msra.mxu0 %v961
    %2120 = vmatprep.subr.mxu0 %v956
    %2121 = vmatpush2.msra.mxu0 %v955
    %2122 = vmatprep.subr.mxu0 %v950
    %2123 = vmatpush2.msra.mxu0 %v949
    %2124 = vmatprep.subr.mxu0 %v944
    %2125 = vmatpush2.msra.mxu0 %v943
    %2126 = vmatprep.subr.mxu0 %v938
    %2127 = vmatpush2.msra.mxu0 %v937
    %2128 = vmatprep.subr.mxu0 %v932
    %2129 = vmatpush2.msra.mxu0 %v931
    %2130 = vmatprep.subr.mxu0 %v926
    %2131 = vmatpush2.msra.mxu0 %v925
    %2132 = vmatprep.subr.mxu0 %v920
    %2133 = vmatpush2.msra.mxu0 %v919
    %2134 = vmatprep.subr.mxu0 %v914
    %2135 = vmatpush2.msra.mxu0 %v913
    %2136 = vmatprep.subr.mxu0 %v908
    %2137 = vmatpush2.msra.mxu0 %v907
    %2138 = vmatprep.subr.mxu0 %v902
    %2139 = vmatpush2.msra.mxu0 %v901
    %2140 = vmatprep.subr.mxu0 %v896
    %2141 = vmatpush2.msra.mxu0 %v895
    %2142 = vmatprep.subr.mxu0 %v890
    %2143 = vmatpush2.msra.mxu0 %v889
    %2144 = vmatprep.subr.mxu0 %v884
    %2145 = vmatpush2.msra.mxu0 %v883
    %2146 = vmatprep.mubr.f32.mxu0 %v2075
    %2147 = vmatmul.mubr.f32.gmra.mxu0 %v2074
    %v2148 = vpop.f32.mrf.mxu0
    %v2149 = vadd.f32 0.0, %v2148
    %v2150 = vpop.f32.mrf.mxu0
    %v2151 = vadd.f32 0.0, %v2150
    %2152 = vdwg.mxu0
    %2153 = vmatprep.subr.mxu0 %v880
    %2154 = vmatpush1.msra.mxu0 %v879
    %2155 = vmatprep.subr.mxu0 %v874
    %2156 = vmatpush1.msra.mxu0 %v873
    %2157 = vmatprep.subr.mxu0 %v868
    %2158 = vmatpush1.msra.mxu0 %v867
    %2159 = vmatprep.subr.mxu0 %v862
    %2160 = vmatpush1.msra.mxu0 %v861
    %2161 = vmatprep.subr.mxu0 %v856
    %2162 = vmatpush1.msra.mxu0 %v855
    %2163 = vmatprep.subr.mxu0 %v850
    %2164 = vmatpush1.msra.mxu0 %v849
    %2165 = vmatprep.subr.mxu0 %v844
    %2166 = vmatpush1.msra.mxu0 %v843
    %2167 = vmatprep.subr.mxu0 %v838
    %2168 = vmatpush1.msra.mxu0 %v837
    %2169 = vmatprep.subr.mxu0 %v832
    %2170 = vmatpush1.msra.mxu0 %v831
    %2171 = vmatprep.subr.mxu0 %v826
    %2172 = vmatpush1.msra.mxu0 %v825
    %2173 = vmatprep.subr.mxu0 %v820
    %2174 = vmatpush1.msra.mxu0 %v819
    %2175 = vmatprep.subr.mxu0 %v814
    %2176 = vmatpush1.msra.mxu0 %v813
    %2177 = vmatprep.subr.mxu0 %v808
    %2178 = vmatpush1.msra.mxu0 %v807
    %2179 = vmatprep.subr.mxu0 %v802
    %2180 = vmatpush1.msra.mxu0 %v801
    %2181 = vmatprep.subr.mxu0 %v796
    %2182 = vmatpush1.msra.mxu0 %v795
    %2183 = vmatprep.subr.mxu0 %v790
    %2184 = vmatpush1.msra.mxu0 %v789
    %2185 = vmatprep.subr.mxu0 %v976
    %2186 = vmatpush2.msra.mxu0 %v975
    %2187 = vmatprep.subr.mxu0 %v970
    %2188 = vmatpush2.msra.mxu0 %v969
    %2189 = vmatprep.subr.mxu0 %v964
    %2190 = vmatpush2.msra.mxu0 %v963
    %2191 = vmatprep.subr.mxu0 %v958
    %2192 = vmatpush2.msra.mxu0 %v957
    %2193 = vmatprep.subr.mxu0 %v952
    %2194 = vmatpush2.msra.mxu0 %v951
    %2195 = vmatprep.subr.mxu0 %v946
    %2196 = vmatpush2.msra.mxu0 %v945
    %2197 = vmatprep.subr.mxu0 %v940
    %2198 = vmatpush2.msra.mxu0 %v939
    %2199 = vmatprep.subr.mxu0 %v934
    %2200 = vmatpush2.msra.mxu0 %v933
    %2201 = vmatprep.subr.mxu0 %v928
    %2202 = vmatpush2.msra.mxu0 %v927
    %2203 = vmatprep.subr.mxu0 %v922
    %2204 = vmatpush2.msra.mxu0 %v921
    %2205 = vmatprep.subr.mxu0 %v916
    %2206 = vmatpush2.msra.mxu0 %v915
    %2207 = vmatprep.subr.mxu0 %v910
    %2208 = vmatpush2.msra.mxu0 %v909
    %2209 = vmatprep.subr.mxu0 %v904
    %2210 = vmatpush2.msra.mxu0 %v903
    %2211 = vmatprep.subr.mxu0 %v898
    %2212 = vmatpush2.msra.mxu0 %v897
    %2213 = vmatprep.subr.mxu0 %v892
    %2214 = vmatpush2.msra.mxu0 %v891
    %2215 = vmatprep.subr.mxu0 %v886
    %2216 = vmatpush2.msra.mxu0 %v885
    %2217 = vmatprep.mubr.f32.mxu0 %v2075
    %2218 = vmatmul.mubr.f32.gmra.mxu0 %v2074
    %v2219 = vpop.f32.mrf.mxu0
    %v2220 = vadd.f32 0.0, %v2219
    %v2221 = vpop.f32.mrf.mxu0
    %v2222 = vadd.f32 0.0, %v2221
    %2223 = vdwg.mxu0
    %2224 = vmatprep.subr.mxu0 %v882
    %2225 = vmatpush1.msra.mxu0 %v881
    %2226 = vmatprep.subr.mxu0 %v876
    %2227 = vmatpush1.msra.mxu0 %v875
    %2228 = vmatprep.subr.mxu0 %v870
    %2229 = vmatpush1.msra.mxu0 %v869
    %2230 = vmatprep.subr.mxu0 %v864
    %2231 = vmatpush1.msra.mxu0 %v863
    %2232 = vmatprep.subr.mxu0 %v858
    %2233 = vmatpush1.msra.mxu0 %v857
    %2234 = vmatprep.subr.mxu0 %v852
    %2235 = vmatpush1.msra.mxu0 %v851
    %2236 = vmatprep.subr.mxu0 %v846
    %2237 = vmatpush1.msra.mxu0 %v845
    %2238 = vmatprep.subr.mxu0 %v840
    %2239 = vmatpush1.msra.mxu0 %v839
    %2240 = vmatprep.subr.mxu0 %v834
    %2241 = vmatpush1.msra.mxu0 %v833
    %2242 = vmatprep.subr.mxu0 %v828
    %2243 = vmatpush1.msra.mxu0 %v827
    %2244 = vmatprep.subr.mxu0 %v822
    %2245 = vmatpush1.msra.mxu0 %v821
    %2246 = vmatprep.subr.mxu0 %v816
    %2247 = vmatpush1.msra.mxu0 %v815
    %2248 = vmatprep.subr.mxu0 %v810
    %2249 = vmatpush1.msra.mxu0 %v809
    %2250 = vmatprep.subr.mxu0 %v804
    %2251 = vmatpush1.msra.mxu0 %v803
    %2252 = vmatprep.subr.mxu0 %v798
    %2253 = vmatpush1.msra.mxu0 %v797
    %2254 = vmatprep.subr.mxu0 %v792
    %2255 = vmatpush1.msra.mxu0 %v791
    %2256 = vmatprep.subr.mxu0 %v978
    %2257 = vmatpush2.msra.mxu0 %v977
    %2258 = vmatprep.subr.mxu0 %v972
    %2259 = vmatpush2.msra.mxu0 %v971
    %2260 = vmatprep.subr.mxu0 %v966
    %2261 = vmatpush2.msra.mxu0 %v965
    %2262 = vmatprep.subr.mxu0 %v960
    %2263 = vmatpush2.msra.mxu0 %v959
    %2264 = vmatprep.subr.mxu0 %v954
    %2265 = vmatpush2.msra.mxu0 %v953
    %2266 = vmatprep.subr.mxu0 %v948
    %2267 = vmatpush2.msra.mxu0 %v947
    %2268 = vmatprep.subr.mxu0 %v942
    %2269 = vmatpush2.msra.mxu0 %v941
    %2270 = vmatprep.subr.mxu0 %v936
    %2271 = vmatpush2.msra.mxu0 %v935
    %2272 = vmatprep.subr.mxu0 %v930
    %2273 = vmatpush2.msra.mxu0 %v929
    %2274 = vmatprep.subr.mxu0 %v924
    %2275 = vmatpush2.msra.mxu0 %v923
    %2276 = vmatprep.subr.mxu0 %v918
    %2277 = vmatpush2.msra.mxu0 %v917
    %2278 = vmatprep.subr.mxu0 %v912
    %2279 = vmatpush2.msra.mxu0 %v911
    %2280 = vmatprep.subr.mxu0 %v906
    %2281 = vmatpush2.msra.mxu0 %v905
    %2282 = vmatprep.subr.mxu0 %v900
    %2283 = vmatpush2.msra.mxu0 %v899
    %2284 = vmatprep.subr.mxu0 %v894
    %2285 = vmatpush2.msra.mxu0 %v893
    %2286 = vmatprep.subr.mxu0 %v888
    %2287 = vmatpush2.msra.mxu0 %v887
    %2288 = vmatprep.mubr.f32.mxu0 %v2075
    %2289 = vmatmul.mubr.f32.gmra.mxu0 %v2074
    %v2290 = vpop.f32.mrf.mxu0
    %v2291 = vadd.f32 0.0, %v2290
    %v2292 = vpop.f32.mrf.mxu0
    %v2293 = vadd.f32 0.0, %v2292
    %2294 = vdwg.mxu0
    %v2295 = vadd.f32 %v2076, %v2149
    %v2296 = vadd.f32 %v2077, %v2151
    %v2297 = vxor.u32 %v2295, 2147483648
    %v2298 = vxor.u32 %v2296, 2147483648
    %v2299 = vmul.f32 %v2297, 1.442695
    %v2300 = vpow.pop %v2299
    %v2301 = vmul.f32 %v2298, 1.442695
    %v2302 = vpow.pop %v2301
    %v2303 = vadd.f32 %v2300, 1.0
    %v2304 = vadd.f32 %v2302, 1.0
    %v2305 = vrcp.pop %v2303
    %v2306 = vmul.f32 1.0, %v2305
    %v2307 = vrcp.pop %v2304
    %v2308 = vmul.f32 1.0, %v2307
    %v2309 = vadd.f32 %v2078, %v2220
    %v2310 = vadd.f32 %v2079, %v2222
    %v2311 = vxor.u32 %v2309, 2147483648
    %v2312 = vxor.u32 %v2310, 2147483648
    %v2313 = vmul.f32 %v2311, 1.442695
    %v2314 = vpow.pop %v2313
    %v2315 = vmul.f32 %v2312, 1.442695
    %v2316 = vpow.pop %v2315
    %v2317 = vadd.f32 %v2314, 1.0
    %v2318 = vadd.f32 %v2316, 1.0
    %v2319 = vrcp.pop %v2317
    %v2320 = vmul.f32 1.0, %v2319
    %v2321 = vrcp.pop %v2318
    %v2322 = vmul.f32 1.0, %v2321
    %v2323 = vadd.f32 %v2291, %v1232
    %v2324 = vadd.f32 %v2293, %v1236
    %v2325 = vmul.f32 %v2306, %v2323
    %v2326 = vmul.f32 %v2308, %v2324
    %v2327 = vadd.f32 %v2080, %v2325
    %v2328 = vadd.f32 %v2081, %v2326
    %v2329 = vtanh.pop %v2327
    %v2330 = vtanh.pop %v2328
    %v2331 = vsub.f32 1.0, %v2320
    %v2332 = vsub.f32 1.0, %v2322
    %v2333 = vmul.f32 %v2331, %v2329
    %v2334 = vmul.f32 %v2332, %v2330
    %v2335 = vmul.f32 %v2320, %v2074
    %v2336 = vmul.f32 %v2322, %v2075
    %v2337 = vadd.f32 %v2333, %v2335
    %v2338 = vadd.f32 %v2334, %v2336
    %vm2339 = vcmp.gt.s32.totalorder %v980, 4
    %v2340 = vsel %vm2339, 1, 0
    %2341 = vset.pattern.permute.xlu0 0
    %2342 = vperm.xlu0 %2341, %v2340
    %v2343 = vpop.permute.xlu0 %2342
    %vm2344 = vcmp.eq.s32.totalorder %v2343, 1
    %v2345 = vsel %vm2344, %v2337, %v2074
    %v2346 = vsel %vm2344, %v2338, %v2075
    %v2347 = vld [vmem:[#allocation2 + $0xf0] sm:$0xff]
    %v2348 = vld [vmem:[#allocation2 + $0xf8] sm:$0xff]
    %v2349 = vld [vmem:[#allocation2 + $0x100] sm:$0xff]
    %v2350 = vld [vmem:[#allocation2 + $0x108] sm:$0xff]
    %v2351 = vld [vmem:[#allocation2 + $0x110] sm:$0xff]
    %v2352 = vld [vmem:[#allocation2 + $0x118] sm:$0xff]
    %2353 = vmatprep.subr.mxu0 %v878
    %2354 = vmatpush1.msra.mxu0 %v877
    %2355 = vmatprep.subr.mxu0 %v872
    %2356 = vmatpush1.msra.mxu0 %v871
    %2357 = vmatprep.subr.mxu0 %v866
    %2358 = vmatpush1.msra.mxu0 %v865
    %2359 = vmatprep.subr.mxu0 %v860
    %2360 = vmatpush1.msra.mxu0 %v859
    %2361 = vmatprep.subr.mxu0 %v854
    %2362 = vmatpush1.msra.mxu0 %v853
    %2363 = vmatprep.subr.mxu0 %v848
    %2364 = vmatpush1.msra.mxu0 %v847
    %2365 = vmatprep.subr.mxu0 %v842
    %2366 = vmatpush1.msra.mxu0 %v841
    %2367 = vmatprep.subr.mxu0 %v836
    %2368 = vmatpush1.msra.mxu0 %v835
    %2369 = vmatprep.subr.mxu0 %v830
    %2370 = vmatpush1.msra.mxu0 %v829
    %2371 = vmatprep.subr.mxu0 %v824
    %2372 = vmatpush1.msra.mxu0 %v823
    %2373 = vmatprep.subr.mxu0 %v818
    %2374 = vmatpush1.msra.mxu0 %v817
    %2375 = vmatprep.subr.mxu0 %v812
    %2376 = vmatpush1.msra.mxu0 %v811
    %2377 = vmatprep.subr.mxu0 %v806
    %2378 = vmatpush1.msra.mxu0 %v805
    %2379 = vmatprep.subr.mxu0 %v800
    %2380 = vmatpush1.msra.mxu0 %v799
    %2381 = vmatprep.subr.mxu0 %v794
    %2382 = vmatpush1.msra.mxu0 %v793
    %2383 = vmatprep.subr.mxu0 %v788
    %2384 = vmatpush1.msra.mxu0 %v787
    %2385 = vmatprep.subr.mxu0 %v974
    %2386 = vmatpush2.msra.mxu0 %v973
    %2387 = vmatprep.subr.mxu0 %v968
    %2388 = vmatpush2.msra.mxu0 %v967
    %2389 = vmatprep.subr.mxu0 %v962
    %2390 = vmatpush2.msra.mxu0 %v961
    %2391 = vmatprep.subr.mxu0 %v956
    %2392 = vmatpush2.msra.mxu0 %v955
    %2393 = vmatprep.subr.mxu0 %v950
    %2394 = vmatpush2.msra.mxu0 %v949
    %2395 = vmatprep.subr.mxu0 %v944
    %2396 = vmatpush2.msra.mxu0 %v943
    %2397 = vmatprep.subr.mxu0 %v938
    %2398 = vmatpush2.msra.mxu0 %v937
    %2399 = vmatprep.subr.mxu0 %v932
    %2400 = vmatpush2.msra.mxu0 %v931
    %2401 = vmatprep.subr.mxu0 %v926
    %2402 = vmatpush2.msra.mxu0 %v925
    %2403 = vmatprep.subr.mxu0 %v920
    %2404 = vmatpush2.msra.mxu0 %v919
    %2405 = vmatprep.subr.mxu0 %v914
    %2406 = vmatpush2.msra.mxu0 %v913
    %2407 = vmatprep.subr.mxu0 %v908
    %2408 = vmatpush2.msra.mxu0 %v907
    %2409 = vmatprep.subr.mxu0 %v902
    %2410 = vmatpush2.msra.mxu0 %v901
    %2411 = vmatprep.subr.mxu0 %v896
    %2412 = vmatpush2.msra.mxu0 %v895
    %2413 = vmatprep.subr.mxu0 %v890
    %2414 = vmatpush2.msra.mxu0 %v889
    %2415 = vmatprep.subr.mxu0 %v884
    %2416 = vmatpush2.msra.mxu0 %v883
    %2417 = vmatprep.mubr.f32.mxu0 %v2346
    %2418 = vmatmul.mubr.f32.gmra.mxu0 %v2345
    %v2419 = vpop.f32.mrf.mxu0
    %v2420 = vadd.f32 0.0, %v2419
    %v2421 = vpop.f32.mrf.mxu0
    %v2422 = vadd.f32 0.0, %v2421
    %2423 = vdwg.mxu0
    %2424 = vmatprep.subr.mxu0 %v880
    %2425 = vmatpush1.msra.mxu0 %v879
    %2426 = vmatprep.subr.mxu0 %v874
    %2427 = vmatpush1.msra.mxu0 %v873
    %2428 = vmatprep.subr.mxu0 %v868
    %2429 = vmatpush1.msra.mxu0 %v867
    %2430 = vmatprep.subr.mxu0 %v862
    %2431 = vmatpush1.msra.mxu0 %v861
    %2432 = vmatprep.subr.mxu0 %v856
    %2433 = vmatpush1.msra.mxu0 %v855
    %2434 = vmatprep.subr.mxu0 %v850
    %2435 = vmatpush1.msra.mxu0 %v849
    %2436 = vmatprep.subr.mxu0 %v844
    %2437 = vmatpush1.msra.mxu0 %v843
    %2438 = vmatprep.subr.mxu0 %v838
    %2439 = vmatpush1.msra.mxu0 %v837
    %2440 = vmatprep.subr.mxu0 %v832
    %2441 = vmatpush1.msra.mxu0 %v831
    %2442 = vmatprep.subr.mxu0 %v826
    %2443 = vmatpush1.msra.mxu0 %v825
    %2444 = vmatprep.subr.mxu0 %v820
    %2445 = vmatpush1.msra.mxu0 %v819
    %2446 = vmatprep.subr.mxu0 %v814
    %2447 = vmatpush1.msra.mxu0 %v813
    %2448 = vmatprep.subr.mxu0 %v808
    %2449 = vmatpush1.msra.mxu0 %v807
    %2450 = vmatprep.subr.mxu0 %v802
    %2451 = vmatpush1.msra.mxu0 %v801
    %2452 = vmatprep.subr.mxu0 %v796
    %2453 = vmatpush1.msra.mxu0 %v795
    %2454 = vmatprep.subr.mxu0 %v790
    %2455 = vmatpush1.msra.mxu0 %v789
    %2456 = vmatprep.subr.mxu0 %v976
    %2457 = vmatpush2.msra.mxu0 %v975
    %2458 = vmatprep.subr.mxu0 %v970
    %2459 = vmatpush2.msra.mxu0 %v969
    %2460 = vmatprep.subr.mxu0 %v964
    %2461 = vmatpush2.msra.mxu0 %v963
    %2462 = vmatprep.subr.mxu0 %v958
    %2463 = vmatpush2.msra.mxu0 %v957
    %2464 = vmatprep.subr.mxu0 %v952
    %2465 = vmatpush2.msra.mxu0 %v951
    %2466 = vmatprep.subr.mxu0 %v946
    %2467 = vmatpush2.msra.mxu0 %v945
    %2468 = vmatprep.subr.mxu0 %v940
    %2469 = vmatpush2.msra.mxu0 %v939
    %2470 = vmatprep.subr.mxu0 %v934
    %2471 = vmatpush2.msra.mxu0 %v933
    %2472 = vmatprep.subr.mxu0 %v928
    %2473 = vmatpush2.msra.mxu0 %v927
    %2474 = vmatprep.subr.mxu0 %v922
    %2475 = vmatpush2.msra.mxu0 %v921
    %2476 = vmatprep.subr.mxu0 %v916
    %2477 = vmatpush2.msra.mxu0 %v915
    %2478 = vmatprep.subr.mxu0 %v910
    %2479 = vmatpush2.msra.mxu0 %v909
    %2480 = vmatprep.subr.mxu0 %v904
    %2481 = vmatpush2.msra.mxu0 %v903
    %2482 = vmatprep.subr.mxu0 %v898
    %2483 = vmatpush2.msra.mxu0 %v897
    %2484 = vmatprep.subr.mxu0 %v892
    %2485 = vmatpush2.msra.mxu0 %v891
    %2486 = vmatprep.subr.mxu0 %v886
    %2487 = vmatpush2.msra.mxu0 %v885
    %2488 = vmatprep.mubr.f32.mxu0 %v2346
    %2489 = vmatmul.mubr.f32.gmra.mxu0 %v2345
    %v2490 = vpop.f32.mrf.mxu0
    %v2491 = vadd.f32 0.0, %v2490
    %v2492 = vpop.f32.mrf.mxu0
    %v2493 = vadd.f32 0.0, %v2492
    %2494 = vdwg.mxu0
    %2495 = vmatprep.subr.mxu0 %v882
    %2496 = vmatpush1.msra.mxu0 %v881
    %2497 = vmatprep.subr.mxu0 %v876
    %2498 = vmatpush1.msra.mxu0 %v875
    %2499 = vmatprep.subr.mxu0 %v870
    %2500 = vmatpush1.msra.mxu0 %v869
    %2501 = vmatprep.subr.mxu0 %v864
    %2502 = vmatpush1.msra.mxu0 %v863
    %2503 = vmatprep.subr.mxu0 %v858
    %2504 = vmatpush1.msra.mxu0 %v857
    %2505 = vmatprep.subr.mxu0 %v852
    %2506 = vmatpush1.msra.mxu0 %v851
    %2507 = vmatprep.subr.mxu0 %v846
    %2508 = vmatpush1.msra.mxu0 %v845
    %2509 = vmatprep.subr.mxu0 %v840
    %2510 = vmatpush1.msra.mxu0 %v839
    %2511 = vmatprep.subr.mxu0 %v834
    %2512 = vmatpush1.msra.mxu0 %v833
    %2513 = vmatprep.subr.mxu0 %v828
    %2514 = vmatpush1.msra.mxu0 %v827
    %2515 = vmatprep.subr.mxu0 %v822
    %2516 = vmatpush1.msra.mxu0 %v821
    %2517 = vmatprep.subr.mxu0 %v816
    %2518 = vmatpush1.msra.mxu0 %v815
    %2519 = vmatprep.subr.mxu0 %v810
    %2520 = vmatpush1.msra.mxu0 %v809
    %2521 = vmatprep.subr.mxu0 %v804
    %2522 = vmatpush1.msra.mxu0 %v803
    %2523 = vmatprep.subr.mxu0 %v798
    %2524 = vmatpush1.msra.mxu0 %v797
    %2525 = vmatprep.subr.mxu0 %v792
    %2526 = vmatpush1.msra.mxu0 %v791
    %2527 = vmatprep.subr.mxu0 %v978
    %2528 = vmatpush2.msra.mxu0 %v977
    %2529 = vmatprep.subr.mxu0 %v972
    %2530 = vmatpush2.msra.mxu0 %v971
    %2531 = vmatprep.subr.mxu0 %v966
    %2532 = vmatpush2.msra.mxu0 %v965
    %2533 = vmatprep.subr.mxu0 %v960
    %2534 = vmatpush2.msra.mxu0 %v959
    %2535 = vmatprep.subr.mxu0 %v954
    %2536 = vmatpush2.msra.mxu0 %v953
    %2537 = vmatprep.subr.mxu0 %v948
    %2538 = vmatpush2.msra.mxu0 %v947
    %2539 = vmatprep.subr.mxu0 %v942
    %2540 = vmatpush2.msra.mxu0 %v941
    %2541 = vmatprep.subr.mxu0 %v936
    %2542 = vmatpush2.msra.mxu0 %v935
    %2543 = vmatprep.subr.mxu0 %v930
    %2544 = vmatpush2.msra.mxu0 %v929
    %2545 = vmatprep.subr.mxu0 %v924
    %2546 = vmatpush2.msra.mxu0 %v923
    %2547 = vmatprep.subr.mxu0 %v918
    %2548 = vmatpush2.msra.mxu0 %v917
    %2549 = vmatprep.subr.mxu0 %v912
    %2550 = vmatpush2.msra.mxu0 %v911
    %2551 = vmatprep.subr.mxu0 %v906
    %2552 = vmatpush2.msra.mxu0 %v905
    %2553 = vmatprep.subr.mxu0 %v900
    %2554 = vmatpush2.msra.mxu0 %v899
    %2555 = vmatprep.subr.mxu0 %v894
    %2556 = vmatpush2.msra.mxu0 %v893
    %2557 = vmatprep.subr.mxu0 %v888
    %2558 = vmatpush2.msra.mxu0 %v887
    %2559 = vmatprep.mubr.f32.mxu0 %v2346
    %2560 = vmatmul.mubr.f32.gmra.mxu0 %v2345
    %v2561 = vpop.f32.mrf.mxu0
    %v2562 = vadd.f32 0.0, %v2561
    %v2563 = vpop.f32.mrf.mxu0
    %v2564 = vadd.f32 0.0, %v2563
    %2565 = vdwg.mxu0
    %v2566 = vadd.f32 %v2347, %v2420
    %v2567 = vadd.f32 %v2348, %v2422
    %v2568 = vxor.u32 %v2566, 2147483648
    %v2569 = vxor.u32 %v2567, 2147483648
    %v2570 = vmul.f32 %v2568, 1.442695
    %v2571 = vpow.pop %v2570
    %v2572 = vmul.f32 %v2569, 1.442695
    %v2573 = vpow.pop %v2572
    %v2574 = vadd.f32 %v2571, 1.0
    %v2575 = vadd.f32 %v2573, 1.0
    %v2576 = vrcp.pop %v2574
    %v2577 = vmul.f32 1.0, %v2576
    %v2578 = vrcp.pop %v2575
    %v2579 = vmul.f32 1.0, %v2578
    %v2580 = vadd.f32 %v2349, %v2491
    %v2581 = vadd.f32 %v2350, %v2493
    %v2582 = vxor.u32 %v2580, 2147483648
    %v2583 = vxor.u32 %v2581, 2147483648
    %v2584 = vmul.f32 %v2582, 1.442695
    %v2585 = vpow.pop %v2584
    %v2586 = vmul.f32 %v2583, 1.442695
    %v2587 = vpow.pop %v2586
    %v2588 = vadd.f32 %v2585, 1.0
    %v2589 = vadd.f32 %v2587, 1.0
    %v2590 = vrcp.pop %v2588
    %v2591 = vmul.f32 1.0, %v2590
    %v2592 = vrcp.pop %v2589
    %v2593 = vmul.f32 1.0, %v2592
    %v2594 = vadd.f32 %v2562, %v1232
    %v2595 = vadd.f32 %v2564, %v1236
    %v2596 = vmul.f32 %v2577, %v2594
    %v2597 = vmul.f32 %v2579, %v2595
    %v2598 = vadd.f32 %v2351, %v2596
    %v2599 = vadd.f32 %v2352, %v2597
    %v2600 = vtanh.pop %v2598
    %v2601 = vtanh.pop %v2599
    %v2602 = vsub.f32 1.0, %v2591
    %v2603 = vsub.f32 1.0, %v2593
    %v2604 = vmul.f32 %v2602, %v2600
    %v2605 = vmul.f32 %v2603, %v2601
    %v2606 = vmul.f32 %v2591, %v2345
    %v2607 = vmul.f32 %v2593, %v2346
    %v2608 = vadd.f32 %v2604, %v2606
    %v2609 = vadd.f32 %v2605, %v2607
    %vm2610 = vcmp.gt.s32.totalorder %v980, 5
    %v2611 = vsel %vm2610, 1, 0
    %2612 = vset.pattern.permute.xlu0 0
    %2613 = vperm.xlu0 %2612, %v2611
    %v2614 = vpop.permute.xlu0 %2613
    %vm2615 = vcmp.eq.s32.totalorder %v2614, 1
    %v2616 = vsel %vm2615, %v2608, %v2345
    %v2617 = vsel %vm2615, %v2609, %v2346
    %v2618 = vld [vmem:[#allocation2 + $0x120] sm:$0xff]
    %v2619 = vld [vmem:[#allocation2 + $0x128] sm:$0xff]
    %v2620 = vld [vmem:[#allocation2 + $0x130] sm:$0xff]
    %v2621 = vld [vmem:[#allocation2 + $0x138] sm:$0xff]
    %v2622 = vld [vmem:[#allocation2 + $0x140] sm:$0xff]
    %v2623 = vld [vmem:[#allocation2 + $0x148] sm:$0xff]
    %2624 = vmatprep.subr.mxu0 %v878
    %2625 = vmatpush1.msra.mxu0 %v877
    %2626 = vmatprep.subr.mxu0 %v872
    %2627 = vmatpush1.msra.mxu0 %v871
    %2628 = vmatprep.subr.mxu0 %v866
    %2629 = vmatpush1.msra.mxu0 %v865
    %2630 = vmatprep.subr.mxu0 %v860
    %2631 = vmatpush1.msra.mxu0 %v859
    %2632 = vmatprep.subr.mxu0 %v854
    %2633 = vmatpush1.msra.mxu0 %v853
    %2634 = vmatprep.subr.mxu0 %v848
    %2635 = vmatpush1.msra.mxu0 %v847
    %2636 = vmatprep.subr.mxu0 %v842
    %2637 = vmatpush1.msra.mxu0 %v841
    %2638 = vmatprep.subr.mxu0 %v836
    %2639 = vmatpush1.msra.mxu0 %v835
    %2640 = vmatprep.subr.mxu0 %v830
    %2641 = vmatpush1.msra.mxu0 %v829
    %2642 = vmatprep.subr.mxu0 %v824
    %2643 = vmatpush1.msra.mxu0 %v823
    %2644 = vmatprep.subr.mxu0 %v818
    %2645 = vmatpush1.msra.mxu0 %v817
    %2646 = vmatprep.subr.mxu0 %v812
    %2647 = vmatpush1.msra.mxu0 %v811
    %2648 = vmatprep.subr.mxu0 %v806
    %2649 = vmatpush1.msra.mxu0 %v805
    %2650 = vmatprep.subr.mxu0 %v800
    %2651 = vmatpush1.msra.mxu0 %v799
    %2652 = vmatprep.subr.mxu0 %v794
    %2653 = vmatpush1.msra.mxu0 %v793
    %2654 = vmatprep.subr.mxu0 %v788
    %2655 = vmatpush1.msra.mxu0 %v787
    %2656 = vmatprep.subr.mxu0 %v974
    %2657 = vmatpush2.msra.mxu0 %v973
    %2658 = vmatprep.subr.mxu0 %v968
    %2659 = vmatpush2.msra.mxu0 %v967
    %2660 = vmatprep.subr.mxu0 %v962
    %2661 = vmatpush2.msra.mxu0 %v961
    %2662 = vmatprep.subr.mxu0 %v956
    %2663 = vmatpush2.msra.mxu0 %v955
    %2664 = vmatprep.subr.mxu0 %v950
    %2665 = vmatpush2.msra.mxu0 %v949
    %2666 = vmatprep.subr.mxu0 %v944
    %2667 = vmatpush2.msra.mxu0 %v943
    %2668 = vmatprep.subr.mxu0 %v938
    %2669 = vmatpush2.msra.mxu0 %v937
    %2670 = vmatprep.subr.mxu0 %v932
    %2671 = vmatpush2.msra.mxu0 %v931
    %2672 = vmatprep.subr.mxu0 %v926
    %2673 = vmatpush2.msra.mxu0 %v925
    %2674 = vmatprep.subr.mxu0 %v920
    %2675 = vmatpush2.msra.mxu0 %v919
    %2676 = vmatprep.subr.mxu0 %v914
    %2677 = vmatpush2.msra.mxu0 %v913
    %2678 = vmatprep.subr.mxu0 %v908
    %2679 = vmatpush2.msra.mxu0 %v907
    %2680 = vmatprep.subr.mxu0 %v902
    %2681 = vmatpush2.msra.mxu0 %v901
    %2682 = vmatprep.subr.mxu0 %v896
    %2683 = vmatpush2.msra.mxu0 %v895
    %2684 = vmatprep.subr.mxu0 %v890
    %2685 = vmatpush2.msra.mxu0 %v889
    %2686 = vmatprep.subr.mxu0 %v884
    %2687 = vmatpush2.msra.mxu0 %v883
    %2688 = vmatprep.mubr.f32.mxu0 %v2617
    %2689 = vmatmul.mubr.f32.gmra.mxu0 %v2616
    %v2690 = vpop.f32.mrf.mxu0
    %v2691 = vadd.f32 0.0, %v2690
    %v2692 = vpop.f32.mrf.mxu0
    %v2693 = vadd.f32 0.0, %v2692
    %2694 = vdwg.mxu0
    %2695 = vmatprep.subr.mxu0 %v880
    %2696 = vmatpush1.msra.mxu0 %v879
    %2697 = vmatprep.subr.mxu0 %v874
    %2698 = vmatpush1.msra.mxu0 %v873
    %2699 = vmatprep.subr.mxu0 %v868
    %2700 = vmatpush1.msra.mxu0 %v867
    %2701 = vmatprep.subr.mxu0 %v862
    %2702 = vmatpush1.msra.mxu0 %v861
    %2703 = vmatprep.subr.mxu0 %v856
    %2704 = vmatpush1.msra.mxu0 %v855
    %2705 = vmatprep.subr.mxu0 %v850
    %2706 = vmatpush1.msra.mxu0 %v849
    %2707 = vmatprep.subr.mxu0 %v844
    %2708 = vmatpush1.msra.mxu0 %v843
    %2709 = vmatprep.subr.mxu0 %v838
    %2710 = vmatpush1.msra.mxu0 %v837
    %2711 = vmatprep.subr.mxu0 %v832
    %2712 = vmatpush1.msra.mxu0 %v831
    %2713 = vmatprep.subr.mxu0 %v826
    %2714 = vmatpush1.msra.mxu0 %v825
    %2715 = vmatprep.subr.mxu0 %v820
    %2716 = vmatpush1.msra.mxu0 %v819
    %2717 = vmatprep.subr.mxu0 %v814
    %2718 = vmatpush1.msra.mxu0 %v813
    %2719 = vmatprep.subr.mxu0 %v808
    %2720 = vmatpush1.msra.mxu0 %v807
    %2721 = vmatprep.subr.mxu0 %v802
    %2722 = vmatpush1.msra.mxu0 %v801
    %2723 = vmatprep.subr.mxu0 %v796
    %2724 = vmatpush1.msra.mxu0 %v795
    %2725 = vmatprep.subr.mxu0 %v790
    %2726 = vmatpush1.msra.mxu0 %v789
    %2727 = vmatprep.subr.mxu0 %v976
    %2728 = vmatpush2.msra.mxu0 %v975
    %2729 = vmatprep.subr.mxu0 %v970
    %2730 = vmatpush2.msra.mxu0 %v969
    %2731 = vmatprep.subr.mxu0 %v964
    %2732 = vmatpush2.msra.mxu0 %v963
    %2733 = vmatprep.subr.mxu0 %v958
    %2734 = vmatpush2.msra.mxu0 %v957
    %2735 = vmatprep.subr.mxu0 %v952
    %2736 = vmatpush2.msra.mxu0 %v951
    %2737 = vmatprep.subr.mxu0 %v946
    %2738 = vmatpush2.msra.mxu0 %v945
    %2739 = vmatprep.subr.mxu0 %v940
    %2740 = vmatpush2.msra.mxu0 %v939
    %2741 = vmatprep.subr.mxu0 %v934
    %2742 = vmatpush2.msra.mxu0 %v933
    %2743 = vmatprep.subr.mxu0 %v928
    %2744 = vmatpush2.msra.mxu0 %v927
    %2745 = vmatprep.subr.mxu0 %v922
    %2746 = vmatpush2.msra.mxu0 %v921
    %2747 = vmatprep.subr.mxu0 %v916
    %2748 = vmatpush2.msra.mxu0 %v915
    %2749 = vmatprep.subr.mxu0 %v910
    %2750 = vmatpush2.msra.mxu0 %v909
    %2751 = vmatprep.subr.mxu0 %v904
    %2752 = vmatpush2.msra.mxu0 %v903
    %2753 = vmatprep.subr.mxu0 %v898
    %2754 = vmatpush2.msra.mxu0 %v897
    %2755 = vmatprep.subr.mxu0 %v892
    %2756 = vmatpush2.msra.mxu0 %v891
    %2757 = vmatprep.subr.mxu0 %v886
    %2758 = vmatpush2.msra.mxu0 %v885
    %2759 = vmatprep.mubr.f32.mxu0 %v2617
    %2760 = vmatmul.mubr.f32.gmra.mxu0 %v2616
    %v2761 = vpop.f32.mrf.mxu0
    %v2762 = vadd.f32 0.0, %v2761
    %v2763 = vpop.f32.mrf.mxu0
    %v2764 = vadd.f32 0.0, %v2763
    %2765 = vdwg.mxu0
    %2766 = vmatprep.subr.mxu0 %v882
    %2767 = vmatpush1.msra.mxu0 %v881
    %2768 = vmatprep.subr.mxu0 %v876
    %2769 = vmatpush1.msra.mxu0 %v875
    %2770 = vmatprep.subr.mxu0 %v870
    %2771 = vmatpush1.msra.mxu0 %v869
    %2772 = vmatprep.subr.mxu0 %v864
    %2773 = vmatpush1.msra.mxu0 %v863
    %2774 = vmatprep.subr.mxu0 %v858
    %2775 = vmatpush1.msra.mxu0 %v857
    %2776 = vmatprep.subr.mxu0 %v852
    %2777 = vmatpush1.msra.mxu0 %v851
    %2778 = vmatprep.subr.mxu0 %v846
    %2779 = vmatpush1.msra.mxu0 %v845
    %2780 = vmatprep.subr.mxu0 %v840
    %2781 = vmatpush1.msra.mxu0 %v839
    %2782 = vmatprep.subr.mxu0 %v834
    %2783 = vmatpush1.msra.mxu0 %v833
    %2784 = vmatprep.subr.mxu0 %v828
    %2785 = vmatpush1.msra.mxu0 %v827
    %2786 = vmatprep.subr.mxu0 %v822
    %2787 = vmatpush1.msra.mxu0 %v821
    %2788 = vmatprep.subr.mxu0 %v816
    %2789 = vmatpush1.msra.mxu0 %v815
    %2790 = vmatprep.subr.mxu0 %v810
    %2791 = vmatpush1.msra.mxu0 %v809
    %2792 = vmatprep.subr.mxu0 %v804
    %2793 = vmatpush1.msra.mxu0 %v803
    %2794 = vmatprep.subr.mxu0 %v798
    %2795 = vmatpush1.msra.mxu0 %v797
    %2796 = vmatprep.subr.mxu0 %v792
    %2797 = vmatpush1.msra.mxu0 %v791
    %2798 = vmatprep.subr.mxu0 %v978
    %2799 = vmatpush2.msra.mxu0 %v977
    %2800 = vmatprep.subr.mxu0 %v972
    %2801 = vmatpush2.msra.mxu0 %v971
    %2802 = vmatprep.subr.mxu0 %v966
    %2803 = vmatpush2.msra.mxu0 %v965
    %2804 = vmatprep.subr.mxu0 %v960
    %2805 = vmatpush2.msra.mxu0 %v959
    %2806 = vmatprep.subr.mxu0 %v954
    %2807 = vmatpush2.msra.mxu0 %v953
    %2808 = vmatprep.subr.mxu0 %v948
    %2809 = vmatpush2.msra.mxu0 %v947
    %2810 = vmatprep.subr.mxu0 %v942
    %2811 = vmatpush2.msra.mxu0 %v941
    %2812 = vmatprep.subr.mxu0 %v936
    %2813 = vmatpush2.msra.mxu0 %v935
    %2814 = vmatprep.subr.mxu0 %v930
    %2815 = vmatpush2.msra.mxu0 %v929
    %2816 = vmatprep.subr.mxu0 %v924
    %2817 = vmatpush2.msra.mxu0 %v923
    %2818 = vmatprep.subr.mxu0 %v918
    %2819 = vmatpush2.msra.mxu0 %v917
    %2820 = vmatprep.subr.mxu0 %v912
    %2821 = vmatpush2.msra.mxu0 %v911
    %2822 = vmatprep.subr.mxu0 %v906
    %2823 = vmatpush2.msra.mxu0 %v905
    %2824 = vmatprep.subr.mxu0 %v900
    %2825 = vmatpush2.msra.mxu0 %v899
    %2826 = vmatprep.subr.mxu0 %v894
    %2827 = vmatpush2.msra.mxu0 %v893
    %2828 = vmatprep.subr.mxu0 %v888
    %2829 = vmatpush2.msra.mxu0 %v887
    %2830 = vmatprep.mubr.f32.mxu0 %v2617
    %2831 = vmatmul.mubr.f32.gmra.mxu0 %v2616
    %v2832 = vpop.f32.mrf.mxu0
    %v2833 = vadd.f32 0.0, %v2832
    %v2834 = vpop.f32.mrf.mxu0
    %v2835 = vadd.f32 0.0, %v2834
    %2836 = vdwg.mxu0
    %v2837 = vadd.f32 %v2618, %v2691
    %v2838 = vadd.f32 %v2619, %v2693
    %v2839 = vxor.u32 %v2837, 2147483648
    %v2840 = vxor.u32 %v2838, 2147483648
    %v2841 = vmul.f32 %v2839, 1.442695
    %v2842 = vpow.pop %v2841
    %v2843 = vmul.f32 %v2840, 1.442695
    %v2844 = vpow.pop %v2843
    %v2845 = vadd.f32 %v2842, 1.0
    %v2846 = vadd.f32 %v2844, 1.0
    %v2847 = vrcp.pop %v2845
    %v2848 = vmul.f32 1.0, %v2847
    %v2849 = vrcp.pop %v2846
    %v2850 = vmul.f32 1.0, %v2849
    %v2851 = vadd.f32 %v2620, %v2762
    %v2852 = vadd.f32 %v2621, %v2764
    %v2853 = vxor.u32 %v2851, 2147483648
    %v2854 = vxor.u32 %v2852, 2147483648
    %v2855 = vmul.f32 %v2853, 1.442695
    %v2856 = vpow.pop %v2855
    %v2857 = vmul.f32 %v2854, 1.442695
    %v2858 = vpow.pop %v2857
    %v2859 = vadd.f32 %v2856, 1.0
    %v2860 = vadd.f32 %v2858, 1.0
    %v2861 = vrcp.pop %v2859
    %v2862 = vmul.f32 1.0, %v2861
    %v2863 = vrcp.pop %v2860
    %v2864 = vmul.f32 1.0, %v2863
    %v2865 = vadd.f32 %v2833, %v1232
    %v2866 = vadd.f32 %v2835, %v1236
    %v2867 = vmul.f32 %v2848, %v2865
    %v2868 = vmul.f32 %v2850, %v2866
    %v2869 = vadd.f32 %v2622, %v2867
    %v2870 = vadd.f32 %v2623, %v2868
    %v2871 = vtanh.pop %v2869
    %v2872 = vtanh.pop %v2870
    %v2873 = vsub.f32 1.0, %v2862
    %v2874 = vsub.f32 1.0, %v2864
    %v2875 = vmul.f32 %v2873, %v2871
    %v2876 = vmul.f32 %v2874, %v2872
    %v2877 = vmul.f32 %v2862, %v2616
    %v2878 = vmul.f32 %v2864, %v2617
    %v2879 = vadd.f32 %v2875, %v2877
    %v2880 = vadd.f32 %v2876, %v2878
    %vm2881 = vcmp.gt.s32.totalorder %v980, 6
    %v2882 = vsel %vm2881, 1, 0
    %2883 = vset.pattern.permute.xlu0 0
    %2884 = vperm.xlu0 %2883, %v2882
    %v2885 = vpop.permute.xlu0 %2884
    %vm2886 = vcmp.eq.s32.totalorder %v2885, 1
    %v2887 = vsel %vm2886, %v2879, %v2616
    %v2888 = vsel %vm2886, %v2880, %v2617
    %v2889 = vld [vmem:[#allocation2 + $0x150] sm:$0xff]
    %v2890 = vld [vmem:[#allocation2 + $0x158] sm:$0xff]
    %v2891 = vld [vmem:[#allocation2 + $0x160] sm:$0xff]
    %v2892 = vld [vmem:[#allocation2 + $0x168] sm:$0xff]
    %v2893 = vld [vmem:[#allocation2 + $0x170] sm:$0xff]
    %v2894 = vld [vmem:[#allocation2 + $0x178] sm:$0xff]
    %2895 = vmatprep.subr.mxu0 %v878
    %2896 = vmatpush1.msra.mxu0 %v877
    %2897 = vmatprep.subr.mxu0 %v872
    %2898 = vmatpush1.msra.mxu0 %v871
    %2899 = vmatprep.subr.mxu0 %v866
    %2900 = vmatpush1.msra.mxu0 %v865
    %2901 = vmatprep.subr.mxu0 %v860
    %2902 = vmatpush1.msra.mxu0 %v859
    %2903 = vmatprep.subr.mxu0 %v854
    %2904 = vmatpush1.msra.mxu0 %v853
    %2905 = vmatprep.subr.mxu0 %v848
    %2906 = vmatpush1.msra.mxu0 %v847
    %2907 = vmatprep.subr.mxu0 %v842
    %2908 = vmatpush1.msra.mxu0 %v841
    %2909 = vmatprep.subr.mxu0 %v836
    %2910 = vmatpush1.msra.mxu0 %v835
    %2911 = vmatprep.subr.mxu0 %v830
    %2912 = vmatpush1.msra.mxu0 %v829
    %2913 = vmatprep.subr.mxu0 %v824
    %2914 = vmatpush1.msra.mxu0 %v823
    %2915 = vmatprep.subr.mxu0 %v818
    %2916 = vmatpush1.msra.mxu0 %v817
    %2917 = vmatprep.subr.mxu0 %v812
    %2918 = vmatpush1.msra.mxu0 %v811
    %2919 = vmatprep.subr.mxu0 %v806
    %2920 = vmatpush1.msra.mxu0 %v805
    %2921 = vmatprep.subr.mxu0 %v800
    %2922 = vmatpush1.msra.mxu0 %v799
    %2923 = vmatprep.subr.mxu0 %v794
    %2924 = vmatpush1.msra.mxu0 %v793
    %2925 = vmatprep.subr.mxu0 %v788
    %2926 = vmatpush1.msra.mxu0 %v787
    %2927 = vmatprep.subr.mxu0 %v974
    %2928 = vmatpush2.msra.mxu0 %v973
    %2929 = vmatprep.subr.mxu0 %v968
    %2930 = vmatpush2.msra.mxu0 %v967
    %2931 = vmatprep.subr.mxu0 %v962
    %2932 = vmatpush2.msra.mxu0 %v961
    %2933 = vmatprep.subr.mxu0 %v956
    %2934 = vmatpush2.msra.mxu0 %v955
    %2935 = vmatprep.subr.mxu0 %v950
    %2936 = vmatpush2.msra.mxu0 %v949
    %2937 = vmatprep.subr.mxu0 %v944
    %2938 = vmatpush2.msra.mxu0 %v943
    %2939 = vmatprep.subr.mxu0 %v938
    %2940 = vmatpush2.msra.mxu0 %v937
    %2941 = vmatprep.subr.mxu0 %v932
    %2942 = vmatpush2.msra.mxu0 %v931
    %2943 = vmatprep.subr.mxu0 %v926
    %2944 = vmatpush2.msra.mxu0 %v925
    %2945 = vmatprep.subr.mxu0 %v920
    %2946 = vmatpush2.msra.mxu0 %v919
    %2947 = vmatprep.subr.mxu0 %v914
    %2948 = vmatpush2.msra.mxu0 %v913
    %2949 = vmatprep.subr.mxu0 %v908
    %2950 = vmatpush2.msra.mxu0 %v907
    %2951 = vmatprep.subr.mxu0 %v902
    %2952 = vmatpush2.msra.mxu0 %v901
    %2953 = vmatprep.subr.mxu0 %v896
    %2954 = vmatpush2.msra.mxu0 %v895
    %2955 = vmatprep.subr.mxu0 %v890
    %2956 = vmatpush2.msra.mxu0 %v889
    %2957 = vmatprep.subr.mxu0 %v884
    %2958 = vmatpush2.msra.mxu0 %v883
    %2959 = vmatprep.mubr.f32.mxu0 %v2888
    %2960 = vmatmul.mubr.f32.gmra.mxu0 %v2887
    %v2961 = vpop.f32.mrf.mxu0
    %v2962 = vadd.f32 0.0, %v2961
    %v2963 = vpop.f32.mrf.mxu0
    %v2964 = vadd.f32 0.0, %v2963
    %2965 = vdwg.mxu0
    %2966 = vmatprep.subr.mxu0 %v880
    %2967 = vmatpush1.msra.mxu0 %v879
    %2968 = vmatprep.subr.mxu0 %v874
    %2969 = vmatpush1.msra.mxu0 %v873
    %2970 = vmatprep.subr.mxu0 %v868
    %2971 = vmatpush1.msra.mxu0 %v867
    %2972 = vmatprep.subr.mxu0 %v862
    %2973 = vmatpush1.msra.mxu0 %v861
    %2974 = vmatprep.subr.mxu0 %v856
    %2975 = vmatpush1.msra.mxu0 %v855
    %2976 = vmatprep.subr.mxu0 %v850
    %2977 = vmatpush1.msra.mxu0 %v849
    %2978 = vmatprep.subr.mxu0 %v844
    %2979 = vmatpush1.msra.mxu0 %v843
    %2980 = vmatprep.subr.mxu0 %v838
    %2981 = vmatpush1.msra.mxu0 %v837
    %2982 = vmatprep.subr.mxu0 %v832
    %2983 = vmatpush1.msra.mxu0 %v831
    %2984 = vmatprep.subr.mxu0 %v826
    %2985 = vmatpush1.msra.mxu0 %v825
    %2986 = vmatprep.subr.mxu0 %v820
    %2987 = vmatpush1.msra.mxu0 %v819
    %2988 = vmatprep.subr.mxu0 %v814
    %2989 = vmatpush1.msra.mxu0 %v813
    %2990 = vmatprep.subr.mxu0 %v808
    %2991 = vmatpush1.msra.mxu0 %v807
    %2992 = vmatprep.subr.mxu0 %v802
    %2993 = vmatpush1.msra.mxu0 %v801
    %2994 = vmatprep.subr.mxu0 %v796
    %2995 = vmatpush1.msra.mxu0 %v795
    %2996 = vmatprep.subr.mxu0 %v790
    %2997 = vmatpush1.msra.mxu0 %v789
    %2998 = vmatprep.subr.mxu0 %v976
    %2999 = vmatpush2.msra.mxu0 %v975
    %3000 = vmatprep.subr.mxu0 %v970
    %3001 = vmatpush2.msra.mxu0 %v969
    %3002 = vmatprep.subr.mxu0 %v964
    %3003 = vmatpush2.msra.mxu0 %v963
    %3004 = vmatprep.subr.mxu0 %v958
    %3005 = vmatpush2.msra.mxu0 %v957
    %3006 = vmatprep.subr.mxu0 %v952
    %3007 = vmatpush2.msra.mxu0 %v951
    %3008 = vmatprep.subr.mxu0 %v946
    %3009 = vmatpush2.msra.mxu0 %v945
    %3010 = vmatprep.subr.mxu0 %v940
    %3011 = vmatpush2.msra.mxu0 %v939
    %3012 = vmatprep.subr.mxu0 %v934
    %3013 = vmatpush2.msra.mxu0 %v933
    %3014 = vmatprep.subr.mxu0 %v928
    %3015 = vmatpush2.msra.mxu0 %v927
    %3016 = vmatprep.subr.mxu0 %v922
    %3017 = vmatpush2.msra.mxu0 %v921
    %3018 = vmatprep.subr.mxu0 %v916
    %3019 = vmatpush2.msra.mxu0 %v915
    %3020 = vmatprep.subr.mxu0 %v910
    %3021 = vmatpush2.msra.mxu0 %v909
    %3022 = vmatprep.subr.mxu0 %v904
    %3023 = vmatpush2.msra.mxu0 %v903
    %3024 = vmatprep.subr.mxu0 %v898
    %3025 = vmatpush2.msra.mxu0 %v897
    %3026 = vmatprep.subr.mxu0 %v892
    %3027 = vmatpush2.msra.mxu0 %v891
    %3028 = vmatprep.subr.mxu0 %v886
    %3029 = vmatpush2.msra.mxu0 %v885
    %3030 = vmatprep.mubr.f32.mxu0 %v2888
    %3031 = vmatmul.mubr.f32.gmra.mxu0 %v2887
    %v3032 = vpop.f32.mrf.mxu0
    %v3033 = vadd.f32 0.0, %v3032
    %v3034 = vpop.f32.mrf.mxu0
    %v3035 = vadd.f32 0.0, %v3034
    %3036 = vdwg.mxu0
    %3037 = vmatprep.subr.mxu0 %v882
    %3038 = vmatpush1.msra.mxu0 %v881
    %3039 = vmatprep.subr.mxu0 %v876
    %3040 = vmatpush1.msra.mxu0 %v875
    %3041 = vmatprep.subr.mxu0 %v870
    %3042 = vmatpush1.msra.mxu0 %v869
    %3043 = vmatprep.subr.mxu0 %v864
    %3044 = vmatpush1.msra.mxu0 %v863
    %3045 = vmatprep.subr.mxu0 %v858
    %3046 = vmatpush1.msra.mxu0 %v857
    %3047 = vmatprep.subr.mxu0 %v852
    %3048 = vmatpush1.msra.mxu0 %v851
    %3049 = vmatprep.subr.mxu0 %v846
    %3050 = vmatpush1.msra.mxu0 %v845
    %3051 = vmatprep.subr.mxu0 %v840
    %3052 = vmatpush1.msra.mxu0 %v839
    %3053 = vmatprep.subr.mxu0 %v834
    %3054 = vmatpush1.msra.mxu0 %v833
    %3055 = vmatprep.subr.mxu0 %v828
    %3056 = vmatpush1.msra.mxu0 %v827
    %3057 = vmatprep.subr.mxu0 %v822
    %3058 = vmatpush1.msra.mxu0 %v821
    %3059 = vmatprep.subr.mxu0 %v816
    %3060 = vmatpush1.msra.mxu0 %v815
    %3061 = vmatprep.subr.mxu0 %v810
    %3062 = vmatpush1.msra.mxu0 %v809
    %3063 = vmatprep.subr.mxu0 %v804
    %3064 = vmatpush1.msra.mxu0 %v803
    %3065 = vmatprep.subr.mxu0 %v798
    %3066 = vmatpush1.msra.mxu0 %v797
    %3067 = vmatprep.subr.mxu0 %v792
    %3068 = vmatpush1.msra.mxu0 %v791
    %3069 = vmatprep.subr.mxu0 %v978
    %3070 = vmatpush2.msra.mxu0 %v977
    %3071 = vmatprep.subr.mxu0 %v972
    %3072 = vmatpush2.msra.mxu0 %v971
    %3073 = vmatprep.subr.mxu0 %v966
    %3074 = vmatpush2.msra.mxu0 %v965
    %3075 = vmatprep.subr.mxu0 %v960
    %3076 = vmatpush2.msra.mxu0 %v959
    %3077 = vmatprep.subr.mxu0 %v954
    %3078 = vmatpush2.msra.mxu0 %v953
    %3079 = vmatprep.subr.mxu0 %v948
    %3080 = vmatpush2.msra.mxu0 %v947
    %3081 = vmatprep.subr.mxu0 %v942
    %3082 = vmatpush2.msra.mxu0 %v941
    %3083 = vmatprep.subr.mxu0 %v936
    %3084 = vmatpush2.msra.mxu0 %v935
    %3085 = vmatprep.subr.mxu0 %v930
    %3086 = vmatpush2.msra.mxu0 %v929
    %3087 = vmatprep.subr.mxu0 %v924
    %3088 = vmatpush2.msra.mxu0 %v923
    %3089 = vmatprep.subr.mxu0 %v918
    %3090 = vmatpush2.msra.mxu0 %v917
    %3091 = vmatprep.subr.mxu0 %v912
    %3092 = vmatpush2.msra.mxu0 %v911
    %3093 = vmatprep.subr.mxu0 %v906
    %3094 = vmatpush2.msra.mxu0 %v905
    %3095 = vmatprep.subr.mxu0 %v900
    %3096 = vmatpush2.msra.mxu0 %v899
    %3097 = vmatprep.subr.mxu0 %v894
    %3098 = vmatpush2.msra.mxu0 %v893
    %3099 = vmatprep.subr.mxu0 %v888
    %3100 = vmatpush2.msra.mxu0 %v887
    %3101 = vmatprep.mubr.f32.mxu0 %v2888
    %3102 = vmatmul.mubr.f32.gmra.mxu0 %v2887
    %v3103 = vpop.f32.mrf.mxu0
    %v3104 = vadd.f32 0.0, %v3103
    %v3105 = vpop.f32.mrf.mxu0
    %v3106 = vadd.f32 0.0, %v3105
    %3107 = vdwg.mxu0
    %v3108 = vadd.f32 %v2889, %v2962
    %v3109 = vadd.f32 %v2890, %v2964
    %v3110 = vxor.u32 %v3108, 2147483648
    %v3111 = vxor.u32 %v3109, 2147483648
    %v3112 = vmul.f32 %v3110, 1.442695
    %v3113 = vpow.pop %v3112
    %v3114 = vmul.f32 %v3111, 1.442695
    %v3115 = vpow.pop %v3114
    %v3116 = vadd.f32 %v3113, 1.0
    %v3117 = vadd.f32 %v3115, 1.0
    %v3118 = vrcp.pop %v3116
    %v3119 = vmul.f32 1.0, %v3118
    %v3120 = vrcp.pop %v3117
    %v3121 = vmul.f32 1.0, %v3120
    %v3122 = vadd.f32 %v2891, %v3033
    %v3123 = vadd.f32 %v2892, %v3035
    %v3124 = vxor.u32 %v3122, 2147483648
    %v3125 = vxor.u32 %v3123, 2147483648
    %v3126 = vmul.f32 %v3124, 1.442695
    %v3127 = vpow.pop %v3126
    %v3128 = vmul.f32 %v3125, 1.442695
    %v3129 = vpow.pop %v3128
    %v3130 = vadd.f32 %v3127, 1.0
    %v3131 = vadd.f32 %v3129, 1.0
    %v3132 = vrcp.pop %v3130
    %v3133 = vmul.f32 1.0, %v3132
    %v3134 = vrcp.pop %v3131
    %v3135 = vmul.f32 1.0, %v3134
    %v3136 = vadd.f32 %v3104, %v1232
    %v3137 = vadd.f32 %v3106, %v1236
    %v3138 = vmul.f32 %v3119, %v3136
    %v3139 = vmul.f32 %v3121, %v3137
    %v3140 = vadd.f32 %v2893, %v3138
    %v3141 = vadd.f32 %v2894, %v3139
    %v3142 = vtanh.pop %v3140
    %v3143 = vtanh.pop %v3141
    %v3144 = vsub.f32 1.0, %v3133
    %v3145 = vsub.f32 1.0, %v3135
    %v3146 = vmul.f32 %v3144, %v3142
    %v3147 = vmul.f32 %v3145, %v3143
    %v3148 = vmul.f32 %v3133, %v2887
    %v3149 = vmul.f32 %v3135, %v2888
    %v3150 = vadd.f32 %v3146, %v3148
    %v3151 = vadd.f32 %v3147, %v3149
    %vm3152 = vcmp.gt.s32.totalorder %v980, 7
    %v3153 = vsel %vm3152, 1, 0
    %3154 = vset.pattern.permute.xlu0 0
    %3155 = vperm.xlu0 %3154, %v3153
    %v3156 = vpop.permute.xlu0 %3155
    %vm3157 = vcmp.eq.s32.totalorder %v3156, 1
    %v3158 = vsel %vm3157, %v3150, %v2887
    %v3159 = vsel %vm3157, %v3151, %v2888
    %v3160 = vld [vmem:[#allocation2 + $0x180] sm:$0xff]
    %v3161 = vld [vmem:[#allocation2 + $0x188] sm:$0xff]
    %v3162 = vld [vmem:[#allocation2 + $0x190] sm:$0xff]
    %v3163 = vld [vmem:[#allocation2 + $0x198] sm:$0xff]
    %v3164 = vld [vmem:[#allocation2 + $0x1a0] sm:$0xff]
    %v3165 = vld [vmem:[#allocation2 + $0x1a8] sm:$0xff]
    %3166 = vmatprep.subr.mxu0 %v878
    %3167 = vmatpush1.msra.mxu0 %v877
    %3168 = vmatprep.subr.mxu0 %v872
    %3169 = vmatpush1.msra.mxu0 %v871
    %3170 = vmatprep.subr.mxu0 %v866
    %3171 = vmatpush1.msra.mxu0 %v865
    %3172 = vmatprep.subr.mxu0 %v860
    %3173 = vmatpush1.msra.mxu0 %v859
    %3174 = vmatprep.subr.mxu0 %v854
    %3175 = vmatpush1.msra.mxu0 %v853
    %3176 = vmatprep.subr.mxu0 %v848
    %3177 = vmatpush1.msra.mxu0 %v847
    %3178 = vmatprep.subr.mxu0 %v842
    %3179 = vmatpush1.msra.mxu0 %v841
    %3180 = vmatprep.subr.mxu0 %v836
    %3181 = vmatpush1.msra.mxu0 %v835
    %3182 = vmatprep.subr.mxu0 %v830
    %3183 = vmatpush1.msra.mxu0 %v829
    %3184 = vmatprep.subr.mxu0 %v824
    %3185 = vmatpush1.msra.mxu0 %v823
    %3186 = vmatprep.subr.mxu0 %v818
    %3187 = vmatpush1.msra.mxu0 %v817
    %3188 = vmatprep.subr.mxu0 %v812
    %3189 = vmatpush1.msra.mxu0 %v811
    %3190 = vmatprep.subr.mxu0 %v806
    %3191 = vmatpush1.msra.mxu0 %v805
    %3192 = vmatprep.subr.mxu0 %v800
    %3193 = vmatpush1.msra.mxu0 %v799
    %3194 = vmatprep.subr.mxu0 %v794
    %3195 = vmatpush1.msra.mxu0 %v793
    %3196 = vmatprep.subr.mxu0 %v788
    %3197 = vmatpush1.msra.mxu0 %v787
    %3198 = vmatprep.subr.mxu0 %v974
    %3199 = vmatpush2.msra.mxu0 %v973
    %3200 = vmatprep.subr.mxu0 %v968
    %3201 = vmatpush2.msra.mxu0 %v967
    %3202 = vmatprep.subr.mxu0 %v962
    %3203 = vmatpush2.msra.mxu0 %v961
    %3204 = vmatprep.subr.mxu0 %v956
    %3205 = vmatpush2.msra.mxu0 %v955
    %3206 = vmatprep.subr.mxu0 %v950
    %3207 = vmatpush2.msra.mxu0 %v949
    %3208 = vmatprep.subr.mxu0 %v944
    %3209 = vmatpush2.msra.mxu0 %v943
    %3210 = vmatprep.subr.mxu0 %v938
    %3211 = vmatpush2.msra.mxu0 %v937
    %3212 = vmatprep.subr.mxu0 %v932
    %3213 = vmatpush2.msra.mxu0 %v931
    %3214 = vmatprep.subr.mxu0 %v926
    %3215 = vmatpush2.msra.mxu0 %v925
    %3216 = vmatprep.subr.mxu0 %v920
    %3217 = vmatpush2.msra.mxu0 %v919
    %3218 = vmatprep.subr.mxu0 %v914
    %3219 = vmatpush2.msra.mxu0 %v913
    %3220 = vmatprep.subr.mxu0 %v908
    %3221 = vmatpush2.msra.mxu0 %v907
    %3222 = vmatprep.subr.mxu0 %v902
    %3223 = vmatpush2.msra.mxu0 %v901
    %3224 = vmatprep.subr.mxu0 %v896
    %3225 = vmatpush2.msra.mxu0 %v895
    %3226 = vmatprep.subr.mxu0 %v890
    %3227 = vmatpush2.msra.mxu0 %v889
    %3228 = vmatprep.subr.mxu0 %v884
    %3229 = vmatpush2.msra.mxu0 %v883
    %3230 = vmatprep.mubr.f32.mxu0 %v3159
    %3231 = vmatmul.mubr.f32.gmra.mxu0 %v3158
    %v3232 = vpop.f32.mrf.mxu0
    %v3233 = vadd.f32 0.0, %v3232
    %v3234 = vpop.f32.mrf.mxu0
    %v3235 = vadd.f32 0.0, %v3234
    %3236 = vdwg.mxu0
    %3237 = vmatprep.subr.mxu0 %v880
    %3238 = vmatpush1.msra.mxu0 %v879
    %3239 = vmatprep.subr.mxu0 %v874
    %3240 = vmatpush1.msra.mxu0 %v873
    %3241 = vmatprep.subr.mxu0 %v868
    %3242 = vmatpush1.msra.mxu0 %v867
    %3243 = vmatprep.subr.mxu0 %v862
    %3244 = vmatpush1.msra.mxu0 %v861
    %3245 = vmatprep.subr.mxu0 %v856
    %3246 = vmatpush1.msra.mxu0 %v855
    %3247 = vmatprep.subr.mxu0 %v850
    %3248 = vmatpush1.msra.mxu0 %v849
    %3249 = vmatprep.subr.mxu0 %v844
    %3250 = vmatpush1.msra.mxu0 %v843
    %3251 = vmatprep.subr.mxu0 %v838
    %3252 = vmatpush1.msra.mxu0 %v837
    %3253 = vmatprep.subr.mxu0 %v832
    %3254 = vmatpush1.msra.mxu0 %v831
    %3255 = vmatprep.subr.mxu0 %v826
    %3256 = vmatpush1.msra.mxu0 %v825
    %3257 = vmatprep.subr.mxu0 %v820
    %3258 = vmatpush1.msra.mxu0 %v819
    %3259 = vmatprep.subr.mxu0 %v814
    %3260 = vmatpush1.msra.mxu0 %v813
    %3261 = vmatprep.subr.mxu0 %v808
    %3262 = vmatpush1.msra.mxu0 %v807
    %3263 = vmatprep.subr.mxu0 %v802
    %3264 = vmatpush1.msra.mxu0 %v801
    %3265 = vmatprep.subr.mxu0 %v796
    %3266 = vmatpush1.msra.mxu0 %v795
    %3267 = vmatprep.subr.mxu0 %v790
    %3268 = vmatpush1.msra.mxu0 %v789
    %3269 = vmatprep.subr.mxu0 %v976
    %3270 = vmatpush2.msra.mxu0 %v975
    %3271 = vmatprep.subr.mxu0 %v970
    %3272 = vmatpush2.msra.mxu0 %v969
    %3273 = vmatprep.subr.mxu0 %v964
    %3274 = vmatpush2.msra.mxu0 %v963
    %3275 = vmatprep.subr.mxu0 %v958
    %3276 = vmatpush2.msra.mxu0 %v957
    %3277 = vmatprep.subr.mxu0 %v952
    %3278 = vmatpush2.msra.mxu0 %v951
    %3279 = vmatprep.subr.mxu0 %v946
    %3280 = vmatpush2.msra.mxu0 %v945
    %3281 = vmatprep.subr.mxu0 %v940
    %3282 = vmatpush2.msra.mxu0 %v939
    %3283 = vmatprep.subr.mxu0 %v934
    %3284 = vmatpush2.msra.mxu0 %v933
    %3285 = vmatprep.subr.mxu0 %v928
    %3286 = vmatpush2.msra.mxu0 %v927
    %3287 = vmatprep.subr.mxu0 %v922
    %3288 = vmatpush2.msra.mxu0 %v921
    %3289 = vmatprep.subr.mxu0 %v916
    %3290 = vmatpush2.msra.mxu0 %v915
    %3291 = vmatprep.subr.mxu0 %v910
    %3292 = vmatpush2.msra.mxu0 %v909
    %3293 = vmatprep.subr.mxu0 %v904
    %3294 = vmatpush2.msra.mxu0 %v903
    %3295 = vmatprep.subr.mxu0 %v898
    %3296 = vmatpush2.msra.mxu0 %v897
    %3297 = vmatprep.subr.mxu0 %v892
    %3298 = vmatpush2.msra.mxu0 %v891
    %3299 = vmatprep.subr.mxu0 %v886
    %3300 = vmatpush2.msra.mxu0 %v885
    %3301 = vmatprep.mubr.f32.mxu0 %v3159
    %3302 = vmatmul.mubr.f32.gmra.mxu0 %v3158
    %v3303 = vpop.f32.mrf.mxu0
    %v3304 = vadd.f32 0.0, %v3303
    %v3305 = vpop.f32.mrf.mxu0
    %v3306 = vadd.f32 0.0, %v3305
    %3307 = vdwg.mxu0
    %3308 = vmatprep.subr.mxu0 %v882
    %3309 = vmatpush1.msra.mxu0 %v881
    %3310 = vmatprep.subr.mxu0 %v876
    %3311 = vmatpush1.msra.mxu0 %v875
    %3312 = vmatprep.subr.mxu0 %v870
    %3313 = vmatpush1.msra.mxu0 %v869
    %3314 = vmatprep.subr.mxu0 %v864
    %3315 = vmatpush1.msra.mxu0 %v863
    %3316 = vmatprep.subr.mxu0 %v858
    %3317 = vmatpush1.msra.mxu0 %v857
    %3318 = vmatprep.subr.mxu0 %v852
    %3319 = vmatpush1.msra.mxu0 %v851
    %3320 = vmatprep.subr.mxu0 %v846
    %3321 = vmatpush1.msra.mxu0 %v845
    %3322 = vmatprep.subr.mxu0 %v840
    %3323 = vmatpush1.msra.mxu0 %v839
    %3324 = vmatprep.subr.mxu0 %v834
    %3325 = vmatpush1.msra.mxu0 %v833
    %3326 = vmatprep.subr.mxu0 %v828
    %3327 = vmatpush1.msra.mxu0 %v827
    %3328 = vmatprep.subr.mxu0 %v822
    %3329 = vmatpush1.msra.mxu0 %v821
    %3330 = vmatprep.subr.mxu0 %v816
    %3331 = vmatpush1.msra.mxu0 %v815
    %3332 = vmatprep.subr.mxu0 %v810
    %3333 = vmatpush1.msra.mxu0 %v809
    %3334 = vmatprep.subr.mxu0 %v804
    %3335 = vmatpush1.msra.mxu0 %v803
    %3336 = vmatprep.subr.mxu0 %v798
    %3337 = vmatpush1.msra.mxu0 %v797
    %3338 = vmatprep.subr.mxu0 %v792
    %3339 = vmatpush1.msra.mxu0 %v791
    %3340 = vmatprep.subr.mxu0 %v978
    %3341 = vmatpush2.msra.mxu0 %v977
    %3342 = vmatprep.subr.mxu0 %v972
    %3343 = vmatpush2.msra.mxu0 %v971
    %3344 = vmatprep.subr.mxu0 %v966
    %3345 = vmatpush2.msra.mxu0 %v965
    %3346 = vmatprep.subr.mxu0 %v960
    %3347 = vmatpush2.msra.mxu0 %v959
    %3348 = vmatprep.subr.mxu0 %v954
    %3349 = vmatpush2.msra.mxu0 %v953
    %3350 = vmatprep.subr.mxu0 %v948
    %3351 = vmatpush2.msra.mxu0 %v947
    %3352 = vmatprep.subr.mxu0 %v942
    %3353 = vmatpush2.msra.mxu0 %v941
    %3354 = vmatprep.subr.mxu0 %v936
    %3355 = vmatpush2.msra.mxu0 %v935
    %3356 = vmatprep.subr.mxu0 %v930
    %3357 = vmatpush2.msra.mxu0 %v929
    %3358 = vmatprep.subr.mxu0 %v924
    %3359 = vmatpush2.msra.mxu0 %v923
    %3360 = vmatprep.subr.mxu0 %v918
    %3361 = vmatpush2.msra.mxu0 %v917
    %3362 = vmatprep.subr.mxu0 %v912
    %3363 = vmatpush2.msra.mxu0 %v911
    %3364 = vmatprep.subr.mxu0 %v906
    %3365 = vmatpush2.msra.mxu0 %v905
    %3366 = vmatprep.subr.mxu0 %v900
    %3367 = vmatpush2.msra.mxu0 %v899
    %3368 = vmatprep.subr.mxu0 %v894
    %3369 = vmatpush2.msra.mxu0 %v893
    %3370 = vmatprep.subr.mxu0 %v888
    %3371 = vmatpush2.msra.mxu0 %v887
    %3372 = vmatprep.mubr.f32.mxu0 %v3159
    %3373 = vmatmul.mubr.f32.gmra.mxu0 %v3158
    %v3374 = vpop.f32.mrf.mxu0
    %v3375 = vadd.f32 0.0, %v3374
    %v3376 = vpop.f32.mrf.mxu0
    %v3377 = vadd.f32 0.0, %v3376
    %3378 = vdwg.mxu0
    %v3379 = vadd.f32 %v3160, %v3233
    %v3380 = vadd.f32 %v3161, %v3235
    %v3381 = vxor.u32 %v3379, 2147483648
    %v3382 = vxor.u32 %v3380, 2147483648
    %v3383 = vmul.f32 %v3381, 1.442695
    %v3384 = vpow.pop %v3383
    %v3385 = vmul.f32 %v3382, 1.442695
    %v3386 = vpow.pop %v3385
    %v3387 = vadd.f32 %v3384, 1.0
    %v3388 = vadd.f32 %v3386, 1.0
    %v3389 = vrcp.pop %v3387
    %v3390 = vmul.f32 1.0, %v3389
    %v3391 = vrcp.pop %v3388
    %v3392 = vmul.f32 1.0, %v3391
    %v3393 = vadd.f32 %v3162, %v3304
    %v3394 = vadd.f32 %v3163, %v3306
    %v3395 = vxor.u32 %v3393, 2147483648
    %v3396 = vxor.u32 %v3394, 2147483648
    %v3397 = vmul.f32 %v3395, 1.442695
    %v3398 = vpow.pop %v3397
    %v3399 = vmul.f32 %v3396, 1.442695
    %v3400 = vpow.pop %v3399
    %v3401 = vadd.f32 %v3398, 1.0
    %v3402 = vadd.f32 %v3400, 1.0
    %v3403 = vrcp.pop %v3401
    %v3404 = vmul.f32 1.0, %v3403
    %v3405 = vrcp.pop %v3402
    %v3406 = vmul.f32 1.0, %v3405
    %v3407 = vadd.f32 %v3375, %v1232
    %v3408 = vadd.f32 %v3377, %v1236
    %v3409 = vmul.f32 %v3390, %v3407
    %v3410 = vmul.f32 %v3392, %v3408
    %v3411 = vadd.f32 %v3164, %v3409
    %v3412 = vadd.f32 %v3165, %v3410
    %v3413 = vtanh.pop %v3411
    %v3414 = vtanh.pop %v3412
    %v3415 = vsub.f32 1.0, %v3404
    %v3416 = vsub.f32 1.0, %v3406
    %v3417 = vmul.f32 %v3415, %v3413
    %v3418 = vmul.f32 %v3416, %v3414
    %v3419 = vmul.f32 %v3404, %v3158
    %v3420 = vmul.f32 %v3406, %v3159
    %v3421 = vadd.f32 %v3417, %v3419
    %v3422 = vadd.f32 %v3418, %v3420
    %vm3423 = vcmp.gt.s32.totalorder %v980, 8
    %v3424 = vsel %vm3423, 1, 0
    %3425 = vset.pattern.permute.xlu0 0
    %3426 = vperm.xlu0 %3425, %v3424
    %v3427 = vpop.permute.xlu0 %3426
    %vm3428 = vcmp.eq.s32.totalorder %v3427, 1
    %v3429 = vsel %vm3428, %v3421, %v3158
    %v3430 = vsel %vm3428, %v3422, %v3159
    %v3431 = vld [vmem:[#allocation2 + $0x1b0] sm:$0xff]
    %v3432 = vld [vmem:[#allocation2 + $0x1b8] sm:$0xff]
    %v3433 = vld [vmem:[#allocation2 + $0x1c0] sm:$0xff]
    %v3434 = vld [vmem:[#allocation2 + $0x1c8] sm:$0xff]
    %v3435 = vld [vmem:[#allocation2 + $0x1d0] sm:$0xff]
    %v3436 = vld [vmem:[#allocation2 + $0x1d8] sm:$0xff]
    %3437 = vmatprep.subr.mxu0 %v878
    %3438 = vmatpush1.msra.mxu0 %v877
    %3439 = vmatprep.subr.mxu0 %v872
    %3440 = vmatpush1.msra.mxu0 %v871
    %3441 = vmatprep.subr.mxu0 %v866
    %3442 = vmatpush1.msra.mxu0 %v865
    %3443 = vmatprep.subr.mxu0 %v860
    %3444 = vmatpush1.msra.mxu0 %v859
    %3445 = vmatprep.subr.mxu0 %v854
    %3446 = vmatpush1.msra.mxu0 %v853
    %3447 = vmatprep.subr.mxu0 %v848
    %3448 = vmatpush1.msra.mxu0 %v847
    %3449 = vmatprep.subr.mxu0 %v842
    %3450 = vmatpush1.msra.mxu0 %v841
    %3451 = vmatprep.subr.mxu0 %v836
    %3452 = vmatpush1.msra.mxu0 %v835
    %3453 = vmatprep.subr.mxu0 %v830
    %3454 = vmatpush1.msra.mxu0 %v829
    %3455 = vmatprep.subr.mxu0 %v824
    %3456 = vmatpush1.msra.mxu0 %v823
    %3457 = vmatprep.subr.mxu0 %v818
    %3458 = vmatpush1.msra.mxu0 %v817
    %3459 = vmatprep.subr.mxu0 %v812
    %3460 = vmatpush1.msra.mxu0 %v811
    %3461 = vmatprep.subr.mxu0 %v806
    %3462 = vmatpush1.msra.mxu0 %v805
    %3463 = vmatprep.subr.mxu0 %v800
    %3464 = vmatpush1.msra.mxu0 %v799
    %3465 = vmatprep.subr.mxu0 %v794
    %3466 = vmatpush1.msra.mxu0 %v793
    %3467 = vmatprep.subr.mxu0 %v788
    %3468 = vmatpush1.msra.mxu0 %v787
    %3469 = vmatprep.subr.mxu0 %v974
    %3470 = vmatpush2.msra.mxu0 %v973
    %3471 = vmatprep.subr.mxu0 %v968
    %3472 = vmatpush2.msra.mxu0 %v967
    %3473 = vmatprep.subr.mxu0 %v962
    %3474 = vmatpush2.msra.mxu0 %v961
    %3475 = vmatprep.subr.mxu0 %v956
    %3476 = vmatpush2.msra.mxu0 %v955
    %3477 = vmatprep.subr.mxu0 %v950
    %3478 = vmatpush2.msra.mxu0 %v949
    %3479 = vmatprep.subr.mxu0 %v944
    %3480 = vmatpush2.msra.mxu0 %v943
    %3481 = vmatprep.subr.mxu0 %v938
    %3482 = vmatpush2.msra.mxu0 %v937
    %3483 = vmatprep.subr.mxu0 %v932
    %3484 = vmatpush2.msra.mxu0 %v931
    %3485 = vmatprep.subr.mxu0 %v926
    %3486 = vmatpush2.msra.mxu0 %v925
    %3487 = vmatprep.subr.mxu0 %v920
    %3488 = vmatpush2.msra.mxu0 %v919
    %3489 = vmatprep.subr.mxu0 %v914
    %3490 = vmatpush2.msra.mxu0 %v913
    %3491 = vmatprep.subr.mxu0 %v908
    %3492 = vmatpush2.msra.mxu0 %v907
    %3493 = vmatprep.subr.mxu0 %v902
    %3494 = vmatpush2.msra.mxu0 %v901
    %3495 = vmatprep.subr.mxu0 %v896
    %3496 = vmatpush2.msra.mxu0 %v895
    %3497 = vmatprep.subr.mxu0 %v890
    %3498 = vmatpush2.msra.mxu0 %v889
    %3499 = vmatprep.subr.mxu0 %v884
    %3500 = vmatpush2.msra.mxu0 %v883
    %3501 = vmatprep.mubr.f32.mxu0 %v3430
    %3502 = vmatmul.mubr.f32.gmra.mxu0 %v3429
    %v3503 = vpop.f32.mrf.mxu0
    %v3504 = vadd.f32 0.0, %v3503
    %v3505 = vpop.f32.mrf.mxu0
    %v3506 = vadd.f32 0.0, %v3505
    %3507 = vdwg.mxu0
    %3508 = vmatprep.subr.mxu0 %v880
    %3509 = vmatpush1.msra.mxu0 %v879
    %3510 = vmatprep.subr.mxu0 %v874
    %3511 = vmatpush1.msra.mxu0 %v873
    %3512 = vmatprep.subr.mxu0 %v868
    %3513 = vmatpush1.msra.mxu0 %v867
    %3514 = vmatprep.subr.mxu0 %v862
    %3515 = vmatpush1.msra.mxu0 %v861
    %3516 = vmatprep.subr.mxu0 %v856
    %3517 = vmatpush1.msra.mxu0 %v855
    %3518 = vmatprep.subr.mxu0 %v850
    %3519 = vmatpush1.msra.mxu0 %v849
    %3520 = vmatprep.subr.mxu0 %v844
    %3521 = vmatpush1.msra.mxu0 %v843
    %3522 = vmatprep.subr.mxu0 %v838
    %3523 = vmatpush1.msra.mxu0 %v837
    %3524 = vmatprep.subr.mxu0 %v832
    %3525 = vmatpush1.msra.mxu0 %v831
    %3526 = vmatprep.subr.mxu0 %v826
    %3527 = vmatpush1.msra.mxu0 %v825
    %3528 = vmatprep.subr.mxu0 %v820
    %3529 = vmatpush1.msra.mxu0 %v819
    %3530 = vmatprep.subr.mxu0 %v814
    %3531 = vmatpush1.msra.mxu0 %v813
    %3532 = vmatprep.subr.mxu0 %v808
    %3533 = vmatpush1.msra.mxu0 %v807
    %3534 = vmatprep.subr.mxu0 %v802
    %3535 = vmatpush1.msra.mxu0 %v801
    %3536 = vmatprep.subr.mxu0 %v796
    %3537 = vmatpush1.msra.mxu0 %v795
    %3538 = vmatprep.subr.mxu0 %v790
    %3539 = vmatpush1.msra.mxu0 %v789
    %3540 = vmatprep.subr.mxu0 %v976
    %3541 = vmatpush2.msra.mxu0 %v975
    %3542 = vmatprep.subr.mxu0 %v970
    %3543 = vmatpush2.msra.mxu0 %v969
    %3544 = vmatprep.subr.mxu0 %v964
    %3545 = vmatpush2.msra.mxu0 %v963
    %3546 = vmatprep.subr.mxu0 %v958
    %3547 = vmatpush2.msra.mxu0 %v957
    %3548 = vmatprep.subr.mxu0 %v952
    %3549 = vmatpush2.msra.mxu0 %v951
    %3550 = vmatprep.subr.mxu0 %v946
    %3551 = vmatpush2.msra.mxu0 %v945
    %3552 = vmatprep.subr.mxu0 %v940
    %3553 = vmatpush2.msra.mxu0 %v939
    %3554 = vmatprep.subr.mxu0 %v934
    %3555 = vmatpush2.msra.mxu0 %v933
    %3556 = vmatprep.subr.mxu0 %v928
    %3557 = vmatpush2.msra.mxu0 %v927
    %3558 = vmatprep.subr.mxu0 %v922
    %3559 = vmatpush2.msra.mxu0 %v921
    %3560 = vmatprep.subr.mxu0 %v916
    %3561 = vmatpush2.msra.mxu0 %v915
    %3562 = vmatprep.subr.mxu0 %v910
    %3563 = vmatpush2.msra.mxu0 %v909
    %3564 = vmatprep.subr.mxu0 %v904
    %3565 = vmatpush2.msra.mxu0 %v903
    %3566 = vmatprep.subr.mxu0 %v898
    %3567 = vmatpush2.msra.mxu0 %v897
    %3568 = vmatprep.subr.mxu0 %v892
    %3569 = vmatpush2.msra.mxu0 %v891
    %3570 = vmatprep.subr.mxu0 %v886
    %3571 = vmatpush2.msra.mxu0 %v885
    %3572 = vmatprep.mubr.f32.mxu0 %v3430
    %3573 = vmatmul.mubr.f32.gmra.mxu0 %v3429
    %v3574 = vpop.f32.mrf.mxu0
    %v3575 = vadd.f32 0.0, %v3574
    %v3576 = vpop.f32.mrf.mxu0
    %v3577 = vadd.f32 0.0, %v3576
    %3578 = vdwg.mxu0
    %3579 = vmatprep.subr.mxu0 %v882
    %3580 = vmatpush1.msra.mxu0 %v881
    %3581 = vmatprep.subr.mxu0 %v876
    %3582 = vmatpush1.msra.mxu0 %v875
    %3583 = vmatprep.subr.mxu0 %v870
    %3584 = vmatpush1.msra.mxu0 %v869
    %3585 = vmatprep.subr.mxu0 %v864
    %3586 = vmatpush1.msra.mxu0 %v863
    %3587 = vmatprep.subr.mxu0 %v858
    %3588 = vmatpush1.msra.mxu0 %v857
    %3589 = vmatprep.subr.mxu0 %v852
    %3590 = vmatpush1.msra.mxu0 %v851
    %3591 = vmatprep.subr.mxu0 %v846
    %3592 = vmatpush1.msra.mxu0 %v845
    %3593 = vmatprep.subr.mxu0 %v840
    %3594 = vmatpush1.msra.mxu0 %v839
    %3595 = vmatprep.subr.mxu0 %v834
    %3596 = vmatpush1.msra.mxu0 %v833
    %3597 = vmatprep.subr.mxu0 %v828
    %3598 = vmatpush1.msra.mxu0 %v827
    %3599 = vmatprep.subr.mxu0 %v822
    %3600 = vmatpush1.msra.mxu0 %v821
    %3601 = vmatprep.subr.mxu0 %v816
    %3602 = vmatpush1.msra.mxu0 %v815
    %3603 = vmatprep.subr.mxu0 %v810
    %3604 = vmatpush1.msra.mxu0 %v809
    %3605 = vmatprep.subr.mxu0 %v804
    %3606 = vmatpush1.msra.mxu0 %v803
    %3607 = vmatprep.subr.mxu0 %v798
    %3608 = vmatpush1.msra.mxu0 %v797
    %3609 = vmatprep.subr.mxu0 %v792
    %3610 = vmatpush1.msra.mxu0 %v791
    %3611 = vmatprep.subr.mxu0 %v978
    %3612 = vmatpush2.msra.mxu0 %v977
    %3613 = vmatprep.subr.mxu0 %v972
    %3614 = vmatpush2.msra.mxu0 %v971
    %3615 = vmatprep.subr.mxu0 %v966
    %3616 = vmatpush2.msra.mxu0 %v965
    %3617 = vmatprep.subr.mxu0 %v960
    %3618 = vmatpush2.msra.mxu0 %v959
    %3619 = vmatprep.subr.mxu0 %v954
    %3620 = vmatpush2.msra.mxu0 %v953
    %3621 = vmatprep.subr.mxu0 %v948
    %3622 = vmatpush2.msra.mxu0 %v947
    %3623 = vmatprep.subr.mxu0 %v942
    %3624 = vmatpush2.msra.mxu0 %v941
    %3625 = vmatprep.subr.mxu0 %v936
    %3626 = vmatpush2.msra.mxu0 %v935
    %3627 = vmatprep.subr.mxu0 %v930
    %3628 = vmatpush2.msra.mxu0 %v929
    %3629 = vmatprep.subr.mxu0 %v924
    %3630 = vmatpush2.msra.mxu0 %v923
    %3631 = vmatprep.subr.mxu0 %v918
    %3632 = vmatpush2.msra.mxu0 %v917
    %3633 = vmatprep.subr.mxu0 %v912
    %3634 = vmatpush2.msra.mxu0 %v911
    %3635 = vmatprep.subr.mxu0 %v906
    %3636 = vmatpush2.msra.mxu0 %v905
    %3637 = vmatprep.subr.mxu0 %v900
    %3638 = vmatpush2.msra.mxu0 %v899
    %3639 = vmatprep.subr.mxu0 %v894
    %3640 = vmatpush2.msra.mxu0 %v893
    %3641 = vmatprep.subr.mxu0 %v888
    %3642 = vmatpush2.msra.mxu0 %v887
    %3643 = vmatprep.mubr.f32.mxu0 %v3430
    %3644 = vmatmul.mubr.f32.gmra.mxu0 %v3429
    %v3645 = vpop.f32.mrf.mxu0
    %v3646 = vadd.f32 0.0, %v3645
    %v3647 = vpop.f32.mrf.mxu0
    %v3648 = vadd.f32 0.0, %v3647
    %3649 = vdwg.mxu0
    %v3650 = vadd.f32 %v3431, %v3504
    %v3651 = vadd.f32 %v3432, %v3506
    %v3652 = vxor.u32 %v3650, 2147483648
    %v3653 = vxor.u32 %v3651, 2147483648
    %v3654 = vmul.f32 %v3652, 1.442695
    %v3655 = vpow.pop %v3654
    %v3656 = vmul.f32 %v3653, 1.442695
    %v3657 = vpow.pop %v3656
    %v3658 = vadd.f32 %v3655, 1.0
    %v3659 = vadd.f32 %v3657, 1.0
    %v3660 = vrcp.pop %v3658
    %v3661 = vmul.f32 1.0, %v3660
    %v3662 = vrcp.pop %v3659
    %v3663 = vmul.f32 1.0, %v3662
    %v3664 = vadd.f32 %v3433, %v3575
    %v3665 = vadd.f32 %v3434, %v3577
    %v3666 = vxor.u32 %v3664, 2147483648
    %v3667 = vxor.u32 %v3665, 2147483648
    %v3668 = vmul.f32 %v3666, 1.442695
    %v3669 = vpow.pop %v3668
    %v3670 = vmul.f32 %v3667, 1.442695
    %v3671 = vpow.pop %v3670
    %v3672 = vadd.f32 %v3669, 1.0
    %v3673 = vadd.f32 %v3671, 1.0
    %v3674 = vrcp.pop %v3672
    %v3675 = vmul.f32 1.0, %v3674
    %v3676 = vrcp.pop %v3673
    %v3677 = vmul.f32 1.0, %v3676
    %v3678 = vadd.f32 %v3646, %v1232
    %v3679 = vadd.f32 %v3648, %v1236
    %v3680 = vmul.f32 %v3661, %v3678
    %v3681 = vmul.f32 %v3663, %v3679
    %v3682 = vadd.f32 %v3435, %v3680
    %v3683 = vadd.f32 %v3436, %v3681
    %v3684 = vtanh.pop %v3682
    %v3685 = vtanh.pop %v3683
    %v3686 = vsub.f32 1.0, %v3675
    %v3687 = vsub.f32 1.0, %v3677
    %v3688 = vmul.f32 %v3686, %v3684
    %v3689 = vmul.f32 %v3687, %v3685
    %v3690 = vmul.f32 %v3675, %v3429
    %v3691 = vmul.f32 %v3677, %v3430
    %v3692 = vadd.f32 %v3688, %v3690
    %v3693 = vadd.f32 %v3689, %v3691
    %vm3694 = vcmp.gt.s32.totalorder %v980, 9
    %v3695 = vsel %vm3694, 1, 0
    %3696 = vset.pattern.permute.xlu0 0
    %3697 = vperm.xlu0 %3696, %v3695
    %v3698 = vpop.permute.xlu0 %3697
    %vm3699 = vcmp.eq.s32.totalorder %v3698, 1
    %v3700 = vsel %vm3699, %v3692, %v3429
    %v3701 = vsel %vm3699, %v3693, %v3430
    %v3702 = vld [vmem:[#allocation8] sm:$0xff]
    %v3703 = vld [vmem:[#allocation8 + $0x8] sm:$0xff]
    %v3704 = vld [vmem:[#allocation8 + $0x10] sm:$0xff]
    %v3705 = vld [vmem:[#allocation8 + $0x18] sm:$0xff]
    %v3706 = vld [vmem:[#allocation8 + $0x20] sm:$0xff]
    %v3707 = vld [vmem:[#allocation8 + $0x28] sm:$0xff]
    %v3708 = vld [vmem:[#allocation8 + $0x30] sm:$0xff]
    %v3709 = vld [vmem:[#allocation8 + $0x38] sm:$0xff]
    %v3710 = vld [vmem:[#allocation8 + $0x40] sm:$0xff]
    %v3711 = vld [vmem:[#allocation8 + $0x48] sm:$0xff]
    %v3712 = vld [vmem:[#allocation8 + $0x50] sm:$0xff]
    %v3713 = vld [vmem:[#allocation8 + $0x58] sm:$0xff]
    %v3714 = vld [vmem:[#allocation8 + $0x60] sm:$0xff]
    %v3715 = vld [vmem:[#allocation8 + $0x68] sm:$0xff]
    %v3716 = vld [vmem:[#allocation8 + $0x70] sm:$0xff]
    %v3717 = vld [vmem:[#allocation8 + $0x78] sm:$0xff]
    %v3718 = vld [vmem:[#allocation8 + $0x80] sm:$0xff]
    %v3719 = vld [vmem:[#allocation8 + $0x88] sm:$0xff]
    %v3720 = vld [vmem:[#allocation8 + $0x90] sm:$0xff]
    %v3721 = vld [vmem:[#allocation8 + $0x98] sm:$0xff]
    %v3722 = vld [vmem:[#allocation8 + $0xa0] sm:$0xff]
    %v3723 = vld [vmem:[#allocation8 + $0xa8] sm:$0xff]
    %v3724 = vld [vmem:[#allocation8 + $0xb0] sm:$0xff]
    %v3725 = vld [vmem:[#allocation8 + $0xb8] sm:$0xff]
    %v3726 = vld [vmem:[#allocation8 + $0xc0] sm:$0xff]
    %v3727 = vld [vmem:[#allocation8 + $0xc8] sm:$0xff]
    %v3728 = vld [vmem:[#allocation8 + $0xd0] sm:$0xff]
    %v3729 = vld [vmem:[#allocation8 + $0xd8] sm:$0xff]
    %v3730 = vld [vmem:[#allocation8 + $0xe0] sm:$0xff]
    %v3731 = vld [vmem:[#allocation8 + $0xe8] sm:$0xff]
    %v3732 = vld [vmem:[#allocation8 + $0xf0] sm:$0xff]
    %v3733 = vld [vmem:[#allocation8 + $0xf8] sm:$0xff]
    %v3734 = vld [vmem:[%s6] sm:$0x1]
    %v3736 = vlaneseq
    %v3737 = vshrl.u32 %v3736, 7
    %v3738 = vsub.s32 0, %v3737
    %v3739 = vrot.slane %v3734, %v3738
    %3741 = vmatprep.subr.mxu0 0.0
    %3742 = vmatpush1.msra.mxu0 %v3717
    %3743 = vmatprep.subr.mxu0 0.0
    %3744 = vmatpush1.msra.mxu0 %v3716
    %3745 = vmatprep.subr.mxu0 0.0
    %3746 = vmatpush1.msra.mxu0 %v3715
    %3747 = vmatprep.subr.mxu0 0.0
    %3748 = vmatpush1.msra.mxu0 %v3714
    %3749 = vmatprep.subr.mxu0 0.0
    %3750 = vmatpush1.msra.mxu0 %v3713
    %3751 = vmatprep.subr.mxu0 0.0
    %3752 = vmatpush1.msra.mxu0 %v3712
    %3753 = vmatprep.subr.mxu0 0.0
    %3754 = vmatpush1.msra.mxu0 %v3711
    %3755 = vmatprep.subr.mxu0 0.0
    %3756 = vmatpush1.msra.mxu0 %v3710
    %3757 = vmatprep.subr.mxu0 0.0
    %3758 = vmatpush1.msra.mxu0 %v3709
    %3759 = vmatprep.subr.mxu0 0.0
    %3760 = vmatpush1.msra.mxu0 %v3708
    %3761 = vmatprep.subr.mxu0 0.0
    %3762 = vmatpush1.msra.mxu0 %v3707
    %3763 = vmatprep.subr.mxu0 0.0
    %3764 = vmatpush1.msra.mxu0 %v3706
    %3765 = vmatprep.subr.mxu0 0.0
    %3766 = vmatpush1.msra.mxu0 %v3705
    %3767 = vmatprep.subr.mxu0 0.0
    %3768 = vmatpush1.msra.mxu0 %v3704
    %3769 = vmatprep.subr.mxu0 0.0
    %3770 = vmatpush1.msra.mxu0 %v3703
    %3771 = vmatprep.subr.mxu0 0.0
    %3772 = vmatpush1.msra.mxu0 %v3702
    %3773 = vmatprep.subr.mxu0 0.0
    %3774 = vmatpush2.msra.mxu0 %v3733
    %3775 = vmatprep.subr.mxu0 0.0
    %3776 = vmatpush2.msra.mxu0 %v3732
    %3777 = vmatprep.subr.mxu0 0.0
    %3778 = vmatpush2.msra.mxu0 %v3731
    %3779 = vmatprep.subr.mxu0 0.0
    %3780 = vmatpush2.msra.mxu0 %v3730
    %3781 = vmatprep.subr.mxu0 0.0
    %3782 = vmatpush2.msra.mxu0 %v3729
    %3783 = vmatprep.subr.mxu0 0.0
    %3784 = vmatpush2.msra.mxu0 %v3728
    %3785 = vmatprep.subr.mxu0 0.0
    %3786 = vmatpush2.msra.mxu0 %v3727
    %3787 = vmatprep.subr.mxu0 0.0
    %3788 = vmatpush2.msra.mxu0 %v3726
    %3789 = vmatprep.subr.mxu0 0.0
    %3790 = vmatpush2.msra.mxu0 %v3725
    %3791 = vmatprep.subr.mxu0 0.0
    %3792 = vmatpush2.msra.mxu0 %v3724
    %3793 = vmatprep.subr.mxu0 0.0
    %3794 = vmatpush2.msra.mxu0 %v3723
    %3795 = vmatprep.subr.mxu0 0.0
    %3796 = vmatpush2.msra.mxu0 %v3722
    %3797 = vmatprep.subr.mxu0 0.0
    %3798 = vmatpush2.msra.mxu0 %v3721
    %3799 = vmatprep.subr.mxu0 0.0
    %3800 = vmatpush2.msra.mxu0 %v3720
    %3801 = vmatprep.subr.mxu0 0.0
    %3802 = vmatpush2.msra.mxu0 %v3719
    %3803 = vmatprep.subr.mxu0 0.0
    %3804 = vmatpush2.msra.mxu0 %v3718
    %3805 = vmatprep.mubr.f32.mxu0 %v3701
    %3806 = vmatmul.mubr.f32.gmra.mxu0 %v3700
    %v3807 = vpop.f32.mrf.mxu0
    %v3808 = vadd.f32 %v3739, %v3807
    %v3809 = vpop.f32.mrf.mxu0
    %3810 = vdwg.mxu0
    %vm3811 = vcmp.lt.s32.totalorder %v79, 4
    %v3812 = vsel %vm3811, %v3808, -1e+30
    %3813 = vmax.xlane.f32.xlu0 %v3812
    %v3814 = vpop.xlane.xlu0 %3813
    %v3815 = vsub.f32 %v3812, %v3814
    %v3816 = vmul.f32 %v3815, 1.442695
    %v3817 = vpow.pop %v3816
    %3818 = vadd.xlane.f32.xlu0 %v3817
    %v3819 = vpop.xlane.xlu0 %3818
    %v3820 = vrcp.pop %v3819
    %v3821 = vmul.f32 %v3817, %v3820
    %3822 = vst [vmem:[#allocation9] sm:$0xff] %v3821
    // Predicated region
    $region42: #{tpu_custom_call.1} parent=1 // pred_check
      _
    $region43: #{tpu_custom_call.1} parent=1 // pred_check_branch
      %3824 = sbr.rel (0) target = $region45
    $region44: #{tpu_custom_call.1} parent=1 // pred_region
      %s3826 = ssub.s32 128, 128
      %3827 = vsyncadd [#allocation5], %s3826
      %s3829 = sshll.u32 [#allocation9], 4
      %s3830 = int_to_ptr.vmem [resolvable:$true] %s3829
      %3832 = dma.vmem_to_hbm [thread:$0]  %s3830, 128, %s7, [#allocation5]
    $region45: #{tpu_custom_call.1} parent=1 // pred_fallthru
      _
    // Predicated region
    $region46: #{tpu_custom_call.1} parent=1 // pred_check
      _
    $region47: #{tpu_custom_call.1} parent=1 // pred_check_branch
      %3834 = sbr.rel (0) target = $region49
    $region48: #{tpu_custom_call.1} parent=1 // pred_region
      %3835 = dma.done [#allocation5], 128
    $region49: #{tpu_custom_call.1} parent=1 // pred_fallthru
      _
    %3836 = vsyncpa [#allocation4], 1
    %3837 = vsyncpa [#allocation7], 1
    %3838 = vsyncpa [#allocation5], 1

</llo_original>
